<compile_context>
chip_gen: v7x
topology: tpu7x:2x2x1
jax: 0.10.0
libtpu: 0.0.40
codegen_flags: <defaults>
</compile_context>

<pallas_src>
import numpy as np
import jax
import jax.numpy as jnp
from jax import lax
from jax.experimental import pallas as pl
from jax.experimental.pallas import tpu as pltpu

# ---------------- configuration (small synthetic sizes) ----------------
IN_NODE_FEAT = 8
HIDDEN = 32
OUT_NODE_FEAT = 16
TIME_EMB = 8
DEPTH = 2
NUM_TIMESTEPS = 100
N_KNN = 4
NUM_GAUSSIAN = 20
NORM_FACTOR = 5.0          # GCL normalization_factor (folded into node W1 at init)
LN_EPS = 1e-5
DIST_START, DIST_STOP = 0.0, 4.0
EDGE_K_PAD = 128           # fused edge-MLP contraction width (zero padded)

assert 2 * HIDDEN + TIME_EMB + NUM_GAUSSIAN <= EDGE_K_PAD

F32 = jnp.float32
BF16 = jnp.bfloat16


# ---------------- in-kernel helpers (f32 VPU math) ----------------
def _layernorm(x, g, b):
    mu = jnp.mean(x, axis=-1, keepdims=True)
    xc = x - mu
    var = jnp.mean(xc * xc, axis=-1, keepdims=True)
    return xc * lax.rsqrt(var + LN_EPS) * g + b


def _silu(x):
    return x * jax.nn.sigmoid(x)


# ---------------- single fused Pallas kernel (entire forward) ----------------
def fused_classifier_kernel(
    # data
    hin_ref,        # (N, IN+TEMB) f32  node features ++ time embedding
    radial_ref,     # (E, 1)       f32  squared edge distances
    mask_ref,       # (E, 1)       f32  (distance<7) & knn-valid filter
    etime_ref,      # (E, TEMB)    f32  per-edge time embedding
    col_ref,        # (E,)         i32  neighbour indices (SMEM)
    pool_ref,       # (B, N)       f32  pre-normalized mean-pool matrix
    # GaussianSmearing buffers
    gsoff_ref, gscoef_ref,          # (1, G) f32
    # embeddings & head
    wi_ref, bi_ref,                 # (IN+TEMB, H) bf16, (1, H)   f32
    wo_ref, bo_ref,                 # (H, OUT)     bf16, (1, OUT) f32
    ow_ref, ob_ref,                 # (1, OUT) f32,      (1, 1)   f32
    # stacked GCL edge-MLP params
    ew1_ref,                        # (D, 128, H) bf16  [src|tgt|time|gauss|0]
    eb1_ref, eg_ref, ebt_ref,       # (D, 1, H) f32
    ew2_ref, eb2_ref,               # (D, H, H) bf16, (D, 1, H) f32
    aw_ref, ab_ref,                 # (D, 1, H) f32,  (D, 1, 1) f32
    # stacked GCL node-MLP params
    nw1_ref,                        # (D, 2H, H) bf16  (agg half pre-scaled 1/NORM)
    nb1_ref, ng_ref, nbt_ref,       # (D, 1, H) f32
    nw2_ref, nb2_ref,               # (D, H, H) bf16, (D, 1, H) f32
    # output
    out_ref,        # (B, 1) f32 logits
    # scratch
    hstage_ref,     # (N, H) f32  staging of current h for dynamic row reads
    htgt_ref,       # (E, H) f32  gathered h[col]
):
    N = hin_ref.shape[0]
    E = etime_ref.shape[0]
    K = E // N
    H = HIDDEN

    # ---- GaussianSmearing (clamp matches reference GaussianSmearing.forward) ----
    d = jnp.clip(jnp.sqrt(radial_ref[...]), DIST_START, DIST_STOP)      # (E, 1)
    diff = d - gsoff_ref[...]
    smeared = jnp.exp(gscoef_ref[...] * diff * diff)                     # (E, G)

    # h-independent edge features, built ONCE (hoisted out of the layer loop)
    # and padded to a 64-lane slab so the per-layer edge matmul is a single
    # K=128 contraction.
    ea_pad = jnp.concatenate(
        [etime_ref[...], smeared,
         jnp.zeros((E, EDGE_K_PAD - 2 * H - TIME_EMB - NUM_GAUSSIAN), F32)],
        axis=-1).astype(BF16)                                            # (E, 64)
    mask = mask_ref[...]                                                 # (E, 1)

    # ---- embedding_in ----
    h = (jnp.dot(hin_ref[...].astype(BF16), wi_ref[...],
                 preferred_element_type=jnp.float32) + bi_ref[...])     # (N, H) f32

    # ---- GCL stack (static unroll, h resident in VMEM/vregs throughout) ----
    for l in range(DEPTH):
        # --- index-driven gather of h[col] (exact f32 rows, O(E), no one-hot) ---
        hstage_ref[...] = h

        def gather_row(e, carry):
            c = col_ref[e]
            htgt_ref[pl.ds(e, 1), :] = hstage_ref[pl.ds(c, 1), :]
            return carry

        lax.fori_loop(0, E, gather_row, 0)
        h_tgt = htgt_ref[...]                                            # (E, H)

        h_bf = h.astype(BF16)
        # h[row]: edges are ordered e = j*N + i, so the "source" gather is just
        # K stacked copies of h (no matmul, no data-dependent indexing).
        h_src_bf = jnp.concatenate([h_bf] * K, axis=0)                   # (E, H)

        # --- edge MLP: single fused K=128 matmul over [src|tgt|time|gauss|0] ---
        edge_in = jnp.concatenate([h_src_bf, h_tgt.astype(BF16), ea_pad],
                                  axis=-1)                               # (E, 128)
        z = (jnp.dot(edge_in, ew1_ref[l], preferred_element_type=jnp.float32)
             + eb1_ref[l])
        z = _silu(_layernorm(z, eg_ref[l], ebt_ref[l]))
        mij = _silu(jnp.dot(z.astype(BF16), ew2_ref[l],
                            preferred_element_type=jnp.float32) + eb2_ref[l])
        # attention Linear(H, 1) as a lane reduction (no width-1 MXU matmul)
        att = jax.nn.sigmoid(jnp.sum(mij * aw_ref[l], axis=-1, keepdims=True)
                             + ab_ref[l])
        edge_feat = mij * att * mask                                     # (E, H)

        # --- unsorted_segment_sum over row: K contiguous (N, H) slab adds ---
        agg = edge_feat[0:N, :]
        for j in range(1, K):
            agg = agg + edge_feat[j * N:(j + 1) * N, :]                  # (N, H)

        # --- node MLP: fused K=2H matmul (1/NORM folded into the agg half) ---
        node_in = jnp.concatenate([h_bf, agg.astype(BF16)], axis=-1)     # (N, 2H)
        zn = (jnp.dot(node_in, nw1_ref[l], preferred_element_type=jnp.float32)
              + nb1_ref[l])
        zn = _silu(_layernorm(zn, ng_ref[l], nbt_ref[l]))
        zn = jnp.dot(zn.astype(BF16), nw2_ref[l],
                     preferred_element_type=jnp.float32) + nb2_ref[l]
        h = h + zn                                                       # residual

    # ---- embedding_out + global_mean_pool + head (lane reduction, no transpose) ----
    h_out = (jnp.dot(h.astype(BF16), wo_ref[...],
                     preferred_element_type=jnp.float32) + bo_ref[...])  # (N, OUT)
    pooled = jnp.dot(pool_ref[...], h_out,
                     preferred_element_type=jnp.float32)                 # (B, OUT)
    out_ref[...] = (jnp.sum(pooled * ow_ref[...], axis=-1, keepdims=True)
                    + ob_ref[...])                                       # (B, 1)


# ---------------- parameter initialization (deterministic, synthetic) ----------------
def _linear_params(key, fan_in, fan_out):
    kw, kb = jax.random.split(key)
    bound = 1.0 / np.sqrt(fan_in)
    w = jax.random.uniform(kw, (fan_in, fan_out), F32, -bound, bound)
    b = jax.random.uniform(kb, (1, fan_out), F32, -bound, bound)
    return w, b


def init_params(key):
    keys = iter(jax.random.split(key, 64))
    p = {}
    p["time_emb_table"] = jax.random.normal(next(keys), (NUM_TIMESTEPS, TIME_EMB), F32)

    wi, bi = _linear_params(next(keys), IN_NODE_FEAT + TIME_EMB, HIDDEN)
    wo, bo = _linear_params(next(keys), HIDDEN, OUT_NODE_FEAT)
    ow, ob = _linear_params(next(keys), OUT_NODE_FEAT, 1)
    p["wi"], p["bi"] = wi.astype(BF16), bi
    p["wo"], p["bo"] = wo.astype(BF16), bo
    p["ow"], p["ob"] = ow.T, ob                       # (1, OUT) row, (1, 1)

    edge_in_d = TIME_EMB + NUM_GAUSSIAN               # add_bond=False path
    ew1, eb1, eg, ebt, ew2, eb2, aw, ab = ([] for _ in range(8))
    nw1, nb1, ng, nbt, nw2, nb2 = ([] for _ in range(6))
    for _ in range(DEPTH):
        # edge MLP first linear: rows ordered [h_src | h_tgt | time | gauss],
        # zero-padded to EDGE_K_PAD for the fused K=128 matmul.
        w1, b1 = _linear_params(next(keys), 2 * HIDDEN + edge_in_d, HIDDEN)
        w1p = jnp.zeros((EDGE_K_PAD, HIDDEN), F32).at[:w1.shape[0]].set(w1)
        ew1.append(w1p)
        eb1.append(b1)
        eg.append(jnp.ones((1, HIDDEN), F32))
        ebt.append(jnp.zeros((1, HIDDEN), F32))
        w2, b2 = _linear_params(next(keys), HIDDEN, HIDDEN)
        ew2.append(w2)
        eb2.append(b2)
        a_w, a_b = _linear_params(next(keys), HIDDEN, 1)
        aw.append(a_w.T)                               # (1, H)
        ab.append(a_b)                                 # (1, 1)

        # node MLP first linear: [x | agg], with 1/normalization_factor folded
        # into the agg half of the weight.
        n1, nbias1 = _linear_params(next(keys), 2 * HIDDEN, HIDDEN)
        n1 = jnp.concatenate([n1[:HIDDEN], n1[HIDDEN:] / NORM_FACTOR], axis=0)
        nw1.append(n1)
        nb1.append(nbias1)
        ng.append(jnp.ones((1, HIDDEN), F32))
        nbt.append(jnp.zeros((1, HIDDEN), F32))
        n2, nbias2 = _linear_params(next(keys), HIDDEN, HIDDEN)
        nw2.append(n2)
        nb2.append(nbias2)

    def stack(xs, dt=F32):
        return jnp.stack(xs).astype(dt)

    p["ew1"] = stack(ew1, BF16)
    p["eb1"], p["eg"], p["ebt"] = stack(eb1), stack(eg), stack(ebt)
    p["ew2"], p["eb2"] = stack(ew2, BF16), stack(eb2)
    p["aw"], p["ab"] = stack(aw), stack(ab)
    p["nw1"] = stack(nw1, BF16)
    p["nb1"], p["ng"], p["nbt"] = stack(nb1), stack(ng), stack(nbt)
    p["nw2"], p["nb2"] = stack(nw2, BF16), stack(nb2)

    # GaussianSmearing('exp') buffers
    off = np.exp(np.linspace(np.log(DIST_START + 1.0), np.log(DIST_STOP + 1.0),
                             NUM_GAUSSIAN)) - 1.0
    dd = np.diff(off)
    dd = np.concatenate([dd[:1], dd])
    p["gs_offset"] = jnp.asarray(off, F32).reshape(1, -1)
    p["gs_coeff"] = jnp.asarray(-0.5 / dd ** 2, F32).reshape(1, -1)
    return p


# ---------------- graph construction glue (plain JAX) ----------------
def knn_edges(x, batch, k):
    # torch_geometric.knn_graph replica (flow='target_to_source', fixed E = N*k):
    # row = center, col = neighbour.  Edges are ordered e = j*N + i (j-th
    # neighbour of node i) so the in-kernel segment sum is K contiguous slabs.
    N = x.shape[0]
    d2 = jnp.sum((x[:, None, :] - x[None, :, :]) ** 2, axis=-1)
    same = batch[:, None] == batch[None, :]
    eye = jnp.eye(N, dtype=bool)
    d2 = jnp.where(same & ~eye, d2, jnp.inf)
    neg, nbr = lax.top_k(-d2, k)                      # (N, k) nearest in-ligand
    valid = jnp.isfinite(neg)                         # guards k >= ligand size
    row = jnp.tile(jnp.arange(N, dtype=jnp.int32), k)          # (E,)
    col = nbr.T.reshape(-1).astype(jnp.int32)                  # (E,)
    valid = valid.T.reshape(-1)                                # (E,)
    return row, col, valid


def _vmem_limit_bytes():
    # Generation-aware budget: ~75% of physical VMEM (v7x: 48 of 64 MiB,
    # v5e/v6e: 96 of 128 MiB) so the compiler keeps headroom for copies.
    try:
        cap = int(getattr(pltpu.get_tpu_info(), "vmem_capacity_bytes",
                          64 * 1024 * 1024))
    except Exception:
        cap = 64 * 1024 * 1024
    return (cap * 3) // 4


# ---------------- full forward pass ----------------
def classifier_forward(params, x, h0, t, t_bond, batch_ligand,
                       num_atoms_per_ligand, num_ligands):
    N = x.shape[0]
    n = num_atoms_per_ligand
    B = num_ligands
    assert N_KNN < n, "n_knn must be smaller than atoms-per-ligand"

    row, col, valid = knn_edges(x, batch_ligand, N_KNN)
    E = row.shape[0]

    # coord2diff + distance filter + knn-validity (as a mask over the fixed set)
    radial = jnp.sum((x[row] - x[col]) ** 2, axis=1, keepdims=True)      # (E, 1)
    mask = ((radial < 7.0) & valid[:, None]).astype(F32)

    # selected_bond_indices (add_bond=False path -> indexes t_bond); the clip
    # only affects already-masked (invalid) edges so it cannot change results.
    bond_idx = (row * (n - 1) + col - (row // n) * n
                - (row < col).astype(jnp.int32))
    bond_idx = jnp.clip(bond_idx, 0, t_bond.shape[0] - 1)
    edge_time_emb = params["time_emb_table"][t_bond[bond_idx]]           # (E, TEMB)

    # node time embedding (embedding-table gather is glue)
    node_time_emb = params["time_emb_table"][t]                          # (N, TEMB)
    h_in = jnp.concatenate([h0, node_time_emb], axis=-1)                 # (N, in+temb)

    # pre-normalized mean-pool matrix (guarded against empty ligands)
    pool = (batch_ligand[None, :] == jnp.arange(B)[:, None]).astype(F32)
    pool = pool / jnp.maximum(jnp.sum(pool, axis=1, keepdims=True), 1.0)

    operands = (
        h_in, radial, mask, edge_time_emb, col, pool,
        params["gs_offset"], params["gs_coeff"],
        params["wi"], params["bi"], params["wo"], params["bo"],
        params["ow"], params["ob"],
        params["ew1"], params["eb1"], params["eg"], params["ebt"],
        params["ew2"], params["eb2"], params["aw"], params["ab"],
        params["nw1"], params["nb1"], params["ng"], params["nbt"],
        params["nw2"], params["nb2"],
    )

    vmem_spec = pl.BlockSpec(memory_space=pltpu.MemorySpace.VMEM)
    in_specs = [vmem_spec] * len(operands)
    in_specs[4] = pl.BlockSpec(memory_space=pltpu.MemorySpace.SMEM)   # col indices

    y = pl.pallas_call(
        fused_classifier_kernel,
        out_shape=jax.ShapeDtypeStruct((B, 1), F32),
        in_specs=in_specs,
        out_specs=vmem_spec,
        scratch_shapes=[
            pltpu.VMEM((N, HIDDEN), F32),     # staging of h for dynamic row reads
            pltpu.VMEM((E, HIDDEN), F32),     # gathered h[col]
        ],
        compiler_params=pltpu.CompilerParams(
            vmem_limit_bytes=_vmem_limit_bytes()),
    )(*operands)
    return y[:, 0]                                                       # (B,)


classifier_forward_jit = jax.jit(classifier_forward, static_argnums=(6, 7))


# ---------------- main ----------------
if __name__ == "__main__":
    key = jax.random.PRNGKey(0)
    k_param, k_x, k_h, k_tb = jax.random.split(key, 4)

    num_ligands = 2
    num_atoms_per_ligand = 8
    N = num_ligands * num_atoms_per_ligand

    params = init_params(k_param)

    x = jax.random.normal(k_x, (N, 3), F32) * 2.0                        # coordinates
    h0 = jax.random.normal(k_h, (N, IN_NODE_FEAT), F32)                  # node features
    t = jnp.full((N,), 17, dtype=jnp.int32)                              # per-atom timestep
    t_bond = jax.random.randint(
        k_tb, (num_ligands * num_atoms_per_ligand * (num_atoms_per_ligand - 1),),
        0, NUM_TIMESTEPS, dtype=jnp.int32)                               # per-bond timestep
    batch_ligand = jnp.repeat(jnp.arange(num_ligands, dtype=jnp.int32),
                              num_atoms_per_ligand)

    out = classifier_forward_jit(params, x, h0, t, t_bond, batch_ligand,
                                 num_atoms_per_ligand, num_ligands)
    out = jax.block_until_ready(out)
    assert out.shape == (num_ligands,)
    assert bool(jnp.all(jnp.isfinite(out)))
    print("KERNEL_OK")
</pallas_src>

<mosaic_0001>
module attributes {stable_mosaic.version = 11 : i64} {
  func.func @fused_classifier_kernel(%arg0: memref<16x16xf32, #tpu.memory_space<vmem>>, %arg1: memref<64x1xf32, #tpu.memory_space<vmem>>, %arg2: memref<64x1xf32, #tpu.memory_space<vmem>>, %arg3: memref<64x8xf32, #tpu.memory_space<vmem>>, %arg4: memref<64xi32, #tpu.memory_space<smem>>, %arg5: memref<2x16xf32, #tpu.memory_space<vmem>>, %arg6: memref<1x20xf32, #tpu.memory_space<vmem>>, %arg7: memref<1x20xf32, #tpu.memory_space<vmem>>, %arg8: memref<16x32xbf16, #tpu.memory_space<vmem>>, %arg9: memref<1x32xf32, #tpu.memory_space<vmem>>, %arg10: memref<32x16xbf16, #tpu.memory_space<vmem>>, %arg11: memref<1x16xf32, #tpu.memory_space<vmem>>, %arg12: memref<1x16xf32, #tpu.memory_space<vmem>>, %arg13: memref<1x1xf32, #tpu.memory_space<vmem>>, %arg14: memref<2x128x32xbf16, #tpu.memory_space<vmem>>, %arg15: memref<2x1x32xf32, #tpu.memory_space<vmem>>, %arg16: memref<2x1x32xf32, #tpu.memory_space<vmem>>, %arg17: memref<2x1x32xf32, #tpu.memory_space<vmem>>, %arg18: memref<2x32x32xbf16, #tpu.memory_space<vmem>>, %arg19: memref<2x1x32xf32, #tpu.memory_space<vmem>>, %arg20: memref<2x1x32xf32, #tpu.memory_space<vmem>>, %arg21: memref<2x1x1xf32, #tpu.memory_space<vmem>>, %arg22: memref<2x64x32xbf16, #tpu.memory_space<vmem>>, %arg23: memref<2x1x32xf32, #tpu.memory_space<vmem>>, %arg24: memref<2x1x32xf32, #tpu.memory_space<vmem>>, %arg25: memref<2x1x32xf32, #tpu.memory_space<vmem>>, %arg26: memref<2x32x32xbf16, #tpu.memory_space<vmem>>, %arg27: memref<2x1x32xf32, #tpu.memory_space<vmem>>, %arg28: memref<2x1xf32, #tpu.memory_space<vmem>>, %arg29: memref<16x32xf32, #tpu.memory_space<vmem>>, %arg30: memref<64x32xf32, #tpu.memory_space<vmem>>) attributes {dimension_semantics = [], scalar_prefetch = 0 : i64, scratch_operands = 2 : i64, tpu.core_type = #tpu.core_type<tc>} {
    %c0 = arith.constant 0 : index
    %c0_0 = arith.constant 0 : index
    %0 = vector.load %arg1[%c0, %c0_0] : memref<64x1xf32, #tpu.memory_space<vmem>>, vector<64x1xf32>
    %1 = math.sqrt %0 : vector<64x1xf32>
    %cst = arith.constant 0.000000e+00 : f32
    %cst_1 = arith.constant 4.000000e+00 : f32
    %2 = vector.broadcast %cst : f32 to vector<64x1xf32>
    %3 = arith.maximumf %2, %1 : vector<64x1xf32>
    %4 = vector.broadcast %cst_1 : f32 to vector<64x1xf32>
    %5 = arith.minimumf %4, %3 : vector<64x1xf32>
    %c0_2 = arith.constant 0 : index
    %c0_3 = arith.constant 0 : index
    %6 = vector.load %arg6[%c0_2, %c0_3] : memref<1x20xf32, #tpu.memory_space<vmem>>, vector<1x20xf32>
    %7 = vector.broadcast %5 : vector<64x1xf32> to vector<64x20xf32>
    %8 = vector.broadcast %6 : vector<1x20xf32> to vector<64x20xf32>
    %9 = arith.subf %7, %8 : vector<64x20xf32>
    %c0_4 = arith.constant 0 : index
    %c0_5 = arith.constant 0 : index
    %10 = vector.load %arg7[%c0_4, %c0_5] : memref<1x20xf32, #tpu.memory_space<vmem>>, vector<1x20xf32>
    %11 = vector.broadcast %10 : vector<1x20xf32> to vector<64x20xf32>
    %12 = arith.mulf %11, %9 : vector<64x20xf32>
    %13 = arith.mulf %12, %9 : vector<64x20xf32>
    %14 = math.exp %13 : vector<64x20xf32>
    %c0_6 = arith.constant 0 : index
    %c0_7 = arith.constant 0 : index
    %15 = vector.load %arg3[%c0_6, %c0_7] : memref<64x8xf32, #tpu.memory_space<vmem>>, vector<64x8xf32>
    %cst_8 = arith.constant 0.000000e+00 : f32
    %16 = vector.broadcast %cst_8 : f32 to vector<64x36xf32>
    %17 = tpu.concatenate %15, %14, %16 in 1 : vector<64x8xf32>, vector<64x20xf32>, vector<64x36xf32> -> vector<64x64xf32>
    %18 = arith.truncf %17 : vector<64x64xf32> to vector<64x64xbf16>
    %c0_9 = arith.constant 0 : index
    %c0_10 = arith.constant 0 : index
    %19 = vector.load %arg2[%c0_9, %c0_10] : memref<64x1xf32, #tpu.memory_space<vmem>>, vector<64x1xf32>
    %c0_11 = arith.constant 0 : index
    %c0_12 = arith.constant 0 : index
    %20 = vector.load %arg0[%c0_11, %c0_12] : memref<16x16xf32, #tpu.memory_space<vmem>>, vector<16x16xf32>
    %21 = arith.truncf %20 : vector<16x16xf32> to vector<16x16xbf16>
    %c0_13 = arith.constant 0 : index
    %c0_14 = arith.constant 0 : index
    %22 = vector.load %arg8[%c0_13, %c0_14] : memref<16x32xbf16, #tpu.memory_space<vmem>>, vector<16x32xbf16>
    %cst_15 = arith.constant dense<0.000000e+00> : vector<16x32xf32>
    %23 = tpu.matmul %21, %22, %cst_15 {dimension_numbers = #tpu.dot_dimension_numbers<[1], [0], [0], [1], [0, 0, 1, 1], [], []>} : vector<16x16xbf16>, vector<16x32xbf16>, vector<16x32xf32> -> vector<16x32xf32>
    %c0_16 = arith.constant 0 : index
    %c0_17 = arith.constant 0 : index
    %24 = vector.load %arg9[%c0_16, %c0_17] : memref<1x32xf32, #tpu.memory_space<vmem>>, vector<1x32xf32>
    %25 = vector.broadcast %24 : vector<1x32xf32> to vector<16x32xf32>
    %26 = arith.addf %23, %25 : vector<16x32xf32>
    %c0_18 = arith.constant 0 : index
    %c0_19 = arith.constant 0 : index
    %27 = vector.load %arg29[%c0_18, %c0_19] : memref<16x32xf32, #tpu.memory_space<vmem>>, vector<16x32xf32>
    tpu.vector_store %arg29[%c0_18, %c0_19], %26 {strides = array<i32>} : memref<16x32xf32, #tpu.memory_space<vmem>>, vector<16x32xf32>,
    %c0_i32 = arith.constant 0 : i32
    %c64_i32 = arith.constant 64 : i32
    %28 = arith.addi %c0_i32, %c64_i32 : i32
    %c1_i32 = arith.constant 1 : i32
    scf.for %arg31 = %c0_i32 to %28 step %c1_i32  : i32 {
      %308 = arith.index_cast %arg31 : i32 to index
      %309 = memref.load %arg4[%308] : memref<64xi32, #tpu.memory_space<smem>>
      %310 = arith.index_cast %309 : i32 to index
      %c0_167 = arith.constant 0 : index
      %311 = vector.load %arg29[%310, %c0_167] : memref<16x32xf32, #tpu.memory_space<vmem>>, vector<1x32xf32>
      %312 = arith.index_cast %arg31 : i32 to index
      %c0_168 = arith.constant 0 : index
      %313 = vector.load %arg30[%312, %c0_168] : memref<64x32xf32, #tpu.memory_space<vmem>>, vector<1x32xf32>
      tpu.vector_store %arg30[%312, %c0_168], %311 {strides = array<i32>} : memref<64x32xf32, #tpu.memory_space<vmem>>, vector<1x32xf32>,
    }
    %c64_i32_20 = arith.constant 64 : i32
    %c0_21 = arith.constant 0 : index
    %c0_22 = arith.constant 0 : index
    %29 = vector.load %arg30[%c0_21, %c0_22] : memref<64x32xf32, #tpu.memory_space<vmem>>, vector<64x32xf32>
    %30 = arith.truncf %26 : vector<16x32xf32> to vector<16x32xbf16>
    %31 = tpu.concatenate %30, %30, %30, %30 in 0 : vector<16x32xbf16>, vector<16x32xbf16>, vector<16x32xbf16>, vector<16x32xbf16> -> vector<64x32xbf16>
    %32 = arith.truncf %29 : vector<64x32xf32> to vector<64x32xbf16>
    %33 = tpu.concatenate %31, %32, %18 in 1 : vector<64x32xbf16>, vector<64x32xbf16>, vector<64x64xbf16> -> vector<64x128xbf16>
    %c0_23 = arith.constant 0 : index
    %c0_24 = arith.constant 0 : index
    %c0_25 = arith.constant 0 : index
    %34 = vector.load %arg14[%c0_23, %c0_24, %c0_25] : memref<2x128x32xbf16, #tpu.memory_space<vmem>>, vector<1x128x32xbf16>
    %35 = vector.shape_cast %34 : vector<1x128x32xbf16> to vector<128x32xbf16>
    %cst_26 = arith.constant dense<0.000000e+00> : vector<64x32xf32>
    %36 = tpu.matmul %33, %35, %cst_26 {dimension_numbers = #tpu.dot_dimension_numbers<[1], [0], [0], [1], [0, 0, 1, 1], [], []>} : vector<64x128xbf16>, vector<128x32xbf16>, vector<64x32xf32> -> vector<64x32xf32>
    %c0_27 = arith.constant 0 : index
    %c0_28 = arith.constant 0 : index
    %c0_29 = arith.constant 0 : index
    %37 = vector.load %arg15[%c0_27, %c0_28, %c0_29] : memref<2x1x32xf32, #tpu.memory_space<vmem>>, vector<1x1x32xf32>
    %38 = vector.shape_cast %37 : vector<1x1x32xf32> to vector<1x32xf32>
    %39 = vector.broadcast %38 : vector<1x32xf32> to vector<64x32xf32>
    %40 = arith.addf %36, %39 : vector<64x32xf32>
    %c0_30 = arith.constant 0 : index
    %c0_31 = arith.constant 0 : index
    %c0_32 = arith.constant 0 : index
    %41 = vector.load %arg16[%c0_30, %c0_31, %c0_32] : memref<2x1x32xf32, #tpu.memory_space<vmem>>, vector<1x1x32xf32>
    %42 = vector.shape_cast %41 : vector<1x1x32xf32> to vector<1x32xf32>
    %c0_33 = arith.constant 0 : index
    %c0_34 = arith.constant 0 : index
    %c0_35 = arith.constant 0 : index
    %43 = vector.load %arg17[%c0_33, %c0_34, %c0_35] : memref<2x1x32xf32, #tpu.memory_space<vmem>>, vector<1x1x32xf32>
    %44 = vector.shape_cast %43 : vector<1x1x32xf32> to vector<1x32xf32>
    %cst_36 = arith.constant dense<0.000000e+00> : vector<64xf32>
    %45 = vector.multi_reduction <add>, %40, %cst_36 [1] : vector<64x32xf32> to vector<64xf32>
    %46 = vector.shape_cast %45 : vector<64xf32> to vector<64x1xf32>
    %cst_37 = arith.constant 3.200000e+01 : f32
    %47 = vector.broadcast %cst_37 : f32 to vector<64x1xf32>
    %48 = arith.divf %46, %47 : vector<64x1xf32>
    %49 = vector.broadcast %48 : vector<64x1xf32> to vector<64x32xf32>
    %50 = arith.subf %40, %49 : vector<64x32xf32>
    %51 = arith.mulf %50, %50 : vector<64x32xf32>
    %cst_38 = arith.constant dense<0.000000e+00> : vector<64xf32>
    %52 = vector.multi_reduction <add>, %51, %cst_38 [1] : vector<64x32xf32> to vector<64xf32>
    %53 = vector.shape_cast %52 : vector<64xf32> to vector<64x1xf32>
    %cst_39 = arith.constant 3.200000e+01 : f32
    %54 = vector.broadcast %cst_39 : f32 to vector<64x1xf32>
    %55 = arith.divf %53, %54 : vector<64x1xf32>
    %cst_40 = arith.constant 9.99999974E-6 : f32
    %56 = vector.broadcast %cst_40 : f32 to vector<64x1xf32>
    %57 = arith.addf %55, %56 : vector<64x1xf32>
    %58 = math.rsqrt %57 : vector<64x1xf32>
    %59 = vector.broadcast %58 : vector<64x1xf32> to vector<64x32xf32>
    %60 = arith.mulf %50, %59 : vector<64x32xf32>
    %61 = vector.broadcast %42 : vector<1x32xf32> to vector<64x32xf32>
    %62 = arith.mulf %60, %61 : vector<64x32xf32>
    %63 = vector.broadcast %44 : vector<1x32xf32> to vector<64x32xf32>
    %64 = arith.addf %62, %63 : vector<64x32xf32>
    %65 = arith.negf %64 : vector<64x32xf32>
    %66 = math.exp %65 : vector<64x32xf32>
    %cst_41 = arith.constant 1.000000e+00 : f32
    %67 = vector.broadcast %cst_41 : f32 to vector<64x32xf32>
    %68 = arith.addf %67, %66 : vector<64x32xf32>
    %69 = arith.divf %67, %68 : vector<64x32xf32>
    %70 = arith.mulf %64, %69 : vector<64x32xf32>
    %71 = arith.truncf %70 : vector<64x32xf32> to vector<64x32xbf16>
    %c0_42 = arith.constant 0 : index
    %c0_43 = arith.constant 0 : index
    %c0_44 = arith.constant 0 : index
    %72 = vector.load %arg18[%c0_42, %c0_43, %c0_44] : memref<2x32x32xbf16, #tpu.memory_space<vmem>>, vector<1x32x32xbf16>
    %73 = vector.shape_cast %72 : vector<1x32x32xbf16> to vector<32x32xbf16>
    %cst_45 = arith.constant dense<0.000000e+00> : vector<64x32xf32>
    %74 = tpu.matmul %71, %73, %cst_45 {dimension_numbers = #tpu.dot_dimension_numbers<[1], [0], [0], [1], [0, 0, 1, 1], [], []>} : vector<64x32xbf16>, vector<32x32xbf16>, vector<64x32xf32> -> vector<64x32xf32>
    %c0_46 = arith.constant 0 : index
    %c0_47 = arith.constant 0 : index
    %c0_48 = arith.constant 0 : index
    %75 = vector.load %arg19[%c0_46, %c0_47, %c0_48] : memref<2x1x32xf32, #tpu.memory_space<vmem>>, vector<1x1x32xf32>
    %76 = vector.shape_cast %75 : vector<1x1x32xf32> to vector<1x32xf32>
    %77 = vector.broadcast %76 : vector<1x32xf32> to vector<64x32xf32>
    %78 = arith.addf %74, %77 : vector<64x32xf32>
    %79 = arith.negf %78 : vector<64x32xf32>
    %80 = math.exp %79 : vector<64x32xf32>
    %cst_49 = arith.constant 1.000000e+00 : f32
    %81 = vector.broadcast %cst_49 : f32 to vector<64x32xf32>
    %82 = arith.addf %81, %80 : vector<64x32xf32>
    %83 = arith.divf %81, %82 : vector<64x32xf32>
    %84 = arith.mulf %78, %83 : vector<64x32xf32>
    %c0_50 = arith.constant 0 : index
    %c0_51 = arith.constant 0 : index
    %c0_52 = arith.constant 0 : index
    %85 = vector.load %arg20[%c0_50, %c0_51, %c0_52] : memref<2x1x32xf32, #tpu.memory_space<vmem>>, vector<1x1x32xf32>
    %86 = vector.shape_cast %85 : vector<1x1x32xf32> to vector<1x32xf32>
    %87 = vector.broadcast %86 : vector<1x32xf32> to vector<64x32xf32>
    %88 = arith.mulf %84, %87 : vector<64x32xf32>
    %cst_53 = arith.constant dense<0.000000e+00> : vector<64xf32>
    %89 = vector.multi_reduction <add>, %88, %cst_53 [1] : vector<64x32xf32> to vector<64xf32>
    %90 = vector.shape_cast %89 : vector<64xf32> to vector<64x1xf32>
    %c0_54 = arith.constant 0 : index
    %c0_55 = arith.constant 0 : index
    %c0_56 = arith.constant 0 : index
    %91 = vector.load %arg21[%c0_54, %c0_55, %c0_56] : memref<2x1x1xf32, #tpu.memory_space<vmem>>, vector<1x1x1xf32>
    %92 = vector.shape_cast %91 : vector<1x1x1xf32> to vector<1x1xf32>
    %93 = vector.broadcast %92 : vector<1x1xf32> to vector<64x1xf32>
    %94 = arith.addf %90, %93 : vector<64x1xf32>
    %95 = arith.negf %94 : vector<64x1xf32>
    %96 = math.exp %95 : vector<64x1xf32>
    %cst_57 = arith.constant 1.000000e+00 : f32
    %97 = vector.broadcast %cst_57 : f32 to vector<64x1xf32>
    %98 = arith.addf %97, %96 : vector<64x1xf32>
    %99 = arith.divf %97, %98 : vector<64x1xf32>
    %100 = vector.broadcast %99 : vector<64x1xf32> to vector<64x32xf32>
    %101 = arith.mulf %84, %100 : vector<64x32xf32>
    %102 = vector.broadcast %19 : vector<64x1xf32> to vector<64x32xf32>
    %103 = arith.mulf %101, %102 : vector<64x32xf32>
    %104 = vector.extract_strided_slice %103 {offsets = [0, 0], sizes = [16, 32], strides = [1, 1]} : vector<64x32xf32> to vector<16x32xf32>
    %105 = vector.extract_strided_slice %103 {offsets = [16, 0], sizes = [16, 32], strides = [1, 1]} : vector<64x32xf32> to vector<16x32xf32>
    %106 = arith.addf %104, %105 : vector<16x32xf32>
    %107 = vector.extract_strided_slice %103 {offsets = [32, 0], sizes = [16, 32], strides = [1, 1]} : vector<64x32xf32> to vector<16x32xf32>
    %108 = arith.addf %106, %107 : vector<16x32xf32>
    %109 = vector.extract_strided_slice %103 {offsets = [48, 0], sizes = [16, 32], strides = [1, 1]} : vector<64x32xf32> to vector<16x32xf32>
    %110 = arith.addf %108, %109 : vector<16x32xf32>
    %111 = arith.truncf %110 : vector<16x32xf32> to vector<16x32xbf16>
    %112 = tpu.concatenate %30, %111 in 1 : vector<16x32xbf16>, vector<16x32xbf16> -> vector<16x64xbf16>
    %c0_58 = arith.constant 0 : index
    %c0_59 = arith.constant 0 : index
    %c0_60 = arith.constant 0 : index
    %113 = vector.load %arg22[%c0_58, %c0_59, %c0_60] : memref<2x64x32xbf16, #tpu.memory_space<vmem>>, vector<1x64x32xbf16>
    %114 = vector.shape_cast %113 : vector<1x64x32xbf16> to vector<64x32xbf16>
    %cst_61 = arith.constant dense<0.000000e+00> : vector<16x32xf32>
    %115 = tpu.matmul %112, %114, %cst_61 {dimension_numbers = #tpu.dot_dimension_numbers<[1], [0], [0], [1], [0, 0, 1, 1], [], []>} : vector<16x64xbf16>, vector<64x32xbf16>, vector<16x32xf32> -> vector<16x32xf32>
    %c0_62 = arith.constant 0 : index
    %c0_63 = arith.constant 0 : index
    %c0_64 = arith.constant 0 : index
    %116 = vector.load %arg23[%c0_62, %c0_63, %c0_64] : memref<2x1x32xf32, #tpu.memory_space<vmem>>, vector<1x1x32xf32>
    %117 = vector.shape_cast %116 : vector<1x1x32xf32> to vector<1x32xf32>
    %118 = vector.broadcast %117 : vector<1x32xf32> to vector<16x32xf32>
    %119 = arith.addf %115, %118 : vector<16x32xf32>
    %c0_65 = arith.constant 0 : index
    %c0_66 = arith.constant 0 : index
    %c0_67 = arith.constant 0 : index
    %120 = vector.load %arg24[%c0_65, %c0_66, %c0_67] : memref<2x1x32xf32, #tpu.memory_space<vmem>>, vector<1x1x32xf32>
    %121 = vector.shape_cast %120 : vector<1x1x32xf32> to vector<1x32xf32>
    %c0_68 = arith.constant 0 : index
    %c0_69 = arith.constant 0 : index
    %c0_70 = arith.constant 0 : index
    %122 = vector.load %arg25[%c0_68, %c0_69, %c0_70] : memref<2x1x32xf32, #tpu.memory_space<vmem>>, vector<1x1x32xf32>
    %123 = vector.shape_cast %122 : vector<1x1x32xf32> to vector<1x32xf32>
    %cst_71 = arith.constant dense<0.000000e+00> : vector<16xf32>
    %124 = vector.multi_reduction <add>, %119, %cst_71 [1] : vector<16x32xf32> to vector<16xf32>
    %125 = vector.shape_cast %124 : vector<16xf32> to vector<16x1xf32>
    %cst_72 = arith.constant 3.200000e+01 : f32
    %126 = vector.broadcast %cst_72 : f32 to vector<16x1xf32>
    %127 = arith.divf %125, %126 : vector<16x1xf32>
    %128 = vector.broadcast %127 : vector<16x1xf32> to vector<16x32xf32>
    %129 = arith.subf %119, %128 : vector<16x32xf32>
    %130 = arith.mulf %129, %129 : vector<16x32xf32>
    %cst_73 = arith.constant dense<0.000000e+00> : vector<16xf32>
    %131 = vector.multi_reduction <add>, %130, %cst_73 [1] : vector<16x32xf32> to vector<16xf32>
    %132 = vector.shape_cast %131 : vector<16xf32> to vector<16x1xf32>
    %cst_74 = arith.constant 3.200000e+01 : f32
    %133 = vector.broadcast %cst_74 : f32 to vector<16x1xf32>
    %134 = arith.divf %132, %133 : vector<16x1xf32>
    %cst_75 = arith.constant 9.99999974E-6 : f32
    %135 = vector.broadcast %cst_75 : f32 to vector<16x1xf32>
    %136 = arith.addf %134, %135 : vector<16x1xf32>
    %137 = math.rsqrt %136 : vector<16x1xf32>
    %138 = vector.broadcast %137 : vector<16x1xf32> to vector<16x32xf32>
    %139 = arith.mulf %129, %138 : vector<16x32xf32>
    %140 = vector.broadcast %121 : vector<1x32xf32> to vector<16x32xf32>
    %141 = arith.mulf %139, %140 : vector<16x32xf32>
    %142 = vector.broadcast %123 : vector<1x32xf32> to vector<16x32xf32>
    %143 = arith.addf %141, %142 : vector<16x32xf32>
    %144 = arith.negf %143 : vector<16x32xf32>
    %145 = math.exp %144 : vector<16x32xf32>
    %cst_76 = arith.constant 1.000000e+00 : f32
    %146 = vector.broadcast %cst_76 : f32 to vector<16x32xf32>
    %147 = arith.addf %146, %145 : vector<16x32xf32>
    %148 = arith.divf %146, %147 : vector<16x32xf32>
    %149 = arith.mulf %143, %148 : vector<16x32xf32>
    %150 = arith.truncf %149 : vector<16x32xf32> to vector<16x32xbf16>
    %c0_77 = arith.constant 0 : index
    %c0_78 = arith.constant 0 : index
    %c0_79 = arith.constant 0 : index
    %151 = vector.load %arg26[%c0_77, %c0_78, %c0_79] : memref<2x32x32xbf16, #tpu.memory_space<vmem>>, vector<1x32x32xbf16>
    %152 = vector.shape_cast %151 : vector<1x32x32xbf16> to vector<32x32xbf16>
    %cst_80 = arith.constant dense<0.000000e+00> : vector<16x32xf32>
    %153 = tpu.matmul %150, %152, %cst_80 {dimension_numbers = #tpu.dot_dimension_numbers<[1], [0], [0], [1], [0, 0, 1, 1], [], []>} : vector<16x32xbf16>, vector<32x32xbf16>, vector<16x32xf32> -> vector<16x32xf32>
    %c0_81 = arith.constant 0 : index
    %c0_82 = arith.constant 0 : index
    %c0_83 = arith.constant 0 : index
    %154 = vector.load %arg27[%c0_81, %c0_82, %c0_83] : memref<2x1x32xf32, #tpu.memory_space<vmem>>, vector<1x1x32xf32>
    %155 = vector.shape_cast %154 : vector<1x1x32xf32> to vector<1x32xf32>
    %156 = vector.broadcast %155 : vector<1x32xf32> to vector<16x32xf32>
    %157 = arith.addf %153, %156 : vector<16x32xf32>
    %158 = arith.addf %26, %157 : vector<16x32xf32>
    %c0_84 = arith.constant 0 : index
    %c0_85 = arith.constant 0 : index
    %159 = vector.load %arg29[%c0_84, %c0_85] : memref<16x32xf32, #tpu.memory_space<vmem>>, vector<16x32xf32>
    tpu.vector_store %arg29[%c0_84, %c0_85], %158 {strides = array<i32>} : memref<16x32xf32, #tpu.memory_space<vmem>>, vector<16x32xf32>,
    %c0_i32_86 = arith.constant 0 : i32
    %c64_i32_87 = arith.constant 64 : i32
    %160 = arith.addi %c0_i32_86, %c64_i32_87 : i32
    %c1_i32_88 = arith.constant 1 : i32
    scf.for %arg31 = %c0_i32_86 to %160 step %c1_i32_88  : i32 {
      %308 = arith.index_cast %arg31 : i32 to index
      %309 = memref.load %arg4[%308] : memref<64xi32, #tpu.memory_space<smem>>
      %310 = arith.index_cast %309 : i32 to index
      %c0_167 = arith.constant 0 : index
      %311 = vector.load %arg29[%310, %c0_167] : memref<16x32xf32, #tpu.memory_space<vmem>>, vector<1x32xf32>
      %312 = arith.index_cast %arg31 : i32 to index
      %c0_168 = arith.constant 0 : index
      %313 = vector.load %arg30[%312, %c0_168] : memref<64x32xf32, #tpu.memory_space<vmem>>, vector<1x32xf32>
      tpu.vector_store %arg30[%312, %c0_168], %311 {strides = array<i32>} : memref<64x32xf32, #tpu.memory_space<vmem>>, vector<1x32xf32>,
    }
    %c64_i32_89 = arith.constant 64 : i32
    %c0_90 = arith.constant 0 : index
    %c0_91 = arith.constant 0 : index
    %161 = vector.load %arg30[%c0_90, %c0_91] : memref<64x32xf32, #tpu.memory_space<vmem>>, vector<64x32xf32>
    %162 = arith.truncf %158 : vector<16x32xf32> to vector<16x32xbf16>
    %163 = tpu.concatenate %162, %162, %162, %162 in 0 : vector<16x32xbf16>, vector<16x32xbf16>, vector<16x32xbf16>, vector<16x32xbf16> -> vector<64x32xbf16>
    %164 = arith.truncf %161 : vector<64x32xf32> to vector<64x32xbf16>
    %165 = tpu.concatenate %163, %164, %18 in 1 : vector<64x32xbf16>, vector<64x32xbf16>, vector<64x64xbf16> -> vector<64x128xbf16>
    %c1 = arith.constant 1 : index
    %c0_92 = arith.constant 0 : index
    %c0_93 = arith.constant 0 : index
    %166 = vector.load %arg14[%c1, %c0_92, %c0_93] : memref<2x128x32xbf16, #tpu.memory_space<vmem>>, vector<1x128x32xbf16>
    %167 = vector.shape_cast %166 : vector<1x128x32xbf16> to vector<128x32xbf16>
    %cst_94 = arith.constant dense<0.000000e+00> : vector<64x32xf32>
    %168 = tpu.matmul %165, %167, %cst_94 {dimension_numbers = #tpu.dot_dimension_numbers<[1], [0], [0], [1], [0, 0, 1, 1], [], []>} : vector<64x128xbf16>, vector<128x32xbf16>, vector<64x32xf32> -> vector<64x32xf32>
    %c1_95 = arith.constant 1 : index
    %c0_96 = arith.constant 0 : index
    %c0_97 = arith.constant 0 : index
    %169 = vector.load %arg15[%c1_95, %c0_96, %c0_97] : memref<2x1x32xf32, #tpu.memory_space<vmem>>, vector<1x1x32xf32>
    %170 = vector.shape_cast %169 : vector<1x1x32xf32> to vector<1x32xf32>
    %171 = vector.broadcast %170 : vector<1x32xf32> to vector<64x32xf32>
    %172 = arith.addf %168, %171 : vector<64x32xf32>
    %c1_98 = arith.constant 1 : index
    %c0_99 = arith.constant 0 : index
    %c0_100 = arith.constant 0 : index
    %173 = vector.load %arg16[%c1_98, %c0_99, %c0_100] : memref<2x1x32xf32, #tpu.memory_space<vmem>>, vector<1x1x32xf32>
    %174 = vector.shape_cast %173 : vector<1x1x32xf32> to vector<1x32xf32>
    %c1_101 = arith.constant 1 : index
    %c0_102 = arith.constant 0 : index
    %c0_103 = arith.constant 0 : index
    %175 = vector.load %arg17[%c1_101, %c0_102, %c0_103] : memref<2x1x32xf32, #tpu.memory_space<vmem>>, vector<1x1x32xf32>
    %176 = vector.shape_cast %175 : vector<1x1x32xf32> to vector<1x32xf32>
    %cst_104 = arith.constant dense<0.000000e+00> : vector<64xf32>
    %177 = vector.multi_reduction <add>, %172, %cst_104 [1] : vector<64x32xf32> to vector<64xf32>
    %178 = vector.shape_cast %177 : vector<64xf32> to vector<64x1xf32>
    %cst_105 = arith.constant 3.200000e+01 : f32
    %179 = vector.broadcast %cst_105 : f32 to vector<64x1xf32>
    %180 = arith.divf %178, %179 : vector<64x1xf32>
    %181 = vector.broadcast %180 : vector<64x1xf32> to vector<64x32xf32>
    %182 = arith.subf %172, %181 : vector<64x32xf32>
    %183 = arith.mulf %182, %182 : vector<64x32xf32>
    %cst_106 = arith.constant dense<0.000000e+00> : vector<64xf32>
    %184 = vector.multi_reduction <add>, %183, %cst_106 [1] : vector<64x32xf32> to vector<64xf32>
    %185 = vector.shape_cast %184 : vector<64xf32> to vector<64x1xf32>
    %cst_107 = arith.constant 3.200000e+01 : f32
    %186 = vector.broadcast %cst_107 : f32 to vector<64x1xf32>
    %187 = arith.divf %185, %186 : vector<64x1xf32>
    %cst_108 = arith.constant 9.99999974E-6 : f32
    %188 = vector.broadcast %cst_108 : f32 to vector<64x1xf32>
    %189 = arith.addf %187, %188 : vector<64x1xf32>
    %190 = math.rsqrt %189 : vector<64x1xf32>
    %191 = vector.broadcast %190 : vector<64x1xf32> to vector<64x32xf32>
    %192 = arith.mulf %182, %191 : vector<64x32xf32>
    %193 = vector.broadcast %174 : vector<1x32xf32> to vector<64x32xf32>
    %194 = arith.mulf %192, %193 : vector<64x32xf32>
    %195 = vector.broadcast %176 : vector<1x32xf32> to vector<64x32xf32>
    %196 = arith.addf %194, %195 : vector<64x32xf32>
    %197 = arith.negf %196 : vector<64x32xf32>
    %198 = math.exp %197 : vector<64x32xf32>
    %cst_109 = arith.constant 1.000000e+00 : f32
    %199 = vector.broadcast %cst_109 : f32 to vector<64x32xf32>
    %200 = arith.addf %199, %198 : vector<64x32xf32>
    %201 = arith.divf %199, %200 : vector<64x32xf32>
    %202 = arith.mulf %196, %201 : vector<64x32xf32>
    %203 = arith.truncf %202 : vector<64x32xf32> to vector<64x32xbf16>
    %c1_110 = arith.constant 1 : index
    %c0_111 = arith.constant 0 : index
    %c0_112 = arith.constant 0 : index
    %204 = vector.load %arg18[%c1_110, %c0_111, %c0_112] : memref<2x32x32xbf16, #tpu.memory_space<vmem>>, vector<1x32x32xbf16>
    %205 = vector.shape_cast %204 : vector<1x32x32xbf16> to vector<32x32xbf16>
    %cst_113 = arith.constant dense<0.000000e+00> : vector<64x32xf32>
    %206 = tpu.matmul %203, %205, %cst_113 {dimension_numbers = #tpu.dot_dimension_numbers<[1], [0], [0], [1], [0, 0, 1, 1], [], []>} : vector<64x32xbf16>, vector<32x32xbf16>, vector<64x32xf32> -> vector<64x32xf32>
    %c1_114 = arith.constant 1 : index
    %c0_115 = arith.constant 0 : index
    %c0_116 = arith.constant 0 : index
    %207 = vector.load %arg19[%c1_114, %c0_115, %c0_116] : memref<2x1x32xf32, #tpu.memory_space<vmem>>, vector<1x1x32xf32>
    %208 = vector.shape_cast %207 : vector<1x1x32xf32> to vector<1x32xf32>
    %209 = vector.broadcast %208 : vector<1x32xf32> to vector<64x32xf32>
    %210 = arith.addf %206, %209 : vector<64x32xf32>
    %211 = arith.negf %210 : vector<64x32xf32>
    %212 = math.exp %211 : vector<64x32xf32>
    %cst_117 = arith.constant 1.000000e+00 : f32
    %213 = vector.broadcast %cst_117 : f32 to vector<64x32xf32>
    %214 = arith.addf %213, %212 : vector<64x32xf32>
    %215 = arith.divf %213, %214 : vector<64x32xf32>
    %216 = arith.mulf %210, %215 : vector<64x32xf32>
    %c1_118 = arith.constant 1 : index
    %c0_119 = arith.constant 0 : index
    %c0_120 = arith.constant 0 : index
    %217 = vector.load %arg20[%c1_118, %c0_119, %c0_120] : memref<2x1x32xf32, #tpu.memory_space<vmem>>, vector<1x1x32xf32>
    %218 = vector.shape_cast %217 : vector<1x1x32xf32> to vector<1x32xf32>
    %219 = vector.broadcast %218 : vector<1x32xf32> to vector<64x32xf32>
    %220 = arith.mulf %216, %219 : vector<64x32xf32>
    %cst_121 = arith.constant dense<0.000000e+00> : vector<64xf32>
    %221 = vector.multi_reduction <add>, %220, %cst_121 [1] : vector<64x32xf32> to vector<64xf32>
    %222 = vector.shape_cast %221 : vector<64xf32> to vector<64x1xf32>
    %c1_122 = arith.constant 1 : index
    %c0_123 = arith.constant 0 : index
    %c0_124 = arith.constant 0 : index
    %223 = vector.load %arg21[%c1_122, %c0_123, %c0_124] : memref<2x1x1xf32, #tpu.memory_space<vmem>>, vector<1x1x1xf32>
    %224 = vector.shape_cast %223 : vector<1x1x1xf32> to vector<1x1xf32>
    %225 = vector.broadcast %224 : vector<1x1xf32> to vector<64x1xf32>
    %226 = arith.addf %222, %225 : vector<64x1xf32>
    %227 = arith.negf %226 : vector<64x1xf32>
    %228 = math.exp %227 : vector<64x1xf32>
    %cst_125 = arith.constant 1.000000e+00 : f32
    %229 = vector.broadcast %cst_125 : f32 to vector<64x1xf32>
    %230 = arith.addf %229, %228 : vector<64x1xf32>
    %231 = arith.divf %229, %230 : vector<64x1xf32>
    %232 = vector.broadcast %231 : vector<64x1xf32> to vector<64x32xf32>
    %233 = arith.mulf %216, %232 : vector<64x32xf32>
    %234 = vector.broadcast %19 : vector<64x1xf32> to vector<64x32xf32>
    %235 = arith.mulf %233, %234 : vector<64x32xf32>
    %236 = vector.extract_strided_slice %235 {offsets = [0, 0], sizes = [16, 32], strides = [1, 1]} : vector<64x32xf32> to vector<16x32xf32>
    %237 = vector.extract_strided_slice %235 {offsets = [16, 0], sizes = [16, 32], strides = [1, 1]} : vector<64x32xf32> to vector<16x32xf32>
    %238 = arith.addf %236, %237 : vector<16x32xf32>
    %239 = vector.extract_strided_slice %235 {offsets = [32, 0], sizes = [16, 32], strides = [1, 1]} : vector<64x32xf32> to vector<16x32xf32>
    %240 = arith.addf %238, %239 : vector<16x32xf32>
    %241 = vector.extract_strided_slice %235 {offsets = [48, 0], sizes = [16, 32], strides = [1, 1]} : vector<64x32xf32> to vector<16x32xf32>
    %242 = arith.addf %240, %241 : vector<16x32xf32>
    %243 = arith.truncf %242 : vector<16x32xf32> to vector<16x32xbf16>
    %244 = tpu.concatenate %162, %243 in 1 : vector<16x32xbf16>, vector<16x32xbf16> -> vector<16x64xbf16>
    %c1_126 = arith.constant 1 : index
    %c0_127 = arith.constant 0 : index
    %c0_128 = arith.constant 0 : index
    %245 = vector.load %arg22[%c1_126, %c0_127, %c0_128] : memref<2x64x32xbf16, #tpu.memory_space<vmem>>, vector<1x64x32xbf16>
    %246 = vector.shape_cast %245 : vector<1x64x32xbf16> to vector<64x32xbf16>
    %cst_129 = arith.constant dense<0.000000e+00> : vector<16x32xf32>
    %247 = tpu.matmul %244, %246, %cst_129 {dimension_numbers = #tpu.dot_dimension_numbers<[1], [0], [0], [1], [0, 0, 1, 1], [], []>} : vector<16x64xbf16>, vector<64x32xbf16>, vector<16x32xf32> -> vector<16x32xf32>
    %c1_130 = arith.constant 1 : index
    %c0_131 = arith.constant 0 : index
    %c0_132 = arith.constant 0 : index
    %248 = vector.load %arg23[%c1_130, %c0_131, %c0_132] : memref<2x1x32xf32, #tpu.memory_space<vmem>>, vector<1x1x32xf32>
    %249 = vector.shape_cast %248 : vector<1x1x32xf32> to vector<1x32xf32>
    %250 = vector.broadcast %249 : vector<1x32xf32> to vector<16x32xf32>
    %251 = arith.addf %247, %250 : vector<16x32xf32>
    %c1_133 = arith.constant 1 : index
    %c0_134 = arith.constant 0 : index
    %c0_135 = arith.constant 0 : index
    %252 = vector.load %arg24[%c1_133, %c0_134, %c0_135] : memref<2x1x32xf32, #tpu.memory_space<vmem>>, vector<1x1x32xf32>
    %253 = vector.shape_cast %252 : vector<1x1x32xf32> to vector<1x32xf32>
    %c1_136 = arith.constant 1 : index
    %c0_137 = arith.constant 0 : index
    %c0_138 = arith.constant 0 : index
    %254 = vector.load %arg25[%c1_136, %c0_137, %c0_138] : memref<2x1x32xf32, #tpu.memory_space<vmem>>, vector<1x1x32xf32>
    %255 = vector.shape_cast %254 : vector<1x1x32xf32> to vector<1x32xf32>
    %cst_139 = arith.constant dense<0.000000e+00> : vector<16xf32>
    %256 = vector.multi_reduction <add>, %251, %cst_139 [1] : vector<16x32xf32> to vector<16xf32>
    %257 = vector.shape_cast %256 : vector<16xf32> to vector<16x1xf32>
    %cst_140 = arith.constant 3.200000e+01 : f32
    %258 = vector.broadcast %cst_140 : f32 to vector<16x1xf32>
    %259 = arith.divf %257, %258 : vector<16x1xf32>
    %260 = vector.broadcast %259 : vector<16x1xf32> to vector<16x32xf32>
    %261 = arith.subf %251, %260 : vector<16x32xf32>
    %262 = arith.mulf %261, %261 : vector<16x32xf32>
    %cst_141 = arith.constant dense<0.000000e+00> : vector<16xf32>
    %263 = vector.multi_reduction <add>, %262, %cst_141 [1] : vector<16x32xf32> to vector<16xf32>
    %264 = vector.shape_cast %263 : vector<16xf32> to vector<16x1xf32>
    %cst_142 = arith.constant 3.200000e+01 : f32
    %265 = vector.broadcast %cst_142 : f32 to vector<16x1xf32>
    %266 = arith.divf %264, %265 : vector<16x1xf32>
    %cst_143 = arith.constant 9.99999974E-6 : f32
    %267 = vector.broadcast %cst_143 : f32 to vector<16x1xf32>
    %268 = arith.addf %266, %267 : vector<16x1xf32>
    %269 = math.rsqrt %268 : vector<16x1xf32>
    %270 = vector.broadcast %269 : vector<16x1xf32> to vector<16x32xf32>
    %271 = arith.mulf %261, %270 : vector<16x32xf32>
    %272 = vector.broadcast %253 : vector<1x32xf32> to vector<16x32xf32>
    %273 = arith.mulf %271, %272 : vector<16x32xf32>
    %274 = vector.broadcast %255 : vector<1x32xf32> to vector<16x32xf32>
    %275 = arith.addf %273, %274 : vector<16x32xf32>
    %276 = arith.negf %275 : vector<16x32xf32>
    %277 = math.exp %276 : vector<16x32xf32>
    %cst_144 = arith.constant 1.000000e+00 : f32
    %278 = vector.broadcast %cst_144 : f32 to vector<16x32xf32>
    %279 = arith.addf %278, %277 : vector<16x32xf32>
    %280 = arith.divf %278, %279 : vector<16x32xf32>
    %281 = arith.mulf %275, %280 : vector<16x32xf32>
    %282 = arith.truncf %281 : vector<16x32xf32> to vector<16x32xbf16>
    %c1_145 = arith.constant 1 : index
    %c0_146 = arith.constant 0 : index
    %c0_147 = arith.constant 0 : index
    %283 = vector.load %arg26[%c1_145, %c0_146, %c0_147] : memref<2x32x32xbf16, #tpu.memory_space<vmem>>, vector<1x32x32xbf16>
    %284 = vector.shape_cast %283 : vector<1x32x32xbf16> to vector<32x32xbf16>
    %cst_148 = arith.constant dense<0.000000e+00> : vector<16x32xf32>
    %285 = tpu.matmul %282, %284, %cst_148 {dimension_numbers = #tpu.dot_dimension_numbers<[1], [0], [0], [1], [0, 0, 1, 1], [], []>} : vector<16x32xbf16>, vector<32x32xbf16>, vector<16x32xf32> -> vector<16x32xf32>
    %c1_149 = arith.constant 1 : index
    %c0_150 = arith.constant 0 : index
    %c0_151 = arith.constant 0 : index
    %286 = vector.load %arg27[%c1_149, %c0_150, %c0_151] : memref<2x1x32xf32, #tpu.memory_space<vmem>>, vector<1x1x32xf32>
    %287 = vector.shape_cast %286 : vector<1x1x32xf32> to vector<1x32xf32>
    %288 = vector.broadcast %287 : vector<1x32xf32> to vector<16x32xf32>
    %289 = arith.addf %285, %288 : vector<16x32xf32>
    %290 = arith.addf %158, %289 : vector<16x32xf32>
    %291 = arith.truncf %290 : vector<16x32xf32> to vector<16x32xbf16>
    %c0_152 = arith.constant 0 : index
    %c0_153 = arith.constant 0 : index
    %292 = vector.load %arg10[%c0_152, %c0_153] : memref<32x16xbf16, #tpu.memory_space<vmem>>, vector<32x16xbf16>
    %cst_154 = arith.constant dense<0.000000e+00> : vector<16x16xf32>
    %293 = tpu.matmul %291, %292, %cst_154 {dimension_numbers = #tpu.dot_dimension_numbers<[1], [0], [0], [1], [0, 0, 1, 1], [], []>} : vector<16x32xbf16>, vector<32x16xbf16>, vector<16x16xf32> -> vector<16x16xf32>
    %c0_155 = arith.constant 0 : index
    %c0_156 = arith.constant 0 : index
    %294 = vector.load %arg11[%c0_155, %c0_156] : memref<1x16xf32, #tpu.memory_space<vmem>>, vector<1x16xf32>
    %295 = vector.broadcast %294 : vector<1x16xf32> to vector<16x16xf32>
    %296 = arith.addf %293, %295 : vector<16x16xf32>
    %c0_157 = arith.constant 0 : index
    %c0_158 = arith.constant 0 : index
    %297 = vector.load %arg5[%c0_157, %c0_158] : memref<2x16xf32, #tpu.memory_space<vmem>>, vector<2x16xf32>
    %cst_159 = arith.constant dense<0.000000e+00> : vector<2x16xf32>
    %298 = tpu.matmul %297, %296, %cst_159 {dimension_numbers = #tpu.dot_dimension_numbers<[1], [0], [0], [1], [0, 0, 1, 1], [], []>} : vector<2x16xf32>, vector<16x16xf32>, vector<2x16xf32> -> vector<2x16xf32>
    %c0_160 = arith.constant 0 : index
    %c0_161 = arith.constant 0 : index
    %299 = vector.load %arg12[%c0_160, %c0_161] : memref<1x16xf32, #tpu.memory_space<vmem>>, vector<1x16xf32>
    %300 = vector.broadcast %299 : vector<1x16xf32> to vector<2x16xf32>
    %301 = arith.mulf %298, %300 : vector<2x16xf32>
    %cst_162 = arith.constant dense<0.000000e+00> : vector<2xf32>
    %302 = vector.multi_reduction <add>, %301, %cst_162 [1] : vector<2x16xf32> to vector<2xf32>
    %303 = vector.shape_cast %302 : vector<2xf32> to vector<2x1xf32>
    %c0_163 = arith.constant 0 : index
    %c0_164 = arith.constant 0 : index
    %304 = vector.load %arg13[%c0_163, %c0_164] : memref<1x1xf32, #tpu.memory_space<vmem>>, vector<1x1xf32>
    %305 = vector.broadcast %304 : vector<1x1xf32> to vector<2x1xf32>
    %306 = arith.addf %303, %305 : vector<2x1xf32>
    %c0_165 = arith.constant 0 : index
    %c0_166 = arith.constant 0 : index
    %307 = vector.load %arg28[%c0_165, %c0_166] : memref<2x1xf32, #tpu.memory_space<vmem>>, vector<2x1xf32>
    tpu.vector_store %arg28[%c0_165, %c0_166], %306 {strides = array<i32>} : memref<2x1xf32, #tpu.memory_space<vmem>>, vector<2x1xf32>,
    return
  }
}

</mosaic_0001>

<llo_original>
// kernel: classifier_forward.1
$region0: #{classifier_forward.1}
  #allocation0 [shape = 'u32[]', space=smem, size = 0x4, offset = 0x4, fixed_abs, tag = 'smem constant byte address 0x4 - core index']
  #allocation1 [shape = 'u32[144,128]{1,0:T(1,128)}', space=vmem, size = 0x12000, scoped, tag = 'internal scratch']
  #allocation2 [shape = 'f32[16,32]{1,0:T(8,128)}', space=vmem, size = 0x2000, scoped, tag = 'scratch operand']
  #allocation3 [shape = 'f32[64,32]{1,0:T(8,128)}', space=vmem, size = 0x8000, scoped, tag = 'scratch operand']
  #allocation4 [shape = 'f32[1,1]{1,0:T(1,128)S(1)}', space=vmem, size = 0x200, scoped, tag = 'scoped memory for classifier_forward.1']
  %s0 = inlined_call_operand.vmem [shape: f32[16,16], index: 0, kind: input, shape index: {}]
  %s1 = inlined_call_operand.vmem [shape: f32[64,1], index: 1, kind: input, shape index: {}]
  %s2 = inlined_call_operand.vmem [shape: f32[64,1], index: 2, kind: input, shape index: {}]
  %s3 = inlined_call_operand.vmem [shape: f32[64,8], index: 3, kind: input, shape index: {}]
  %s4 = inlined_call_operand.vmem [shape: s32[64], index: 4, kind: input, shape index: {}]
  %s5 = inlined_call_operand.vmem [shape: f32[2,16], index: 5, kind: input, shape index: {}]
  %s6 = inlined_call_operand.vmem [shape: f32[1,20], index: 6, kind: input, shape index: {}]
  %s7 = inlined_call_operand.vmem [shape: f32[1,20], index: 7, kind: input, shape index: {}]
  %s8 = inlined_call_operand.vmem [shape: bf16[16,32], index: 8, kind: input, shape index: {}]
  %s9 = inlined_call_operand.vmem [shape: f32[1,32], index: 9, kind: input, shape index: {}]
  %s10 = inlined_call_operand.vmem [shape: bf16[32,16], index: 10, kind: input, shape index: {}]
  %s11 = inlined_call_operand.vmem [shape: f32[1,16], index: 11, kind: input, shape index: {}]
  %s12 = inlined_call_operand.vmem [shape: f32[1,16], index: 12, kind: input, shape index: {}]
  %s13 = inlined_call_operand.<no memory space> [shape: f32[1,1], index: 13, kind: input, shape index: {}]
  %s14 = inlined_call_operand.vmem [shape: bf16[2,128,32], index: 14, kind: input, shape index: {}]
  %s15 = inlined_call_operand.vmem [shape: f32[2,1,32], index: 15, kind: input, shape index: {}]
  %s16 = inlined_call_operand.vmem [shape: f32[2,1,32], index: 16, kind: input, shape index: {}]
  %s17 = inlined_call_operand.vmem [shape: f32[2,1,32], index: 17, kind: input, shape index: {}]
  %s18 = inlined_call_operand.vmem [shape: bf16[2,32,32], index: 18, kind: input, shape index: {}]
  %s19 = inlined_call_operand.vmem [shape: f32[2,1,32], index: 19, kind: input, shape index: {}]
  %s20 = inlined_call_operand.vmem [shape: f32[2,1,32], index: 20, kind: input, shape index: {}]
  %s21 = inlined_call_operand.vmem [shape: f32[2,1,1], index: 21, kind: input, shape index: {}]
  %s22 = inlined_call_operand.vmem [shape: bf16[2,64,32], index: 22, kind: input, shape index: {}]
  %s23 = inlined_call_operand.vmem [shape: f32[2,1,32], index: 23, kind: input, shape index: {}]
  %s24 = inlined_call_operand.vmem [shape: f32[2,1,32], index: 24, kind: input, shape index: {}]
  %s25 = inlined_call_operand.vmem [shape: f32[2,1,32], index: 25, kind: input, shape index: {}]
  %s26 = inlined_call_operand.vmem [shape: bf16[2,32,32], index: 26, kind: input, shape index: {}]
  %s27 = inlined_call_operand.vmem [shape: f32[2,1,32], index: 27, kind: input, shape index: {}]
  %s28 = inlined_call_operand.vmem [shape: f32[2,1], index: 28, kind: output, shape index: {}]
  %s29 = sld [smem:[#allocation0]]
  $region140: #{classifier_forward.1} parent=0
    _
  %s31 = ssub.s32 1, %s29
  %s32 = scalar_select 0, %s31, %s29
  %v33 = vstv %s13
  %34 = vst [vmem:[#allocation4] sm:$0x1] %v33
  $region1: #{classifier_forward.1} parent=0
    #allocation5 [shape = 'u8[512]{0}', space=smem, size = 0x200, scoped, tag = 'input window, operand 4, single buffered']
    #allocation6 [shape = 's32[1]{0}', space=sflag, size = 0x4, scoped, tag = 'scoped memory for classifier_forward.1']
    %35 = vsyncpa [#allocation6], 0
    // Predicated region
    $region2: #{classifier_forward.1} parent=1 // pred_check
      _
    $region3: #{classifier_forward.1} parent=1 // pred_check_branch
      %37 = sbr.rel (0) target = $region5
    $region4: #{classifier_forward.1} parent=1 // pred_region
      _
    $region5: #{classifier_forward.1} parent=1 // pred_fallthru
      _
    // Predicated region
    $region6: #{classifier_forward.1} parent=1 // pred_check
      _
    $region7: #{classifier_forward.1} parent=1 // pred_check_branch
      %39 = sbr.rel (0) target = $region9
    $region8: #{classifier_forward.1} parent=1 // pred_region
      _
    $region9: #{classifier_forward.1} parent=1 // pred_fallthru
      _
    // Predicated region
    $region10: #{classifier_forward.1} parent=1 // pred_check
      _
    $region11: #{classifier_forward.1} parent=1 // pred_check_branch
      %41 = sbr.rel (0) target = $region13
    $region12: #{classifier_forward.1} parent=1 // pred_region
      _
    $region13: #{classifier_forward.1} parent=1 // pred_fallthru
      _
    // Predicated region
    $region14: #{classifier_forward.1} parent=1 // pred_check
      _
    $region15: #{classifier_forward.1} parent=1 // pred_check_branch
      %43 = sbr.rel (0) target = $region17
    $region16: #{classifier_forward.1} parent=1 // pred_region
      _
    $region17: #{classifier_forward.1} parent=1 // pred_fallthru
      _
    // Predicated region
    $region18: #{classifier_forward.1} parent=1 // pred_check
      _
    $region19: #{classifier_forward.1} parent=1 // pred_check_branch
      %45 = sbr.rel (0) target = $region21
    $region20: #{classifier_forward.1} parent=1 // pred_region
      %s47 = ssub.s32 16, 16
      %48 = vsyncadd [#allocation6], %s47
      %s50 = sshll.u32 %s4, 4
      %s51 = int_to_ptr.vmem [resolvable:$true] %s50
      %53 = dma.vmem_to_smem %s51, 16, [#allocation5], [#allocation6]
    $region21: #{classifier_forward.1} parent=1 // pred_fallthru
      _
    // Predicated region
    $region22: #{classifier_forward.1} parent=1 // pred_check
      _
    $region23: #{classifier_forward.1} parent=1 // pred_check_branch
      %55 = sbr.rel (0) target = $region25
    $region24: #{classifier_forward.1} parent=1 // pred_region
      _
    $region25: #{classifier_forward.1} parent=1 // pred_fallthru
      _
    // Predicated region
    $region26: #{classifier_forward.1} parent=1 // pred_check
      _
    $region27: #{classifier_forward.1} parent=1 // pred_check_branch
      %57 = sbr.rel (0) target = $region29
    $region28: #{classifier_forward.1} parent=1 // pred_region
      _
    $region29: #{classifier_forward.1} parent=1 // pred_fallthru
      _
    // Predicated region
    $region30: #{classifier_forward.1} parent=1 // pred_check
      _
    $region31: #{classifier_forward.1} parent=1 // pred_check_branch
      %59 = sbr.rel (0) target = $region33
    $region32: #{classifier_forward.1} parent=1 // pred_region
      _
    $region33: #{classifier_forward.1} parent=1 // pred_fallthru
      _
    // Predicated region
    $region34: #{classifier_forward.1} parent=1 // pred_check
      _
    $region35: #{classifier_forward.1} parent=1 // pred_check_branch
      %61 = sbr.rel (0) target = $region37
    $region36: #{classifier_forward.1} parent=1 // pred_region
      _
    $region37: #{classifier_forward.1} parent=1 // pred_fallthru
      _
    // Predicated region
    $region38: #{classifier_forward.1} parent=1 // pred_check
      _
    $region39: #{classifier_forward.1} parent=1 // pred_check_branch
      %63 = sbr.rel (0) target = $region41
    $region40: #{classifier_forward.1} parent=1 // pred_region
      _
    $region41: #{classifier_forward.1} parent=1 // pred_fallthru
      _
    // Predicated region
    $region42: #{classifier_forward.1} parent=1 // pred_check
      _
    $region43: #{classifier_forward.1} parent=1 // pred_check_branch
      %65 = sbr.rel (0) target = $region45
    $region44: #{classifier_forward.1} parent=1 // pred_region
      _
    $region45: #{classifier_forward.1} parent=1 // pred_fallthru
      _
    // Predicated region
    $region46: #{classifier_forward.1} parent=1 // pred_check
      _
    $region47: #{classifier_forward.1} parent=1 // pred_check_branch
      %67 = sbr.rel (0) target = $region49
    $region48: #{classifier_forward.1} parent=1 // pred_region
      _
    $region49: #{classifier_forward.1} parent=1 // pred_fallthru
      _
    // Predicated region
    $region50: #{classifier_forward.1} parent=1 // pred_check
      _
    $region51: #{classifier_forward.1} parent=1 // pred_check_branch
      %69 = sbr.rel (0) target = $region53
    $region52: #{classifier_forward.1} parent=1 // pred_region
      _
    $region53: #{classifier_forward.1} parent=1 // pred_fallthru
      _
    // Predicated region
    $region54: #{classifier_forward.1} parent=1 // pred_check
      _
    $region55: #{classifier_forward.1} parent=1 // pred_check_branch
      %71 = sbr.rel (0) target = $region57
    $region56: #{classifier_forward.1} parent=1 // pred_region
      _
    $region57: #{classifier_forward.1} parent=1 // pred_fallthru
      _
    // Predicated region
    $region58: #{classifier_forward.1} parent=1 // pred_check
      _
    $region59: #{classifier_forward.1} parent=1 // pred_check_branch
      %73 = sbr.rel (0) target = $region61
    $region60: #{classifier_forward.1} parent=1 // pred_region
      _
    $region61: #{classifier_forward.1} parent=1 // pred_fallthru
      _
    // Predicated region
    $region62: #{classifier_forward.1} parent=1 // pred_check
      _
    $region63: #{classifier_forward.1} parent=1 // pred_check_branch
      %75 = sbr.rel (0) target = $region65
    $region64: #{classifier_forward.1} parent=1 // pred_region
      _
    $region65: #{classifier_forward.1} parent=1 // pred_fallthru
      _
    // Predicated region
    $region66: #{classifier_forward.1} parent=1 // pred_check
      _
    $region67: #{classifier_forward.1} parent=1 // pred_check_branch
      %77 = sbr.rel (0) target = $region69
    $region68: #{classifier_forward.1} parent=1 // pred_region
      _
    $region69: #{classifier_forward.1} parent=1 // pred_fallthru
      _
    // Predicated region
    $region70: #{classifier_forward.1} parent=1 // pred_check
      _
    $region71: #{classifier_forward.1} parent=1 // pred_check_branch
      %79 = sbr.rel (0) target = $region73
    $region72: #{classifier_forward.1} parent=1 // pred_region
      _
    $region73: #{classifier_forward.1} parent=1 // pred_fallthru
      _
    // Predicated region
    $region74: #{classifier_forward.1} parent=1 // pred_check
      _
    $region75: #{classifier_forward.1} parent=1 // pred_check_branch
      %81 = sbr.rel (0) target = $region77
    $region76: #{classifier_forward.1} parent=1 // pred_region
      _
    $region77: #{classifier_forward.1} parent=1 // pred_fallthru
      _
    // Predicated region
    $region78: #{classifier_forward.1} parent=1 // pred_check
      _
    $region79: #{classifier_forward.1} parent=1 // pred_check_branch
      %83 = sbr.rel (0) target = $region81
    $region80: #{classifier_forward.1} parent=1 // pred_region
      _
    $region81: #{classifier_forward.1} parent=1 // pred_fallthru
      _
    // Predicated region
    $region82: #{classifier_forward.1} parent=1 // pred_check
      _
    $region83: #{classifier_forward.1} parent=1 // pred_check_branch
      %85 = sbr.rel (0) target = $region85
    $region84: #{classifier_forward.1} parent=1 // pred_region
      _
    $region85: #{classifier_forward.1} parent=1 // pred_fallthru
      _
    // Predicated region
    $region86: #{classifier_forward.1} parent=1 // pred_check
      _
    $region87: #{classifier_forward.1} parent=1 // pred_check_branch
      %87 = sbr.rel (0) target = $region89
    $region88: #{classifier_forward.1} parent=1 // pred_region
      _
    $region89: #{classifier_forward.1} parent=1 // pred_fallthru
      _
    // Predicated region
    $region90: #{classifier_forward.1} parent=1 // pred_check
      _
    $region91: #{classifier_forward.1} parent=1 // pred_check_branch
      %89 = sbr.rel (0) target = $region93
    $region92: #{classifier_forward.1} parent=1 // pred_region
      _
    $region93: #{classifier_forward.1} parent=1 // pred_fallthru
      _
    // Predicated region
    $region94: #{classifier_forward.1} parent=1 // pred_check
      _
    $region95: #{classifier_forward.1} parent=1 // pred_check_branch
      %91 = sbr.rel (0) target = $region97
    $region96: #{classifier_forward.1} parent=1 // pred_region
      _
    $region97: #{classifier_forward.1} parent=1 // pred_fallthru
      _
    // Predicated region
    $region98: #{classifier_forward.1} parent=1 // pred_check
      _
    $region99: #{classifier_forward.1} parent=1 // pred_check_branch
      %93 = sbr.rel (0) target = $region101
    $region100: #{classifier_forward.1} parent=1 // pred_region
      _
    $region101: #{classifier_forward.1} parent=1 // pred_fallthru
      _
    // Predicated region
    $region102: #{classifier_forward.1} parent=1 // pred_check
      _
    $region103: #{classifier_forward.1} parent=1 // pred_check_branch
      %95 = sbr.rel (0) target = $region105
    $region104: #{classifier_forward.1} parent=1 // pred_region
      _
    $region105: #{classifier_forward.1} parent=1 // pred_fallthru
      _
    // Predicated region
    $region106: #{classifier_forward.1} parent=1 // pred_check
      _
    $region107: #{classifier_forward.1} parent=1 // pred_check_branch
      %97 = sbr.rel (0) target = $region109
    $region108: #{classifier_forward.1} parent=1 // pred_region
      _
    $region109: #{classifier_forward.1} parent=1 // pred_fallthru
      _
    // Predicated region
    $region110: #{classifier_forward.1} parent=1 // pred_check
      _
    $region111: #{classifier_forward.1} parent=1 // pred_check_branch
      %99 = sbr.rel (0) target = $region113
    $region112: #{classifier_forward.1} parent=1 // pred_region
      _
    $region113: #{classifier_forward.1} parent=1 // pred_fallthru
      _
    // Predicated region
    $region114: #{classifier_forward.1} parent=1 // pred_check
      _
    $region115: #{classifier_forward.1} parent=1 // pred_check_branch
      %101 = sbr.rel (0) target = $region117
    $region116: #{classifier_forward.1} parent=1 // pred_region
      %102 = dma.done [#allocation6], 16
    $region117: #{classifier_forward.1} parent=1 // pred_fallthru
      _
    %103 = sfence
    %v105 = vld [vmem:[%s1] sm:$0xff]
    %v106 = vld [vmem:[%s1 + $0x8] sm:$0xff]
    %v107 = vld [vmem:[%s1 + $0x10] sm:$0xff]
    %v108 = vld [vmem:[%s1 + $0x18] sm:$0xff]
    %v109 = vld [vmem:[%s1 + $0x20] sm:$0xff]
    %v110 = vld [vmem:[%s1 + $0x28] sm:$0xff]
    %v111 = vld [vmem:[%s1 + $0x30] sm:$0xff]
    %v112 = vld [vmem:[%s1 + $0x38] sm:$0xff]
    %v113 = vrsqrt.pop %v105
    %v114 = vmul.f32 %v105, %v113
    %vm115 = vcmp.eq.f32.partialorder %v105, inf
    %v116 = vsel %vm115, %v105, %v114
    %vm117 = vcmp.eq.f32.partialorder %v105, 0.0
    %v118 = vand.u32 %v105, 2147483648
    %v119 = vsel %vm117, %v118, %v116
    %v120 = vrsqrt.pop %v106
    %v121 = vmul.f32 %v106, %v120
    %vm122 = vcmp.eq.f32.partialorder %v106, inf
    %v123 = vsel %vm122, %v106, %v121
    %vm124 = vcmp.eq.f32.partialorder %v106, 0.0
    %v125 = vand.u32 %v106, 2147483648
    %v126 = vsel %vm124, %v125, %v123
    %v127 = vrsqrt.pop %v107
    %v128 = vmul.f32 %v107, %v127
    %vm129 = vcmp.eq.f32.partialorder %v107, inf
    %v130 = vsel %vm129, %v107, %v128
    %vm131 = vcmp.eq.f32.partialorder %v107, 0.0
    %v132 = vand.u32 %v107, 2147483648
    %v133 = vsel %vm131, %v132, %v130
    %v134 = vrsqrt.pop %v108
    %v135 = vmul.f32 %v108, %v134
    %vm136 = vcmp.eq.f32.partialorder %v108, inf
    %v137 = vsel %vm136, %v108, %v135
    %vm138 = vcmp.eq.f32.partialorder %v108, 0.0
    %v139 = vand.u32 %v108, 2147483648
    %v140 = vsel %vm138, %v139, %v137
    %v141 = vrsqrt.pop %v109
    %v142 = vmul.f32 %v109, %v141
    %vm143 = vcmp.eq.f32.partialorder %v109, inf
    %v144 = vsel %vm143, %v109, %v142
    %vm145 = vcmp.eq.f32.partialorder %v109, 0.0
    %v146 = vand.u32 %v109, 2147483648
    %v147 = vsel %vm145, %v146, %v144
    %v148 = vrsqrt.pop %v110
    %v149 = vmul.f32 %v110, %v148
    %vm150 = vcmp.eq.f32.partialorder %v110, inf
    %v151 = vsel %vm150, %v110, %v149
    %vm152 = vcmp.eq.f32.partialorder %v110, 0.0
    %v153 = vand.u32 %v110, 2147483648
    %v154 = vsel %vm152, %v153, %v151
    %v155 = vrsqrt.pop %v111
    %v156 = vmul.f32 %v111, %v155
    %vm157 = vcmp.eq.f32.partialorder %v111, inf
    %v158 = vsel %vm157, %v111, %v156
    %vm159 = vcmp.eq.f32.partialorder %v111, 0.0
    %v160 = vand.u32 %v111, 2147483648
    %v161 = vsel %vm159, %v160, %v158
    %v162 = vrsqrt.pop %v112
    %v163 = vmul.f32 %v112, %v162
    %vm164 = vcmp.eq.f32.partialorder %v112, inf
    %v165 = vsel %vm164, %v112, %v163
    %vm166 = vcmp.eq.f32.partialorder %v112, 0.0
    %v167 = vand.u32 %v112, 2147483648
    %v168 = vsel %vm166, %v167, %v165
    %v169 = vmax.f32 %v119, 0.0
    %v170 = vmax.f32 %v126, 0.0
    %v171 = vmax.f32 %v133, 0.0
    %v172 = vmax.f32 %v140, 0.0
    %v173 = vmax.f32 %v147, 0.0
    %v174 = vmax.f32 %v154, 0.0
    %v175 = vmax.f32 %v161, 0.0
    %v176 = vmax.f32 %v168, 0.0
    %v177 = vmin.f32 %v169, 4.0
    %v178 = vmin.f32 %v170, 4.0
    %v179 = vmin.f32 %v171, 4.0
    %v180 = vmin.f32 %v172, 4.0
    %v181 = vmin.f32 %v173, 4.0
    %v182 = vmin.f32 %v174, 4.0
    %v183 = vmin.f32 %v175, 4.0
    %v184 = vmin.f32 %v176, 4.0
    %v185 = vld [vmem:[%s6] sm:$0x1]
    %187 = vset.pattern.permute.xlu0 0
    %188 = vperm.xlu0 %187, %v177
    %v189 = vpop.permute.xlu0 %188
    %192 = vset.pattern.permute.xlu0 0
    %193 = vperm.xlu0 %192, %v178
    %v194 = vpop.permute.xlu0 %193
    %197 = vset.pattern.permute.xlu0 0
    %198 = vperm.xlu0 %197, %v179
    %v199 = vpop.permute.xlu0 %198
    %202 = vset.pattern.permute.xlu0 0
    %203 = vperm.xlu0 %202, %v180
    %v204 = vpop.permute.xlu0 %203
    %207 = vset.pattern.permute.xlu0 0
    %208 = vperm.xlu0 %207, %v181
    %v209 = vpop.permute.xlu0 %208
    %212 = vset.pattern.permute.xlu0 0
    %213 = vperm.xlu0 %212, %v182
    %v214 = vpop.permute.xlu0 %213
    %217 = vset.pattern.permute.xlu0 0
    %218 = vperm.xlu0 %217, %v183
    %v219 = vpop.permute.xlu0 %218
    %222 = vset.pattern.permute.xlu0 0
    %223 = vperm.xlu0 %222, %v184
    %v224 = vpop.permute.xlu0 %223
    %v227 = vlaneseq
    %v228 = vshrl.u32 %v227, 7
    %v229 = vsub.s32 0, %v228
    %v230 = vrot.slane %v185, %v229
    %v232 = vsub.f32 %v189, %v230
    %v233 = vsub.f32 %v194, %v230
    %v234 = vsub.f32 %v199, %v230
    %v235 = vsub.f32 %v204, %v230
    %v236 = vsub.f32 %v209, %v230
    %v237 = vsub.f32 %v214, %v230
    %v238 = vsub.f32 %v219, %v230
    %v239 = vsub.f32 %v224, %v230
    %v240 = vld [vmem:[%s7] sm:$0x1]
    %v242 = vlaneseq
    %v243 = vshrl.u32 %v242, 7
    %v244 = vsub.s32 0, %v243
    %v245 = vrot.slane %v240, %v244
    %v247 = vmul.f32 %v245, %v232
    %v248 = vmul.f32 %v245, %v233
    %v249 = vmul.f32 %v245, %v234
    %v250 = vmul.f32 %v245, %v235
    %v251 = vmul.f32 %v245, %v236
    %v252 = vmul.f32 %v245, %v237
    %v253 = vmul.f32 %v245, %v238
    %v254 = vmul.f32 %v245, %v239
    %v255 = vmul.f32 %v247, %v232
    %v256 = vmul.f32 %v248, %v233
    %v257 = vmul.f32 %v249, %v234
    %v258 = vmul.f32 %v250, %v235
    %v259 = vmul.f32 %v251, %v236
    %v260 = vmul.f32 %v252, %v237
    %v261 = vmul.f32 %v253, %v238
    %v262 = vmul.f32 %v254, %v239
    %v263 = vmul.f32 %v255, 1.442695
    %v264 = vpow.pop %v263
    %v265 = vmul.f32 %v256, 1.442695
    %v266 = vpow.pop %v265
    %v267 = vmul.f32 %v257, 1.442695
    %v268 = vpow.pop %v267
    %v269 = vmul.f32 %v258, 1.442695
    %v270 = vpow.pop %v269
    %v271 = vmul.f32 %v259, 1.442695
    %v272 = vpow.pop %v271
    %v273 = vmul.f32 %v260, 1.442695
    %v274 = vpow.pop %v273
    %v275 = vmul.f32 %v261, 1.442695
    %v276 = vpow.pop %v275
    %v277 = vmul.f32 %v262, 1.442695
    %v278 = vpow.pop %v277
    %v279 = vld [vmem:[%s3] sm:$0xff]
    %v280 = vld [vmem:[%s3 + $0x8] sm:$0xff]
    %v281 = vld [vmem:[%s3 + $0x10] sm:$0xff]
    %v282 = vld [vmem:[%s3 + $0x18] sm:$0xff]
    %v283 = vld [vmem:[%s3 + $0x20] sm:$0xff]
    %v284 = vld [vmem:[%s3 + $0x28] sm:$0xff]
    %v285 = vld [vmem:[%s3 + $0x30] sm:$0xff]
    %v286 = vld [vmem:[%s3 + $0x38] sm:$0xff]
    %295 = vrot.lane.b32.xlu0 %v264, 8
    %v296 = vpop.permute.xlu0 %295
    %297 = vrot.lane.b32.xlu0 %v266, 8
    %v298 = vpop.permute.xlu0 %297
    %299 = vrot.lane.b32.xlu0 %v268, 8
    %v300 = vpop.permute.xlu0 %299
    %301 = vrot.lane.b32.xlu0 %v270, 8
    %v302 = vpop.permute.xlu0 %301
    %303 = vrot.lane.b32.xlu0 %v272, 8
    %v304 = vpop.permute.xlu0 %303
    %305 = vrot.lane.b32.xlu0 %v274, 8
    %v306 = vpop.permute.xlu0 %305
    %307 = vrot.lane.b32.xlu0 %v276, 8
    %v308 = vpop.permute.xlu0 %307
    %309 = vrot.lane.b32.xlu0 %v278, 8
    %v310 = vpop.permute.xlu0 %309
    %vm319 = vcmask 64512
    %v320 = vsel %vm319, %v279, %v296
    %v321 = vsel %vm319, %v280, %v298
    %v322 = vsel %vm319, %v281, %v300
    %v323 = vsel %vm319, %v282, %v302
    %v324 = vsel %vm319, %v283, %v304
    %v325 = vsel %vm319, %v284, %v306
    %v326 = vsel %vm319, %v285, %v308
    %v327 = vsel %vm319, %v286, %v310
    %vm328 = vcmask 228352
    %v329 = vsel %vm328, %v320, 0.0
    %v330 = vsel %vm328, %v321, 0.0
    %v331 = vsel %vm328, %v322, 0.0
    %v332 = vsel %vm328, %v323, 0.0
    %v333 = vsel %vm328, %v324, 0.0
    %v334 = vsel %vm328, %v325, 0.0
    %v335 = vsel %vm328, %v326, 0.0
    %v336 = vsel %vm328, %v327, 0.0
    %v337 = vpack.c.bf16 %v330, %v329
    %v338 = vpack.c.bf16 %v332, %v331
    %v339 = vpack.c.bf16 %v334, %v333
    %v340 = vpack.c.bf16 %v336, %v335
    %v341 = vld [vmem:[%s2] sm:$0xff]
    %v342 = vld [vmem:[%s2 + $0x8] sm:$0xff]
    %v343 = vld [vmem:[%s2 + $0x10] sm:$0xff]
    %v344 = vld [vmem:[%s2 + $0x18] sm:$0xff]
    %v345 = vld [vmem:[%s2 + $0x20] sm:$0xff]
    %v346 = vld [vmem:[%s2 + $0x28] sm:$0xff]
    %v347 = vld [vmem:[%s2 + $0x30] sm:$0xff]
    %v348 = vld [vmem:[%s2 + $0x38] sm:$0xff]
    %v349 = vld [vmem:[%s0] sm:$0xff]
    %v350 = vld [vmem:[%s0 + $0x8] sm:$0xff]
    %v351 = vpack.c.bf16 %v350, %v349
    %v352 = vld [vmem:[%s8] sm:$0xf]
    %v353 = vld [vmem:[%s8 + $0x4] sm:$0xf]
    %v354 = vld [vmem:[%s9] sm:$0x1]
    %v356 = vlaneseq
    %v357 = vshrl.u32 %v356, 7
    %v358 = vsub.s32 0, %v357
    %v359 = vrot.slane %v354, %v358
    %v363 = vunpack.c.l.b16 %v352
    %v364 = vunpack.c.l.b16 %v353
    %v365 = vpack.c.b16 %v364, %v363
    %vm367 = vcmask 130048
    %v369 = vsel %vm367, %v351, 0
    %371 = vmatprep.subr.bf16.mxu0 0
    %372 = vmatpush1.bf16.msra.mxu0 %v365
    %373 = vmatprep.subr.bf16.mxu0 0
    %374 = vmatpush1.bf16.msra.mxu0 0
    %375 = vmatprep.subr.bf16.mxu0 0
    %376 = vmatpush1.bf16.msra.mxu0 0
    %377 = vmatprep.subr.bf16.mxu0 0
    %378 = vmatpush1.bf16.msra.mxu0 0
    %379 = vmatprep.subr.bf16.mxu0 0
    %380 = vmatpush1.bf16.msra.mxu0 0
    %381 = vmatprep.subr.bf16.mxu0 0
    %382 = vmatpush1.bf16.msra.mxu0 0
    %383 = vmatprep.subr.bf16.mxu0 0
    %384 = vmatpush1.bf16.msra.mxu0 0
    %385 = vmatprep.subr.bf16.mxu0 0
    %386 = vmatpush1.bf16.msra.mxu0 0
    %387 = vmatprep.subr.bf16.mxu0 0
    %388 = vmatpush1.bf16.msra.mxu0 0
    %389 = vmatprep.subr.bf16.mxu0 0
    %390 = vmatpush1.bf16.msra.mxu0 0
    %391 = vmatprep.subr.bf16.mxu0 0
    %392 = vmatpush1.bf16.msra.mxu0 0
    %393 = vmatprep.subr.bf16.mxu0 0
    %394 = vmatpush1.bf16.msra.mxu0 0
    %395 = vmatprep.subr.bf16.mxu0 0
    %396 = vmatpush1.bf16.msra.mxu0 0
    %397 = vmatprep.subr.bf16.mxu0 0
    %398 = vmatpush1.bf16.msra.mxu0 0
    %399 = vmatprep.subr.bf16.mxu0 0
    %400 = vmatpush1.bf16.msra.mxu0 0
    %401 = vmatprep.subr.bf16.mxu0 0
    %402 = vmatpush1.bf16.msra.mxu0 0
    %403 = vmatprep.mubr.bf16.mxu0 0
    %404 = vmatmul.mubr.bf16.gmra.mrb[0].mxu0 %v369
    %v405 = vpop.f32.mrb[0].mxu0
    %v406 = vadd.f32 %v359, %v405
    %v407 = vpop.f32.mrb[0].mxu0
    %v408 = vpop.f32.mrb[0].mxu0
    %v409 = vadd.f32 %v359, %v408
    %v410 = vpop.f32.mrb[0].mxu0
    %411 = vdwg.mxu0
    %vm412 = vcmask 261120
    %413 = vst.msk [vmem:[#allocation2] sm:$0xff] %vm412, %v406
    %414 = vst.msk [vmem:[#allocation2 + $0x8] sm:$0xff] %vm412, %v409
    loop: start=0, step=1, limit=64
    $region118: #{classifier_forward.1} parent=1 // loop_pre_header
      _
    $region119: #{classifier_forward.1} parent=1 // loop_header
      %s416 = sphi 0, %s420
      %p417 = scmp.ge.s32.totalorder %s416, 64
    $region120: #{classifier_forward.1} parent=1 // loop_header_branch
      %419 = sbr.rel (%p417) target = $region124
    $region121: #{classifier_forward.1} parent=1 // loop_body
      %s421 = sld [smem:[#allocation5 + %s416]]
      %s422 = scalar_lea.vmem [#allocation2], %s421
      %v423 = vld [vmem:[%s422] sm:$0x1]
      %s424 = scalar_lea.vmem [#allocation3], %s416
      %vm425 = vcmask 253952
      %426 = vst.msk [vmem:[%s424] sm:$0x1] %vm425, %v423
    $region122: #{classifier_forward.1} parent=1 // loop_footer
      %s420 = sadd.s32 1, %s416
    $region123: #{classifier_forward.1} parent=1 // loop_footer_branch
      %415 = sbr.rel target = $region119
    $region124: #{classifier_forward.1} parent=1 // loop_exit
      _
    %v427 = vld [vmem:[#allocation3] sm:$0xff]
    %v428 = vld [vmem:[#allocation3 + $0x8] sm:$0xff]
    %v429 = vld [vmem:[#allocation3 + $0x10] sm:$0xff]
    %v430 = vld [vmem:[#allocation3 + $0x18] sm:$0xff]
    %v431 = vld [vmem:[#allocation3 + $0x20] sm:$0xff]
    %v432 = vld [vmem:[#allocation3 + $0x28] sm:$0xff]
    %v433 = vld [vmem:[#allocation3 + $0x30] sm:$0xff]
    %v434 = vld [vmem:[#allocation3 + $0x38] sm:$0xff]
    %v435 = vpack.c.bf16 %v409, %v406
    %v436 = vpack.c.bf16 %v428, %v427
    %v437 = vpack.c.bf16 %v430, %v429
    %v438 = vpack.c.bf16 %v432, %v431
    %v439 = vpack.c.bf16 %v434, %v433
    %444 = vrot.lane.b32.xlu0 %v436, 32
    %v445 = vpop.permute.xlu0 %444
    %446 = vrot.lane.b32.xlu0 %v437, 32
    %v447 = vpop.permute.xlu0 %446
    %448 = vrot.lane.b32.xlu0 %v438, 32
    %v449 = vpop.permute.xlu0 %448
    %450 = vrot.lane.b32.xlu0 %v439, 32
    %v451 = vpop.permute.xlu0 %450
    %456 = vrot.lane.b32.xlu0 %v337, 64
    %v457 = vpop.permute.xlu0 %456
    %458 = vrot.lane.b32.xlu0 %v338, 64
    %v459 = vpop.permute.xlu0 %458
    %460 = vrot.lane.b32.xlu0 %v339, 64
    %v461 = vpop.permute.xlu0 %460
    %462 = vrot.lane.b32.xlu0 %v340, 64
    %v463 = vpop.permute.xlu0 %462
    %v466 = vsel %vm412, %v435, %v445
    %v468 = vsel %vm412, %v435, %v447
    %v470 = vsel %vm412, %v435, %v449
    %v472 = vsel %vm412, %v435, %v451
    %vm473 = vcmask 523264
    %v475 = vsel %vm473, %v466, %v457
    %v478 = vsel %vm473, %v468, %v459
    %v481 = vsel %vm473, %v470, %v461
    %v484 = vsel %vm473, %v472, %v463
    %v486 = vld [vmem:[%s14] sm:$0xf]
    %v487 = vld [vmem:[%s14 + $0x4] sm:$0xf]
    %v488 = vld [vmem:[%s14 + $0x8] sm:$0xf]
    %v489 = vld [vmem:[%s14 + $0xc] sm:$0xf]
    %v490 = vld [vmem:[%s14 + $0x10] sm:$0xf]
    %v491 = vld [vmem:[%s14 + $0x14] sm:$0xf]
    %v492 = vld [vmem:[%s14 + $0x18] sm:$0xf]
    %v493 = vld [vmem:[%s14 + $0x1c] sm:$0xf]
    %v494 = vld [vmem:[%s14 + $0x20] sm:$0xf]
    %v495 = vld [vmem:[%s14 + $0x24] sm:$0xf]
    %v496 = vld [vmem:[%s14 + $0x28] sm:$0xf]
    %v497 = vld [vmem:[%s14 + $0x2c] sm:$0xf]
    %v498 = vld [vmem:[%s14 + $0x30] sm:$0xf]
    %v499 = vld [vmem:[%s14 + $0x34] sm:$0xf]
    %v500 = vld [vmem:[%s14 + $0x38] sm:$0xf]
    %v501 = vld [vmem:[%s14 + $0x3c] sm:$0xf]
    %v502 = vld [vmem:[%s15] sm:$0x1]
    %v504 = vlaneseq
    %v505 = vshrl.u32 %v504, 7
    %v506 = vsub.s32 0, %v505
    %v507 = vrot.slane %v502, %v506
    %v525 = vunpack.c.l.b16 %v486
    %v526 = vunpack.c.l.b16 %v487
    %v527 = vunpack.c.l.b16 %v488
    %v528 = vunpack.c.l.b16 %v489
    %v529 = vunpack.c.l.b16 %v490
    %v530 = vunpack.c.l.b16 %v491
    %v531 = vunpack.c.l.b16 %v492
    %v532 = vunpack.c.l.b16 %v493
    %v533 = vunpack.c.l.b16 %v494
    %v534 = vunpack.c.l.b16 %v495
    %v535 = vunpack.c.l.b16 %v496
    %v536 = vunpack.c.l.b16 %v497
    %v537 = vunpack.c.l.b16 %v498
    %v538 = vunpack.c.l.b16 %v499
    %v539 = vunpack.c.l.b16 %v500
    %v540 = vunpack.c.l.b16 %v501
    %v541 = vpack.c.b16 %v526, %v525
    %v542 = vpack.c.b16 %v528, %v527
    %v543 = vpack.c.b16 %v530, %v529
    %v544 = vpack.c.b16 %v532, %v531
    %v545 = vpack.c.b16 %v534, %v533
    %v546 = vpack.c.b16 %v536, %v535
    %v547 = vpack.c.b16 %v538, %v537
    %v548 = vpack.c.b16 %v540, %v539
    %557 = vmatprep.subr.bf16.mxu0 0
    %558 = vmatpush1.bf16.msra.mxu0 %v541
    %559 = vmatprep.subr.bf16.mxu0 0
    %560 = vmatpush1.bf16.msra.mxu0 %v542
    %561 = vmatprep.subr.bf16.mxu0 0
    %562 = vmatpush1.bf16.msra.mxu0 %v543
    %563 = vmatprep.subr.bf16.mxu0 0
    %564 = vmatpush1.bf16.msra.mxu0 %v544
    %565 = vmatprep.subr.bf16.mxu0 0
    %566 = vmatpush1.bf16.msra.mxu0 %v545
    %567 = vmatprep.subr.bf16.mxu0 0
    %568 = vmatpush1.bf16.msra.mxu0 %v546
    %569 = vmatprep.subr.bf16.mxu0 0
    %570 = vmatpush1.bf16.msra.mxu0 %v547
    %571 = vmatprep.subr.bf16.mxu0 0
    %572 = vmatpush1.bf16.msra.mxu0 %v548
    %573 = vmatprep.subr.bf16.mxu0 0
    %574 = vmatpush1.bf16.msra.mxu0 0
    %575 = vmatprep.subr.bf16.mxu0 0
    %576 = vmatpush1.bf16.msra.mxu0 0
    %577 = vmatprep.subr.bf16.mxu0 0
    %578 = vmatpush1.bf16.msra.mxu0 0
    %579 = vmatprep.subr.bf16.mxu0 0
    %580 = vmatpush1.bf16.msra.mxu0 0
    %581 = vmatprep.subr.bf16.mxu0 0
    %582 = vmatpush1.bf16.msra.mxu0 0
    %583 = vmatprep.subr.bf16.mxu0 0
    %584 = vmatpush1.bf16.msra.mxu0 0
    %585 = vmatprep.subr.bf16.mxu0 0
    %586 = vmatpush1.bf16.msra.mxu0 0
    %587 = vmatprep.subr.bf16.mxu0 0
    %588 = vmatpush1.bf16.msra.mxu0 0
    %589 = vmatprep.mubr.bf16.mxu0 0
    %590 = vmatmul.mubr.bf16.gmra.mrb[0].mxu0 %v475
    %v591 = vpop.f32.mrb[0].mxu0
    %v592 = vadd.f32 %v507, %v591
    %v593 = vpop.f32.mrb[0].mxu0
    %v594 = vpop.f32.mrb[0].mxu0
    %v595 = vadd.f32 %v507, %v594
    %v596 = vpop.f32.mrb[0].mxu0
    %597 = vmatprep.mubr.bf16.mxu0 0
    %598 = vmatmul.mubr.bf16.gmra.mrb[0].mxu0 %v478
    %v599 = vpop.f32.mrb[0].mxu0
    %v600 = vadd.f32 %v507, %v599
    %v601 = vpop.f32.mrb[0].mxu0
    %v602 = vpop.f32.mrb[0].mxu0
    %v603 = vadd.f32 %v507, %v602
    %v604 = vpop.f32.mrb[0].mxu0
    %605 = vmatprep.mubr.bf16.mxu0 0
    %606 = vmatmul.mubr.bf16.gmra.mrb[0].mxu0 %v481
    %v607 = vpop.f32.mrb[0].mxu0
    %v608 = vadd.f32 %v507, %v607
    %v609 = vpop.f32.mrb[0].mxu0
    %v610 = vpop.f32.mrb[0].mxu0
    %v611 = vadd.f32 %v507, %v610
    %v612 = vpop.f32.mrb[0].mxu0
    %613 = vmatprep.mubr.bf16.mxu0 0
    %614 = vmatmul.mubr.bf16.gmra.mrb[0].mxu0 %v484
    %v615 = vpop.f32.mrb[0].mxu0
    %v616 = vadd.f32 %v507, %v615
    %v617 = vpop.f32.mrb[0].mxu0
    %v618 = vpop.f32.mrb[0].mxu0
    %v619 = vadd.f32 %v507, %v618
    %v620 = vpop.f32.mrb[0].mxu0
    %621 = vdwg.mxu0
    %v622 = vld [vmem:[%s16] sm:$0x1]
    %v623 = vld [vmem:[%s17] sm:$0x1]
    %v624 = vsel %vm412, %v592, 0.0
    %625 = vadd.xlane.f32.xlu0 %v624
    %v626 = vpop.xlane.xlu0 %625
    %v627 = vsel %vm412, %v595, 0.0
    %628 = vadd.xlane.f32.xlu0 %v627
    %v629 = vpop.xlane.xlu0 %628
    %v630 = vsel %vm412, %v600, 0.0
    %631 = vadd.xlane.f32.xlu0 %v630
    %v632 = vpop.xlane.xlu0 %631
    %v633 = vsel %vm412, %v603, 0.0
    %634 = vadd.xlane.f32.xlu0 %v633
    %v635 = vpop.xlane.xlu0 %634
    %v636 = vsel %vm412, %v608, 0.0
    %637 = vadd.xlane.f32.xlu0 %v636
    %v638 = vpop.xlane.xlu0 %637
    %v639 = vsel %vm412, %v611, 0.0
    %640 = vadd.xlane.f32.xlu0 %v639
    %v641 = vpop.xlane.xlu0 %640
    %v642 = vsel %vm412, %v616, 0.0
    %643 = vadd.xlane.f32.xlu0 %v642
    %v644 = vpop.xlane.xlu0 %643
    %v645 = vsel %vm412, %v619, 0.0
    %646 = vadd.xlane.f32.xlu0 %v645
    %v647 = vpop.xlane.xlu0 %646
    %v648 = vrcp.pop 32.0
    %v649 = vmul.f32 %v626, %v648
    %v650 = vmul.f32 %v629, %v648
    %v651 = vmul.f32 %v632, %v648
    %v652 = vmul.f32 %v635, %v648
    %v653 = vmul.f32 %v638, %v648
    %v654 = vmul.f32 %v641, %v648
    %v655 = vmul.f32 %v644, %v648
    %v656 = vmul.f32 %v647, %v648
    %v657 = vsub.f32 %v592, %v649
    %v658 = vsub.f32 %v595, %v650
    %v659 = vsub.f32 %v600, %v651
    %v660 = vsub.f32 %v603, %v652
    %v661 = vsub.f32 %v608, %v653
    %v662 = vsub.f32 %v611, %v654
    %v663 = vsub.f32 %v616, %v655
    %v664 = vsub.f32 %v619, %v656
    %v665 = vmul.f32 %v657, %v657
    %v666 = vmul.f32 %v658, %v658
    %v667 = vmul.f32 %v659, %v659
    %v668 = vmul.f32 %v660, %v660
    %v669 = vmul.f32 %v661, %v661
    %v670 = vmul.f32 %v662, %v662
    %v671 = vmul.f32 %v663, %v663
    %v672 = vmul.f32 %v664, %v664
    %v673 = vsel %vm412, %v665, 0.0
    %674 = vadd.xlane.f32.xlu0 %v673
    %v675 = vpop.xlane.xlu0 %674
    %v676 = vsel %vm412, %v666, 0.0
    %677 = vadd.xlane.f32.xlu0 %v676
    %v678 = vpop.xlane.xlu0 %677
    %v679 = vsel %vm412, %v667, 0.0
    %680 = vadd.xlane.f32.xlu0 %v679
    %v681 = vpop.xlane.xlu0 %680
    %v682 = vsel %vm412, %v668, 0.0
    %683 = vadd.xlane.f32.xlu0 %v682
    %v684 = vpop.xlane.xlu0 %683
    %v685 = vsel %vm412, %v669, 0.0
    %686 = vadd.xlane.f32.xlu0 %v685
    %v687 = vpop.xlane.xlu0 %686
    %v688 = vsel %vm412, %v670, 0.0
    %689 = vadd.xlane.f32.xlu0 %v688
    %v690 = vpop.xlane.xlu0 %689
    %v691 = vsel %vm412, %v671, 0.0
    %692 = vadd.xlane.f32.xlu0 %v691
    %v693 = vpop.xlane.xlu0 %692
    %v694 = vsel %vm412, %v672, 0.0
    %695 = vadd.xlane.f32.xlu0 %v694
    %v696 = vpop.xlane.xlu0 %695
    %v697 = vmul.f32 %v675, %v648
    %v698 = vmul.f32 %v678, %v648
    %v699 = vmul.f32 %v681, %v648
    %v700 = vmul.f32 %v684, %v648
    %v701 = vmul.f32 %v687, %v648
    %v702 = vmul.f32 %v690, %v648
    %v703 = vmul.f32 %v693, %v648
    %v704 = vmul.f32 %v696, %v648
    %v705 = vadd.f32 %v697, 1e-05
    %v706 = vadd.f32 %v698, 1e-05
    %v707 = vadd.f32 %v699, 1e-05
    %v708 = vadd.f32 %v700, 1e-05
    %v709 = vadd.f32 %v701, 1e-05
    %v710 = vadd.f32 %v702, 1e-05
    %v711 = vadd.f32 %v703, 1e-05
    %v712 = vadd.f32 %v704, 1e-05
    %v713 = vrsqrt.pop %v705
    %v714 = vrsqrt.pop %v706
    %v715 = vrsqrt.pop %v707
    %v716 = vrsqrt.pop %v708
    %v717 = vrsqrt.pop %v709
    %v718 = vrsqrt.pop %v710
    %v719 = vrsqrt.pop %v711
    %v720 = vrsqrt.pop %v712
    %v721 = vmul.f32 %v657, %v713
    %v722 = vmul.f32 %v658, %v714
    %v723 = vmul.f32 %v659, %v715
    %v724 = vmul.f32 %v660, %v716
    %v725 = vmul.f32 %v661, %v717
    %v726 = vmul.f32 %v662, %v718
    %v727 = vmul.f32 %v663, %v719
    %v728 = vmul.f32 %v664, %v720
    %v730 = vlaneseq
    %v731 = vshrl.u32 %v730, 7
    %v732 = vsub.s32 0, %v731
    %v733 = vrot.slane %v622, %v732
    %v735 = vmul.f32 %v721, %v733
    %v736 = vmul.f32 %v722, %v733
    %v737 = vmul.f32 %v723, %v733
    %v738 = vmul.f32 %v724, %v733
    %v739 = vmul.f32 %v725, %v733
    %v740 = vmul.f32 %v726, %v733
    %v741 = vmul.f32 %v727, %v733
    %v742 = vmul.f32 %v728, %v733
    %v744 = vlaneseq
    %v745 = vshrl.u32 %v744, 7
    %v746 = vsub.s32 0, %v745
    %v747 = vrot.slane %v623, %v746
    %v749 = vadd.f32 %v735, %v747
    %v750 = vadd.f32 %v736, %v747
    %v751 = vadd.f32 %v737, %v747
    %v752 = vadd.f32 %v738, %v747
    %v753 = vadd.f32 %v739, %v747
    %v754 = vadd.f32 %v740, %v747
    %v755 = vadd.f32 %v741, %v747
    %v756 = vadd.f32 %v742, %v747
    %v757 = vxor.u32 %v749, 2147483648
    %v758 = vxor.u32 %v750, 2147483648
    %v759 = vxor.u32 %v751, 2147483648
    %v760 = vxor.u32 %v752, 2147483648
    %v761 = vxor.u32 %v753, 2147483648
    %v762 = vxor.u32 %v754, 2147483648
    %v763 = vxor.u32 %v755, 2147483648
    %v764 = vxor.u32 %v756, 2147483648
    %v765 = vmul.f32 %v757, 1.442695
    %v766 = vpow.pop %v765
    %v767 = vmul.f32 %v758, 1.442695
    %v768 = vpow.pop %v767
    %v769 = vmul.f32 %v759, 1.442695
    %v770 = vpow.pop %v769
    %v771 = vmul.f32 %v760, 1.442695
    %v772 = vpow.pop %v771
    %v773 = vmul.f32 %v761, 1.442695
    %v774 = vpow.pop %v773
    %v775 = vmul.f32 %v762, 1.442695
    %v776 = vpow.pop %v775
    %v777 = vmul.f32 %v763, 1.442695
    %v778 = vpow.pop %v777
    %v779 = vmul.f32 %v764, 1.442695
    %v780 = vpow.pop %v779
    %v781 = vadd.f32 %v766, 1.0
    %v782 = vadd.f32 %v768, 1.0
    %v783 = vadd.f32 %v770, 1.0
    %v784 = vadd.f32 %v772, 1.0
    %v785 = vadd.f32 %v774, 1.0
    %v786 = vadd.f32 %v776, 1.0
    %v787 = vadd.f32 %v778, 1.0
    %v788 = vadd.f32 %v780, 1.0
    %v789 = vrcp.pop %v781
    %v790 = vmul.f32 1.0, %v789
    %v791 = vrcp.pop %v782
    %v792 = vmul.f32 1.0, %v791
    %v793 = vrcp.pop %v783
    %v794 = vmul.f32 1.0, %v793
    %v795 = vrcp.pop %v784
    %v796 = vmul.f32 1.0, %v795
    %v797 = vrcp.pop %v785
    %v798 = vmul.f32 1.0, %v797
    %v799 = vrcp.pop %v786
    %v800 = vmul.f32 1.0, %v799
    %v801 = vrcp.pop %v787
    %v802 = vmul.f32 1.0, %v801
    %v803 = vrcp.pop %v788
    %v804 = vmul.f32 1.0, %v803
    %v805 = vmul.f32 %v749, %v790
    %v806 = vmul.f32 %v750, %v792
    %v807 = vmul.f32 %v751, %v794
    %v808 = vmul.f32 %v752, %v796
    %v809 = vmul.f32 %v753, %v798
    %v810 = vmul.f32 %v754, %v800
    %v811 = vmul.f32 %v755, %v802
    %v812 = vmul.f32 %v756, %v804
    %v813 = vpack.c.bf16 %v806, %v805
    %v814 = vpack.c.bf16 %v808, %v807
    %v815 = vpack.c.bf16 %v810, %v809
    %v816 = vpack.c.bf16 %v812, %v811
    %v817 = vld [vmem:[%s18] sm:$0xf]
    %v818 = vld [vmem:[%s18 + $0x4] sm:$0xf]
    %v819 = vld [vmem:[%s18 + $0x8] sm:$0xf]
    %v820 = vld [vmem:[%s18 + $0xc] sm:$0xf]
    %v821 = vld [vmem:[%s19] sm:$0x1]
    %v823 = vlaneseq
    %v824 = vshrl.u32 %v823, 7
    %v825 = vsub.s32 0, %v824
    %v826 = vrot.slane %v821, %v825
    %v832 = vunpack.c.l.b16 %v817
    %v833 = vunpack.c.l.b16 %v818
    %v834 = vunpack.c.l.b16 %v819
    %v835 = vunpack.c.l.b16 %v820
    %v836 = vpack.c.b16 %v833, %v832
    %v837 = vpack.c.b16 %v835, %v834
    %v841 = vsel %vm412, %v813, 0
    %v844 = vsel %vm412, %v814, 0
    %v847 = vsel %vm412, %v815, 0
    %v850 = vsel %vm412, %v816, 0
    %852 = vmatprep.subr.bf16.mxu0 0
    %853 = vmatpush1.bf16.msra.mxu0 %v836
    %854 = vmatprep.subr.bf16.mxu0 0
    %855 = vmatpush1.bf16.msra.mxu0 %v837
    %856 = vmatprep.subr.bf16.mxu0 0
    %857 = vmatpush1.bf16.msra.mxu0 0
    %858 = vmatprep.subr.bf16.mxu0 0
    %859 = vmatpush1.bf16.msra.mxu0 0
    %860 = vmatprep.subr.bf16.mxu0 0
    %861 = vmatpush1.bf16.msra.mxu0 0
    %862 = vmatprep.subr.bf16.mxu0 0
    %863 = vmatpush1.bf16.msra.mxu0 0
    %864 = vmatprep.subr.bf16.mxu0 0
    %865 = vmatpush1.bf16.msra.mxu0 0
    %866 = vmatprep.subr.bf16.mxu0 0
    %867 = vmatpush1.bf16.msra.mxu0 0
    %868 = vmatprep.subr.bf16.mxu0 0
    %869 = vmatpush1.bf16.msra.mxu0 0
    %870 = vmatprep.subr.bf16.mxu0 0
    %871 = vmatpush1.bf16.msra.mxu0 0
    %872 = vmatprep.subr.bf16.mxu0 0
    %873 = vmatpush1.bf16.msra.mxu0 0
    %874 = vmatprep.subr.bf16.mxu0 0
    %875 = vmatpush1.bf16.msra.mxu0 0
    %876 = vmatprep.subr.bf16.mxu0 0
    %877 = vmatpush1.bf16.msra.mxu0 0
    %878 = vmatprep.subr.bf16.mxu0 0
    %879 = vmatpush1.bf16.msra.mxu0 0
    %880 = vmatprep.subr.bf16.mxu0 0
    %881 = vmatpush1.bf16.msra.mxu0 0
    %882 = vmatprep.subr.bf16.mxu0 0
    %883 = vmatpush1.bf16.msra.mxu0 0
    %884 = vmatprep.mubr.bf16.mxu0 0
    %885 = vmatmul.mubr.bf16.gmra.mrb[0].mxu0 %v841
    %v886 = vpop.f32.mrb[0].mxu0
    %v887 = vadd.f32 %v826, %v886
    %v888 = vpop.f32.mrb[0].mxu0
    %v889 = vpop.f32.mrb[0].mxu0
    %v890 = vadd.f32 %v826, %v889
    %v891 = vpop.f32.mrb[0].mxu0
    %892 = vmatprep.mubr.bf16.mxu0 0
    %893 = vmatmul.mubr.bf16.gmra.mrb[0].mxu0 %v844
    %v894 = vpop.f32.mrb[0].mxu0
    %v895 = vadd.f32 %v826, %v894
    %v896 = vpop.f32.mrb[0].mxu0
    %v897 = vpop.f32.mrb[0].mxu0
    %v898 = vadd.f32 %v826, %v897
    %v899 = vpop.f32.mrb[0].mxu0
    %900 = vmatprep.mubr.bf16.mxu0 0
    %901 = vmatmul.mubr.bf16.gmra.mrb[0].mxu0 %v847
    %v902 = vpop.f32.mrb[0].mxu0
    %v903 = vadd.f32 %v826, %v902
    %v904 = vpop.f32.mrb[0].mxu0
    %v905 = vpop.f32.mrb[0].mxu0
    %v906 = vadd.f32 %v826, %v905
    %v907 = vpop.f32.mrb[0].mxu0
    %908 = vmatprep.mubr.bf16.mxu0 0
    %909 = vmatmul.mubr.bf16.gmra.mrb[0].mxu0 %v850
    %v910 = vpop.f32.mrb[0].mxu0
    %v911 = vadd.f32 %v826, %v910
    %v912 = vpop.f32.mrb[0].mxu0
    %v913 = vpop.f32.mrb[0].mxu0
    %v914 = vadd.f32 %v826, %v913
    %v915 = vpop.f32.mrb[0].mxu0
    %916 = vdwg.mxu0
    %v917 = vxor.u32 %v887, 2147483648
    %v918 = vxor.u32 %v890, 2147483648
    %v919 = vxor.u32 %v895, 2147483648
    %v920 = vxor.u32 %v898, 2147483648
    %v921 = vxor.u32 %v903, 2147483648
    %v922 = vxor.u32 %v906, 2147483648
    %v923 = vxor.u32 %v911, 2147483648
    %v924 = vxor.u32 %v914, 2147483648
    %v925 = vmul.f32 %v917, 1.442695
    %v926 = vpow.pop %v925
    %v927 = vmul.f32 %v918, 1.442695
    %v928 = vpow.pop %v927
    %v929 = vmul.f32 %v919, 1.442695
    %v930 = vpow.pop %v929
    %v931 = vmul.f32 %v920, 1.442695
    %v932 = vpow.pop %v931
    %v933 = vmul.f32 %v921, 1.442695
    %v934 = vpow.pop %v933
    %v935 = vmul.f32 %v922, 1.442695
    %v936 = vpow.pop %v935
    %v937 = vmul.f32 %v923, 1.442695
    %v938 = vpow.pop %v937
    %v939 = vmul.f32 %v924, 1.442695
    %v940 = vpow.pop %v939
    %v941 = vadd.f32 %v926, 1.0
    %v942 = vadd.f32 %v928, 1.0
    %v943 = vadd.f32 %v930, 1.0
    %v944 = vadd.f32 %v932, 1.0
    %v945 = vadd.f32 %v934, 1.0
    %v946 = vadd.f32 %v936, 1.0
    %v947 = vadd.f32 %v938, 1.0
    %v948 = vadd.f32 %v940, 1.0
    %v949 = vrcp.pop %v941
    %v950 = vmul.f32 1.0, %v949
    %v951 = vrcp.pop %v942
    %v952 = vmul.f32 1.0, %v951
    %v953 = vrcp.pop %v943
    %v954 = vmul.f32 1.0, %v953
    %v955 = vrcp.pop %v944
    %v956 = vmul.f32 1.0, %v955
    %v957 = vrcp.pop %v945
    %v958 = vmul.f32 1.0, %v957
    %v959 = vrcp.pop %v946
    %v960 = vmul.f32 1.0, %v959
    %v961 = vrcp.pop %v947
    %v962 = vmul.f32 1.0, %v961
    %v963 = vrcp.pop %v948
    %v964 = vmul.f32 1.0, %v963
    %v965 = vmul.f32 %v887, %v950
    %v966 = vmul.f32 %v890, %v952
    %v967 = vmul.f32 %v895, %v954
    %v968 = vmul.f32 %v898, %v956
    %v969 = vmul.f32 %v903, %v958
    %v970 = vmul.f32 %v906, %v960
    %v971 = vmul.f32 %v911, %v962
    %v972 = vmul.f32 %v914, %v964
    %v973 = vld [vmem:[%s20] sm:$0x1]
    %v975 = vlaneseq
    %v976 = vshrl.u32 %v975, 7
    %v977 = vsub.s32 0, %v976
    %v978 = vrot.slane %v973, %v977
    %v980 = vmul.f32 %v965, %v978
    %v981 = vmul.f32 %v966, %v978
    %v982 = vmul.f32 %v967, %v978
    %v983 = vmul.f32 %v968, %v978
    %v984 = vmul.f32 %v969, %v978
    %v985 = vmul.f32 %v970, %v978
    %v986 = vmul.f32 %v971, %v978
    %v987 = vmul.f32 %v972, %v978
    %v988 = vsel %vm412, %v980, 0.0
    %989 = vadd.xlane.f32.xlu0 %v988
    %v990 = vpop.xlane.xlu0 %989
    %v991 = vsel %vm412, %v981, 0.0
    %992 = vadd.xlane.f32.xlu0 %v991
    %v993 = vpop.xlane.xlu0 %992
    %v994 = vsel %vm412, %v982, 0.0
    %995 = vadd.xlane.f32.xlu0 %v994
    %v996 = vpop.xlane.xlu0 %995
    %v997 = vsel %vm412, %v983, 0.0
    %998 = vadd.xlane.f32.xlu0 %v997
    %v999 = vpop.xlane.xlu0 %998
    %v1000 = vsel %vm412, %v984, 0.0
    %1001 = vadd.xlane.f32.xlu0 %v1000
    %v1002 = vpop.xlane.xlu0 %1001
    %v1003 = vsel %vm412, %v985, 0.0
    %1004 = vadd.xlane.f32.xlu0 %v1003
    %v1005 = vpop.xlane.xlu0 %1004
    %v1006 = vsel %vm412, %v986, 0.0
    %1007 = vadd.xlane.f32.xlu0 %v1006
    %v1008 = vpop.xlane.xlu0 %1007
    %v1009 = vsel %vm412, %v987, 0.0
    %1010 = vadd.xlane.f32.xlu0 %v1009
    %v1011 = vpop.xlane.xlu0 %1010
    %v1012 = vld [vmem:[%s21] sm:$0x1]
    %v1014 = vlaneseq
    %v1015 = vshrl.u32 %v1014, 7
    %v1016 = vsub.s32 0, %v1015
    %v1017 = vrot.slane %v1012, %v1016
    %v1019 = vadd.f32 %v990, %v1017
    %v1020 = vadd.f32 %v993, %v1017
    %v1021 = vadd.f32 %v996, %v1017
    %v1022 = vadd.f32 %v999, %v1017
    %v1023 = vadd.f32 %v1002, %v1017
    %v1024 = vadd.f32 %v1005, %v1017
    %v1025 = vadd.f32 %v1008, %v1017
    %v1026 = vadd.f32 %v1011, %v1017
    %v1027 = vxor.u32 %v1019, 2147483648
    %v1028 = vxor.u32 %v1020, 2147483648
    %v1029 = vxor.u32 %v1021, 2147483648
    %v1030 = vxor.u32 %v1022, 2147483648
    %v1031 = vxor.u32 %v1023, 2147483648
    %v1032 = vxor.u32 %v1024, 2147483648
    %v1033 = vxor.u32 %v1025, 2147483648
    %v1034 = vxor.u32 %v1026, 2147483648
    %v1035 = vmul.f32 %v1027, 1.442695
    %v1036 = vpow.pop %v1035
    %v1037 = vmul.f32 %v1028, 1.442695
    %v1038 = vpow.pop %v1037
    %v1039 = vmul.f32 %v1029, 1.442695
    %v1040 = vpow.pop %v1039
    %v1041 = vmul.f32 %v1030, 1.442695
    %v1042 = vpow.pop %v1041
    %v1043 = vmul.f32 %v1031, 1.442695
    %v1044 = vpow.pop %v1043
    %v1045 = vmul.f32 %v1032, 1.442695
    %v1046 = vpow.pop %v1045
    %v1047 = vmul.f32 %v1033, 1.442695
    %v1048 = vpow.pop %v1047
    %v1049 = vmul.f32 %v1034, 1.442695
    %v1050 = vpow.pop %v1049
    %v1051 = vadd.f32 %v1036, 1.0
    %v1052 = vadd.f32 %v1038, 1.0
    %v1053 = vadd.f32 %v1040, 1.0
    %v1054 = vadd.f32 %v1042, 1.0
    %v1055 = vadd.f32 %v1044, 1.0
    %v1056 = vadd.f32 %v1046, 1.0
    %v1057 = vadd.f32 %v1048, 1.0
    %v1058 = vadd.f32 %v1050, 1.0
    %v1059 = vrcp.pop %v1051
    %v1060 = vmul.f32 1.0, %v1059
    %v1061 = vrcp.pop %v1052
    %v1062 = vmul.f32 1.0, %v1061
    %v1063 = vrcp.pop %v1053
    %v1064 = vmul.f32 1.0, %v1063
    %v1065 = vrcp.pop %v1054
    %v1066 = vmul.f32 1.0, %v1065
    %v1067 = vrcp.pop %v1055
    %v1068 = vmul.f32 1.0, %v1067
    %v1069 = vrcp.pop %v1056
    %v1070 = vmul.f32 1.0, %v1069
    %v1071 = vrcp.pop %v1057
    %v1072 = vmul.f32 1.0, %v1071
    %v1073 = vrcp.pop %v1058
    %v1074 = vmul.f32 1.0, %v1073
    %1076 = vset.pattern.permute.xlu0 0
    %1077 = vperm.xlu0 %1076, %v1060
    %v1078 = vpop.permute.xlu0 %1077
    %1081 = vset.pattern.permute.xlu0 0
    %1082 = vperm.xlu0 %1081, %v1062
    %v1083 = vpop.permute.xlu0 %1082
    %1086 = vset.pattern.permute.xlu0 0
    %1087 = vperm.xlu0 %1086, %v1064
    %v1088 = vpop.permute.xlu0 %1087
    %1091 = vset.pattern.permute.xlu0 0
    %1092 = vperm.xlu0 %1091, %v1066
    %v1093 = vpop.permute.xlu0 %1092
    %1096 = vset.pattern.permute.xlu0 0
    %1097 = vperm.xlu0 %1096, %v1068
    %v1098 = vpop.permute.xlu0 %1097
    %1101 = vset.pattern.permute.xlu0 0
    %1102 = vperm.xlu0 %1101, %v1070
    %v1103 = vpop.permute.xlu0 %1102
    %1106 = vset.pattern.permute.xlu0 0
    %1107 = vperm.xlu0 %1106, %v1072
    %v1108 = vpop.permute.xlu0 %1107
    %1111 = vset.pattern.permute.xlu0 0
    %1112 = vperm.xlu0 %1111, %v1074
    %v1113 = vpop.permute.xlu0 %1112
    %v1115 = vmul.f32 %v965, %v1078
    %v1116 = vmul.f32 %v966, %v1083
    %v1117 = vmul.f32 %v967, %v1088
    %v1118 = vmul.f32 %v968, %v1093
    %v1119 = vmul.f32 %v969, %v1098
    %v1120 = vmul.f32 %v970, %v1103
    %v1121 = vmul.f32 %v971, %v1108
    %v1122 = vmul.f32 %v972, %v1113
    %1124 = vset.pattern.permute.xlu0 0
    %1125 = vperm.xlu0 %1124, %v341
    %v1126 = vpop.permute.xlu0 %1125
    %1129 = vset.pattern.permute.xlu0 0
    %1130 = vperm.xlu0 %1129, %v342
    %v1131 = vpop.permute.xlu0 %1130
    %1134 = vset.pattern.permute.xlu0 0
    %1135 = vperm.xlu0 %1134, %v343
    %v1136 = vpop.permute.xlu0 %1135
    %1139 = vset.pattern.permute.xlu0 0
    %1140 = vperm.xlu0 %1139, %v344
    %v1141 = vpop.permute.xlu0 %1140
    %1144 = vset.pattern.permute.xlu0 0
    %1145 = vperm.xlu0 %1144, %v345
    %v1146 = vpop.permute.xlu0 %1145
    %1149 = vset.pattern.permute.xlu0 0
    %1150 = vperm.xlu0 %1149, %v346
    %v1151 = vpop.permute.xlu0 %1150
    %1154 = vset.pattern.permute.xlu0 0
    %1155 = vperm.xlu0 %1154, %v347
    %v1156 = vpop.permute.xlu0 %1155
    %1159 = vset.pattern.permute.xlu0 0
    %1160 = vperm.xlu0 %1159, %v348
    %v1161 = vpop.permute.xlu0 %1160
    %v1163 = vmul.f32 %v1115, %v1126
    %v1164 = vmul.f32 %v1116, %v1131
    %v1165 = vmul.f32 %v1117, %v1136
    %v1166 = vmul.f32 %v1118, %v1141
    %v1167 = vmul.f32 %v1119, %v1146
    %v1168 = vmul.f32 %v1120, %v1151
    %v1169 = vmul.f32 %v1121, %v1156
    %v1170 = vmul.f32 %v1122, %v1161
    %v1171 = vadd.f32 %v1163, %v1165
    %v1172 = vadd.f32 %v1164, %v1166
    %v1173 = vadd.f32 %v1171, %v1167
    %v1174 = vadd.f32 %v1172, %v1168
    %v1175 = vadd.f32 %v1173, %v1169
    %v1176 = vadd.f32 %v1174, %v1170
    %v1177 = vpack.c.bf16 %v1176, %v1175
    %1179 = vrot.lane.b32.xlu0 %v1177, 32
    %v1180 = vpop.permute.xlu0 %1179
    %v1182 = vsel %vm412, %v435, %v1180
    %v1183 = vld [vmem:[%s22] sm:$0xf]
    %v1184 = vld [vmem:[%s22 + $0x4] sm:$0xf]
    %v1185 = vld [vmem:[%s22 + $0x8] sm:$0xf]
    %v1186 = vld [vmem:[%s22 + $0xc] sm:$0xf]
    %v1187 = vld [vmem:[%s22 + $0x10] sm:$0xf]
    %v1188 = vld [vmem:[%s22 + $0x14] sm:$0xf]
    %v1189 = vld [vmem:[%s22 + $0x18] sm:$0xf]
    %v1190 = vld [vmem:[%s22 + $0x1c] sm:$0xf]
    %v1191 = vld [vmem:[%s23] sm:$0x1]
    %v1193 = vlaneseq
    %v1194 = vshrl.u32 %v1193, 7
    %v1195 = vsub.s32 0, %v1194
    %v1196 = vrot.slane %v1191, %v1195
    %v1206 = vunpack.c.l.b16 %v1183
    %v1207 = vunpack.c.l.b16 %v1184
    %v1208 = vunpack.c.l.b16 %v1185
    %v1209 = vunpack.c.l.b16 %v1186
    %v1210 = vunpack.c.l.b16 %v1187
    %v1211 = vunpack.c.l.b16 %v1188
    %v1212 = vunpack.c.l.b16 %v1189
    %v1213 = vunpack.c.l.b16 %v1190
    %v1214 = vpack.c.b16 %v1207, %v1206
    %v1215 = vpack.c.b16 %v1209, %v1208
    %v1216 = vpack.c.b16 %v1211, %v1210
    %v1217 = vpack.c.b16 %v1213, %v1212
    %v1222 = vsel %vm473, %v1182, 0
    %1224 = vmatprep.subr.bf16.mxu0 0
    %1225 = vmatpush1.bf16.msra.mxu0 %v1214
    %1226 = vmatprep.subr.bf16.mxu0 0
    %1227 = vmatpush1.bf16.msra.mxu0 %v1215
    %1228 = vmatprep.subr.bf16.mxu0 0
    %1229 = vmatpush1.bf16.msra.mxu0 %v1216
    %1230 = vmatprep.subr.bf16.mxu0 0
    %1231 = vmatpush1.bf16.msra.mxu0 %v1217
    %1232 = vmatprep.subr.bf16.mxu0 0
    %1233 = vmatpush1.bf16.msra.mxu0 0
    %1234 = vmatprep.subr.bf16.mxu0 0
    %1235 = vmatpush1.bf16.msra.mxu0 0
    %1236 = vmatprep.subr.bf16.mxu0 0
    %1237 = vmatpush1.bf16.msra.mxu0 0
    %1238 = vmatprep.subr.bf16.mxu0 0
    %1239 = vmatpush1.bf16.msra.mxu0 0
    %1240 = vmatprep.subr.bf16.mxu0 0
    %1241 = vmatpush1.bf16.msra.mxu0 0
    %1242 = vmatprep.subr.bf16.mxu0 0
    %1243 = vmatpush1.bf16.msra.mxu0 0
    %1244 = vmatprep.subr.bf16.mxu0 0
    %1245 = vmatpush1.bf16.msra.mxu0 0
    %1246 = vmatprep.subr.bf16.mxu0 0
    %1247 = vmatpush1.bf16.msra.mxu0 0
    %1248 = vmatprep.subr.bf16.mxu0 0
    %1249 = vmatpush1.bf16.msra.mxu0 0
    %1250 = vmatprep.subr.bf16.mxu0 0
    %1251 = vmatpush1.bf16.msra.mxu0 0
    %1252 = vmatprep.subr.bf16.mxu0 0
    %1253 = vmatpush1.bf16.msra.mxu0 0
    %1254 = vmatprep.subr.bf16.mxu0 0
    %1255 = vmatpush1.bf16.msra.mxu0 0
    %1256 = vmatprep.mubr.bf16.mxu0 0
    %1257 = vmatmul.mubr.bf16.gmra.mrb[0].mxu0 %v1222
    %v1258 = vpop.f32.mrb[0].mxu0
    %v1259 = vadd.f32 %v1196, %v1258
    %v1260 = vpop.f32.mrb[0].mxu0
    %v1261 = vpop.f32.mrb[0].mxu0
    %v1262 = vadd.f32 %v1196, %v1261
    %v1263 = vpop.f32.mrb[0].mxu0
    %1264 = vdwg.mxu0
    %v1265 = vld [vmem:[%s24] sm:$0x1]
    %v1266 = vld [vmem:[%s25] sm:$0x1]
    %v1267 = vsel %vm412, %v1259, 0.0
    %1268 = vadd.xlane.f32.xlu0 %v1267
    %v1269 = vpop.xlane.xlu0 %1268
    %v1270 = vsel %vm412, %v1262, 0.0
    %1271 = vadd.xlane.f32.xlu0 %v1270
    %v1272 = vpop.xlane.xlu0 %1271
    %v1273 = vmul.f32 %v1269, %v648
    %v1274 = vmul.f32 %v1272, %v648
    %v1275 = vsub.f32 %v1259, %v1273
    %v1276 = vsub.f32 %v1262, %v1274
    %v1277 = vmul.f32 %v1275, %v1275
    %v1278 = vmul.f32 %v1276, %v1276
    %v1279 = vsel %vm412, %v1277, 0.0
    %1280 = vadd.xlane.f32.xlu0 %v1279
    %v1281 = vpop.xlane.xlu0 %1280
    %v1282 = vsel %vm412, %v1278, 0.0
    %1283 = vadd.xlane.f32.xlu0 %v1282
    %v1284 = vpop.xlane.xlu0 %1283
    %v1285 = vmul.f32 %v1281, %v648
    %v1286 = vmul.f32 %v1284, %v648
    %v1287 = vadd.f32 %v1285, 1e-05
    %v1288 = vadd.f32 %v1286, 1e-05
    %v1289 = vrsqrt.pop %v1287
    %v1290 = vrsqrt.pop %v1288
    %v1291 = vmul.f32 %v1275, %v1289
    %v1292 = vmul.f32 %v1276, %v1290
    %v1294 = vlaneseq
    %v1295 = vshrl.u32 %v1294, 7
    %v1296 = vsub.s32 0, %v1295
    %v1297 = vrot.slane %v1265, %v1296
    %v1299 = vmul.f32 %v1291, %v1297
    %v1300 = vmul.f32 %v1292, %v1297
    %v1302 = vlaneseq
    %v1303 = vshrl.u32 %v1302, 7
    %v1304 = vsub.s32 0, %v1303
    %v1305 = vrot.slane %v1266, %v1304
    %v1307 = vadd.f32 %v1299, %v1305
    %v1308 = vadd.f32 %v1300, %v1305
    %v1309 = vxor.u32 %v1307, 2147483648
    %v1310 = vxor.u32 %v1308, 2147483648
    %v1311 = vmul.f32 %v1309, 1.442695
    %v1312 = vpow.pop %v1311
    %v1313 = vmul.f32 %v1310, 1.442695
    %v1314 = vpow.pop %v1313
    %v1315 = vadd.f32 %v1312, 1.0
    %v1316 = vadd.f32 %v1314, 1.0
    %v1317 = vrcp.pop %v1315
    %v1318 = vmul.f32 1.0, %v1317
    %v1319 = vrcp.pop %v1316
    %v1320 = vmul.f32 1.0, %v1319
    %v1321 = vmul.f32 %v1307, %v1318
    %v1322 = vmul.f32 %v1308, %v1320
    %v1323 = vpack.c.bf16 %v1322, %v1321
    %v1324 = vld [vmem:[%s26] sm:$0xf]
    %v1325 = vld [vmem:[%s26 + $0x4] sm:$0xf]
    %v1326 = vld [vmem:[%s26 + $0x8] sm:$0xf]
    %v1327 = vld [vmem:[%s26 + $0xc] sm:$0xf]
    %v1328 = vld [vmem:[%s27] sm:$0x1]
    %v1330 = vlaneseq
    %v1331 = vshrl.u32 %v1330, 7
    %v1332 = vsub.s32 0, %v1331
    %v1333 = vrot.slane %v1328, %v1332
    %v1339 = vunpack.c.l.b16 %v1324
    %v1340 = vunpack.c.l.b16 %v1325
    %v1341 = vunpack.c.l.b16 %v1326
    %v1342 = vunpack.c.l.b16 %v1327
    %v1343 = vpack.c.b16 %v1340, %v1339
    %v1344 = vpack.c.b16 %v1342, %v1341
    %v1348 = vsel %vm412, %v1323, 0
    %1350 = vmatprep.subr.bf16.mxu0 0
    %1351 = vmatpush1.bf16.msra.mxu0 %v1343
    %1352 = vmatprep.subr.bf16.mxu0 0
    %1353 = vmatpush1.bf16.msra.mxu0 %v1344
    %1354 = vmatprep.subr.bf16.mxu0 0
    %1355 = vmatpush1.bf16.msra.mxu0 0
    %1356 = vmatprep.subr.bf16.mxu0 0
    %1357 = vmatpush1.bf16.msra.mxu0 0
    %1358 = vmatprep.subr.bf16.mxu0 0
    %1359 = vmatpush1.bf16.msra.mxu0 0
    %1360 = vmatprep.subr.bf16.mxu0 0
    %1361 = vmatpush1.bf16.msra.mxu0 0
    %1362 = vmatprep.subr.bf16.mxu0 0
    %1363 = vmatpush1.bf16.msra.mxu0 0
    %1364 = vmatprep.subr.bf16.mxu0 0
    %1365 = vmatpush1.bf16.msra.mxu0 0
    %1366 = vmatprep.subr.bf16.mxu0 0
    %1367 = vmatpush1.bf16.msra.mxu0 0
    %1368 = vmatprep.subr.bf16.mxu0 0
    %1369 = vmatpush1.bf16.msra.mxu0 0
    %1370 = vmatprep.subr.bf16.mxu0 0
    %1371 = vmatpush1.bf16.msra.mxu0 0
    %1372 = vmatprep.subr.bf16.mxu0 0
    %1373 = vmatpush1.bf16.msra.mxu0 0
    %1374 = vmatprep.subr.bf16.mxu0 0
    %1375 = vmatpush1.bf16.msra.mxu0 0
    %1376 = vmatprep.subr.bf16.mxu0 0
    %1377 = vmatpush1.bf16.msra.mxu0 0
    %1378 = vmatprep.subr.bf16.mxu0 0
    %1379 = vmatpush1.bf16.msra.mxu0 0
    %1380 = vmatprep.subr.bf16.mxu0 0
    %1381 = vmatpush1.bf16.msra.mxu0 0
    %1382 = vmatprep.mubr.bf16.mxu0 0
    %1383 = vmatmul.mubr.bf16.gmra.mrb[0].mxu0 %v1348
    %v1384 = vpop.f32.mrb[0].mxu0
    %v1385 = vadd.f32 %v1333, %v1384
    %v1386 = vpop.f32.mrb[0].mxu0
    %v1387 = vpop.f32.mrb[0].mxu0
    %v1388 = vadd.f32 %v1333, %v1387
    %v1389 = vpop.f32.mrb[0].mxu0
    %1390 = vdwg.mxu0
    %v1391 = vadd.f32 %v406, %v1385
    %v1392 = vadd.f32 %v409, %v1388
    %1393 = vst.msk [vmem:[#allocation2] sm:$0xff] %vm412, %v1391
    %1394 = vst.msk [vmem:[#allocation2 + $0x8] sm:$0xff] %vm412, %v1392
    loop: start=0, step=1, limit=64
    $region125: #{classifier_forward.1} parent=1 // loop_pre_header
      _
    $region126: #{classifier_forward.1} parent=1 // loop_header
      %s1396 = sphi 0, %s1400
      %p1397 = scmp.ge.s32.totalorder %s1396, 64
    $region127: #{classifier_forward.1} parent=1 // loop_header_branch
      %1399 = sbr.rel (%p1397) target = $region131
    $region128: #{classifier_forward.1} parent=1 // loop_body
      %s1401 = sld [smem:[#allocation5 + %s1396]]
      %s1402 = scalar_lea.vmem [#allocation2], %s1401
      %v1403 = vld [vmem:[%s1402] sm:$0x1]
      %s1404 = scalar_lea.vmem [#allocation3], %s1396
      %vm1405 = vcmask 253952
      %1406 = vst.msk [vmem:[%s1404] sm:$0x1] %vm1405, %v1403
    $region129: #{classifier_forward.1} parent=1 // loop_footer
      %s1400 = sadd.s32 1, %s1396
    $region130: #{classifier_forward.1} parent=1 // loop_footer_branch
      %1395 = sbr.rel target = $region126
    $region131: #{classifier_forward.1} parent=1 // loop_exit
      _
    %v1407 = vld [vmem:[#allocation3] sm:$0xff]
    %v1408 = vld [vmem:[#allocation3 + $0x8] sm:$0xff]
    %v1409 = vld [vmem:[#allocation3 + $0x10] sm:$0xff]
    %v1410 = vld [vmem:[#allocation3 + $0x18] sm:$0xff]
    %v1411 = vld [vmem:[#allocation3 + $0x20] sm:$0xff]
    %v1412 = vld [vmem:[#allocation3 + $0x28] sm:$0xff]
    %v1413 = vld [vmem:[#allocation3 + $0x30] sm:$0xff]
    %v1414 = vld [vmem:[#allocation3 + $0x38] sm:$0xff]
    %v1415 = vpack.c.bf16 %v1392, %v1391
    %v1416 = vpack.c.bf16 %v1408, %v1407
    %v1417 = vpack.c.bf16 %v1410, %v1409
    %v1418 = vpack.c.bf16 %v1412, %v1411
    %v1419 = vpack.c.bf16 %v1414, %v1413
    %1424 = vrot.lane.b32.xlu0 %v1416, 32
    %v1425 = vpop.permute.xlu0 %1424
    %1426 = vrot.lane.b32.xlu0 %v1417, 32
    %v1427 = vpop.permute.xlu0 %1426
    %1428 = vrot.lane.b32.xlu0 %v1418, 32
    %v1429 = vpop.permute.xlu0 %1428
    %1430 = vrot.lane.b32.xlu0 %v1419, 32
    %v1431 = vpop.permute.xlu0 %1430
    %v1434 = vsel %vm412, %v1415, %v1425
    %v1436 = vsel %vm412, %v1415, %v1427
    %v1438 = vsel %vm412, %v1415, %v1429
    %v1440 = vsel %vm412, %v1415, %v1431
    %v1441 = vsel %vm473, %v1434, %v457
    %v1443 = vsel %vm473, %v1436, %v459
    %v1445 = vsel %vm473, %v1438, %v461
    %v1447 = vsel %vm473, %v1440, %v463
    %s1449 = scalar_lea.vmem %s14, 64
    %v1450 = vld [vmem:[%s1449] sm:$0xf]
    %v1451 = vld [vmem:[%s1449 + $0x4] sm:$0xf]
    %v1452 = vld [vmem:[%s1449 + $0x8] sm:$0xf]
    %v1453 = vld [vmem:[%s1449 + $0xc] sm:$0xf]
    %v1454 = vld [vmem:[%s1449 + $0x10] sm:$0xf]
    %v1455 = vld [vmem:[%s1449 + $0x14] sm:$0xf]
    %v1456 = vld [vmem:[%s1449 + $0x18] sm:$0xf]
    %v1457 = vld [vmem:[%s1449 + $0x1c] sm:$0xf]
    %v1458 = vld [vmem:[%s1449 + $0x20] sm:$0xf]
    %v1459 = vld [vmem:[%s1449 + $0x24] sm:$0xf]
    %v1460 = vld [vmem:[%s1449 + $0x28] sm:$0xf]
    %v1461 = vld [vmem:[%s1449 + $0x2c] sm:$0xf]
    %v1462 = vld [vmem:[%s1449 + $0x30] sm:$0xf]
    %v1463 = vld [vmem:[%s1449 + $0x34] sm:$0xf]
    %v1464 = vld [vmem:[%s1449 + $0x38] sm:$0xf]
    %v1465 = vld [vmem:[%s1449 + $0x3c] sm:$0xf]
    %s1466 = scalar_lea.vmem %s15, 1
    %v1467 = vld [vmem:[%s1466] sm:$0x1]
    %v1469 = vlaneseq
    %v1470 = vshrl.u32 %v1469, 7
    %v1471 = vsub.s32 0, %v1470
    %v1472 = vrot.slane %v1467, %v1471
    %v1490 = vunpack.c.l.b16 %v1450
    %v1491 = vunpack.c.l.b16 %v1451
    %v1492 = vunpack.c.l.b16 %v1452
    %v1493 = vunpack.c.l.b16 %v1453
    %v1494 = vunpack.c.l.b16 %v1454
    %v1495 = vunpack.c.l.b16 %v1455
    %v1496 = vunpack.c.l.b16 %v1456
    %v1497 = vunpack.c.l.b16 %v1457
    %v1498 = vunpack.c.l.b16 %v1458
    %v1499 = vunpack.c.l.b16 %v1459
    %v1500 = vunpack.c.l.b16 %v1460
    %v1501 = vunpack.c.l.b16 %v1461
    %v1502 = vunpack.c.l.b16 %v1462
    %v1503 = vunpack.c.l.b16 %v1463
    %v1504 = vunpack.c.l.b16 %v1464
    %v1505 = vunpack.c.l.b16 %v1465
    %v1506 = vpack.c.b16 %v1491, %v1490
    %v1507 = vpack.c.b16 %v1493, %v1492
    %v1508 = vpack.c.b16 %v1495, %v1494
    %v1509 = vpack.c.b16 %v1497, %v1496
    %v1510 = vpack.c.b16 %v1499, %v1498
    %v1511 = vpack.c.b16 %v1501, %v1500
    %v1512 = vpack.c.b16 %v1503, %v1502
    %v1513 = vpack.c.b16 %v1505, %v1504
    %1522 = vmatprep.subr.bf16.mxu0 0
    %1523 = vmatpush1.bf16.msra.mxu0 %v1506
    %1524 = vmatprep.subr.bf16.mxu0 0
    %1525 = vmatpush1.bf16.msra.mxu0 %v1507
    %1526 = vmatprep.subr.bf16.mxu0 0
    %1527 = vmatpush1.bf16.msra.mxu0 %v1508
    %1528 = vmatprep.subr.bf16.mxu0 0
    %1529 = vmatpush1.bf16.msra.mxu0 %v1509
    %1530 = vmatprep.subr.bf16.mxu0 0
    %1531 = vmatpush1.bf16.msra.mxu0 %v1510
    %1532 = vmatprep.subr.bf16.mxu0 0
    %1533 = vmatpush1.bf16.msra.mxu0 %v1511
    %1534 = vmatprep.subr.bf16.mxu0 0
    %1535 = vmatpush1.bf16.msra.mxu0 %v1512
    %1536 = vmatprep.subr.bf16.mxu0 0
    %1537 = vmatpush1.bf16.msra.mxu0 %v1513
    %1538 = vmatprep.subr.bf16.mxu0 0
    %1539 = vmatpush1.bf16.msra.mxu0 0
    %1540 = vmatprep.subr.bf16.mxu0 0
    %1541 = vmatpush1.bf16.msra.mxu0 0
    %1542 = vmatprep.subr.bf16.mxu0 0
    %1543 = vmatpush1.bf16.msra.mxu0 0
    %1544 = vmatprep.subr.bf16.mxu0 0
    %1545 = vmatpush1.bf16.msra.mxu0 0
    %1546 = vmatprep.subr.bf16.mxu0 0
    %1547 = vmatpush1.bf16.msra.mxu0 0
    %1548 = vmatprep.subr.bf16.mxu0 0
    %1549 = vmatpush1.bf16.msra.mxu0 0
    %1550 = vmatprep.subr.bf16.mxu0 0
    %1551 = vmatpush1.bf16.msra.mxu0 0
    %1552 = vmatprep.subr.bf16.mxu0 0
    %1553 = vmatpush1.bf16.msra.mxu0 0
    %1554 = vmatprep.mubr.bf16.mxu0 0
    %1555 = vmatmul.mubr.bf16.gmra.mrb[0].mxu0 %v1441
    %v1556 = vpop.f32.mrb[0].mxu0
    %v1557 = vadd.f32 %v1472, %v1556
    %v1558 = vpop.f32.mrb[0].mxu0
    %v1559 = vpop.f32.mrb[0].mxu0
    %v1560 = vadd.f32 %v1472, %v1559
    %v1561 = vpop.f32.mrb[0].mxu0
    %1562 = vmatprep.mubr.bf16.mxu0 0
    %1563 = vmatmul.mubr.bf16.gmra.mrb[0].mxu0 %v1443
    %v1564 = vpop.f32.mrb[0].mxu0
    %v1565 = vadd.f32 %v1472, %v1564
    %v1566 = vpop.f32.mrb[0].mxu0
    %v1567 = vpop.f32.mrb[0].mxu0
    %v1568 = vadd.f32 %v1472, %v1567
    %v1569 = vpop.f32.mrb[0].mxu0
    %1570 = vmatprep.mubr.bf16.mxu0 0
    %1571 = vmatmul.mubr.bf16.gmra.mrb[0].mxu0 %v1445
    %v1572 = vpop.f32.mrb[0].mxu0
    %v1573 = vadd.f32 %v1472, %v1572
    %v1574 = vpop.f32.mrb[0].mxu0
    %v1575 = vpop.f32.mrb[0].mxu0
    %v1576 = vadd.f32 %v1472, %v1575
    %v1577 = vpop.f32.mrb[0].mxu0
    %1578 = vmatprep.mubr.bf16.mxu0 0
    %1579 = vmatmul.mubr.bf16.gmra.mrb[0].mxu0 %v1447
    %v1580 = vpop.f32.mrb[0].mxu0
    %v1581 = vadd.f32 %v1472, %v1580
    %v1582 = vpop.f32.mrb[0].mxu0
    %v1583 = vpop.f32.mrb[0].mxu0
    %v1584 = vadd.f32 %v1472, %v1583
    %v1585 = vpop.f32.mrb[0].mxu0
    %1586 = vdwg.mxu0
    %s1587 = scalar_lea.vmem %s16, 1
    %v1588 = vld [vmem:[%s1587] sm:$0x1]
    %s1589 = scalar_lea.vmem %s17, 1
    %v1590 = vld [vmem:[%s1589] sm:$0x1]
    %v1591 = vsel %vm412, %v1557, 0.0
    %1592 = vadd.xlane.f32.xlu0 %v1591
    %v1593 = vpop.xlane.xlu0 %1592
    %v1594 = vsel %vm412, %v1560, 0.0
    %1595 = vadd.xlane.f32.xlu0 %v1594
    %v1596 = vpop.xlane.xlu0 %1595
    %v1597 = vsel %vm412, %v1565, 0.0
    %1598 = vadd.xlane.f32.xlu0 %v1597
    %v1599 = vpop.xlane.xlu0 %1598
    %v1600 = vsel %vm412, %v1568, 0.0
    %1601 = vadd.xlane.f32.xlu0 %v1600
    %v1602 = vpop.xlane.xlu0 %1601
    %v1603 = vsel %vm412, %v1573, 0.0
    %1604 = vadd.xlane.f32.xlu0 %v1603
    %v1605 = vpop.xlane.xlu0 %1604
    %v1606 = vsel %vm412, %v1576, 0.0
    %1607 = vadd.xlane.f32.xlu0 %v1606
    %v1608 = vpop.xlane.xlu0 %1607
    %v1609 = vsel %vm412, %v1581, 0.0
    %1610 = vadd.xlane.f32.xlu0 %v1609
    %v1611 = vpop.xlane.xlu0 %1610
    %v1612 = vsel %vm412, %v1584, 0.0
    %1613 = vadd.xlane.f32.xlu0 %v1612
    %v1614 = vpop.xlane.xlu0 %1613
    %v1615 = vmul.f32 %v1593, %v648
    %v1616 = vmul.f32 %v1596, %v648
    %v1617 = vmul.f32 %v1599, %v648
    %v1618 = vmul.f32 %v1602, %v648
    %v1619 = vmul.f32 %v1605, %v648
    %v1620 = vmul.f32 %v1608, %v648
    %v1621 = vmul.f32 %v1611, %v648
    %v1622 = vmul.f32 %v1614, %v648
    %v1623 = vsub.f32 %v1557, %v1615
    %v1624 = vsub.f32 %v1560, %v1616
    %v1625 = vsub.f32 %v1565, %v1617
    %v1626 = vsub.f32 %v1568, %v1618
    %v1627 = vsub.f32 %v1573, %v1619
    %v1628 = vsub.f32 %v1576, %v1620
    %v1629 = vsub.f32 %v1581, %v1621
    %v1630 = vsub.f32 %v1584, %v1622
    %v1631 = vmul.f32 %v1623, %v1623
    %v1632 = vmul.f32 %v1624, %v1624
    %v1633 = vmul.f32 %v1625, %v1625
    %v1634 = vmul.f32 %v1626, %v1626
    %v1635 = vmul.f32 %v1627, %v1627
    %v1636 = vmul.f32 %v1628, %v1628
    %v1637 = vmul.f32 %v1629, %v1629
    %v1638 = vmul.f32 %v1630, %v1630
    %v1639 = vsel %vm412, %v1631, 0.0
    %1640 = vadd.xlane.f32.xlu0 %v1639
    %v1641 = vpop.xlane.xlu0 %1640
    %v1642 = vsel %vm412, %v1632, 0.0
    %1643 = vadd.xlane.f32.xlu0 %v1642
    %v1644 = vpop.xlane.xlu0 %1643
    %v1645 = vsel %vm412, %v1633, 0.0
    %1646 = vadd.xlane.f32.xlu0 %v1645
    %v1647 = vpop.xlane.xlu0 %1646
    %v1648 = vsel %vm412, %v1634, 0.0
    %1649 = vadd.xlane.f32.xlu0 %v1648
    %v1650 = vpop.xlane.xlu0 %1649
    %v1651 = vsel %vm412, %v1635, 0.0
    %1652 = vadd.xlane.f32.xlu0 %v1651
    %v1653 = vpop.xlane.xlu0 %1652
    %v1654 = vsel %vm412, %v1636, 0.0
    %1655 = vadd.xlane.f32.xlu0 %v1654
    %v1656 = vpop.xlane.xlu0 %1655
    %v1657 = vsel %vm412, %v1637, 0.0
    %1658 = vadd.xlane.f32.xlu0 %v1657
    %v1659 = vpop.xlane.xlu0 %1658
    %v1660 = vsel %vm412, %v1638, 0.0
    %1661 = vadd.xlane.f32.xlu0 %v1660
    %v1662 = vpop.xlane.xlu0 %1661
    %v1663 = vmul.f32 %v1641, %v648
    %v1664 = vmul.f32 %v1644, %v648
    %v1665 = vmul.f32 %v1647, %v648
    %v1666 = vmul.f32 %v1650, %v648
    %v1667 = vmul.f32 %v1653, %v648
    %v1668 = vmul.f32 %v1656, %v648
    %v1669 = vmul.f32 %v1659, %v648
    %v1670 = vmul.f32 %v1662, %v648
    %v1671 = vadd.f32 %v1663, 1e-05
    %v1672 = vadd.f32 %v1664, 1e-05
    %v1673 = vadd.f32 %v1665, 1e-05
    %v1674 = vadd.f32 %v1666, 1e-05
    %v1675 = vadd.f32 %v1667, 1e-05
    %v1676 = vadd.f32 %v1668, 1e-05
    %v1677 = vadd.f32 %v1669, 1e-05
    %v1678 = vadd.f32 %v1670, 1e-05
    %v1679 = vrsqrt.pop %v1671
    %v1680 = vrsqrt.pop %v1672
    %v1681 = vrsqrt.pop %v1673
    %v1682 = vrsqrt.pop %v1674
    %v1683 = vrsqrt.pop %v1675
    %v1684 = vrsqrt.pop %v1676
    %v1685 = vrsqrt.pop %v1677
    %v1686 = vrsqrt.pop %v1678
    %v1687 = vmul.f32 %v1623, %v1679
    %v1688 = vmul.f32 %v1624, %v1680
    %v1689 = vmul.f32 %v1625, %v1681
    %v1690 = vmul.f32 %v1626, %v1682
    %v1691 = vmul.f32 %v1627, %v1683
    %v1692 = vmul.f32 %v1628, %v1684
    %v1693 = vmul.f32 %v1629, %v1685
    %v1694 = vmul.f32 %v1630, %v1686
    %v1696 = vlaneseq
    %v1697 = vshrl.u32 %v1696, 7
    %v1698 = vsub.s32 0, %v1697
    %v1699 = vrot.slane %v1588, %v1698
    %v1701 = vmul.f32 %v1687, %v1699
    %v1702 = vmul.f32 %v1688, %v1699
    %v1703 = vmul.f32 %v1689, %v1699
    %v1704 = vmul.f32 %v1690, %v1699
    %v1705 = vmul.f32 %v1691, %v1699
    %v1706 = vmul.f32 %v1692, %v1699
    %v1707 = vmul.f32 %v1693, %v1699
    %v1708 = vmul.f32 %v1694, %v1699
    %v1710 = vlaneseq
    %v1711 = vshrl.u32 %v1710, 7
    %v1712 = vsub.s32 0, %v1711
    %v1713 = vrot.slane %v1590, %v1712
    %v1715 = vadd.f32 %v1701, %v1713
    %v1716 = vadd.f32 %v1702, %v1713
    %v1717 = vadd.f32 %v1703, %v1713
    %v1718 = vadd.f32 %v1704, %v1713
    %v1719 = vadd.f32 %v1705, %v1713
    %v1720 = vadd.f32 %v1706, %v1713
    %v1721 = vadd.f32 %v1707, %v1713
    %v1722 = vadd.f32 %v1708, %v1713
    %v1723 = vxor.u32 %v1715, 2147483648
    %v1724 = vxor.u32 %v1716, 2147483648
    %v1725 = vxor.u32 %v1717, 2147483648
    %v1726 = vxor.u32 %v1718, 2147483648
    %v1727 = vxor.u32 %v1719, 2147483648
    %v1728 = vxor.u32 %v1720, 2147483648
    %v1729 = vxor.u32 %v1721, 2147483648
    %v1730 = vxor.u32 %v1722, 2147483648
    %v1731 = vmul.f32 %v1723, 1.442695
    %v1732 = vpow.pop %v1731
    %v1733 = vmul.f32 %v1724, 1.442695
    %v1734 = vpow.pop %v1733
    %v1735 = vmul.f32 %v1725, 1.442695
    %v1736 = vpow.pop %v1735
    %v1737 = vmul.f32 %v1726, 1.442695
    %v1738 = vpow.pop %v1737
    %v1739 = vmul.f32 %v1727, 1.442695
    %v1740 = vpow.pop %v1739
    %v1741 = vmul.f32 %v1728, 1.442695
    %v1742 = vpow.pop %v1741
    %v1743 = vmul.f32 %v1729, 1.442695
    %v1744 = vpow.pop %v1743
    %v1745 = vmul.f32 %v1730, 1.442695
    %v1746 = vpow.pop %v1745
    %v1747 = vadd.f32 %v1732, 1.0
    %v1748 = vadd.f32 %v1734, 1.0
    %v1749 = vadd.f32 %v1736, 1.0
    %v1750 = vadd.f32 %v1738, 1.0
    %v1751 = vadd.f32 %v1740, 1.0
    %v1752 = vadd.f32 %v1742, 1.0
    %v1753 = vadd.f32 %v1744, 1.0
    %v1754 = vadd.f32 %v1746, 1.0
    %v1755 = vrcp.pop %v1747
    %v1756 = vmul.f32 1.0, %v1755
    %v1757 = vrcp.pop %v1748
    %v1758 = vmul.f32 1.0, %v1757
    %v1759 = vrcp.pop %v1749
    %v1760 = vmul.f32 1.0, %v1759
    %v1761 = vrcp.pop %v1750
    %v1762 = vmul.f32 1.0, %v1761
    %v1763 = vrcp.pop %v1751
    %v1764 = vmul.f32 1.0, %v1763
    %v1765 = vrcp.pop %v1752
    %v1766 = vmul.f32 1.0, %v1765
    %v1767 = vrcp.pop %v1753
    %v1768 = vmul.f32 1.0, %v1767
    %v1769 = vrcp.pop %v1754
    %v1770 = vmul.f32 1.0, %v1769
    %v1771 = vmul.f32 %v1715, %v1756
    %v1772 = vmul.f32 %v1716, %v1758
    %v1773 = vmul.f32 %v1717, %v1760
    %v1774 = vmul.f32 %v1718, %v1762
    %v1775 = vmul.f32 %v1719, %v1764
    %v1776 = vmul.f32 %v1720, %v1766
    %v1777 = vmul.f32 %v1721, %v1768
    %v1778 = vmul.f32 %v1722, %v1770
    %v1779 = vpack.c.bf16 %v1772, %v1771
    %v1780 = vpack.c.bf16 %v1774, %v1773
    %v1781 = vpack.c.bf16 %v1776, %v1775
    %v1782 = vpack.c.bf16 %v1778, %v1777
    %s1783 = scalar_lea.vmem %s18, 16
    %v1784 = vld [vmem:[%s1783] sm:$0xf]
    %v1785 = vld [vmem:[%s1783 + $0x4] sm:$0xf]
    %v1786 = vld [vmem:[%s1783 + $0x8] sm:$0xf]
    %v1787 = vld [vmem:[%s1783 + $0xc] sm:$0xf]
    %s1788 = scalar_lea.vmem %s19, 1
    %v1789 = vld [vmem:[%s1788] sm:$0x1]
    %v1791 = vlaneseq
    %v1792 = vshrl.u32 %v1791, 7
    %v1793 = vsub.s32 0, %v1792
    %v1794 = vrot.slane %v1789, %v1793
    %v1800 = vunpack.c.l.b16 %v1784
    %v1801 = vunpack.c.l.b16 %v1785
    %v1802 = vunpack.c.l.b16 %v1786
    %v1803 = vunpack.c.l.b16 %v1787
    %v1804 = vpack.c.b16 %v1801, %v1800
    %v1805 = vpack.c.b16 %v1803, %v1802
    %v1809 = vsel %vm412, %v1779, 0
    %v1812 = vsel %vm412, %v1780, 0
    %v1815 = vsel %vm412, %v1781, 0
    %v1818 = vsel %vm412, %v1782, 0
    %1820 = vmatprep.subr.bf16.mxu0 0
    %1821 = vmatpush1.bf16.msra.mxu0 %v1804
    %1822 = vmatprep.subr.bf16.mxu0 0
    %1823 = vmatpush1.bf16.msra.mxu0 %v1805
    %1824 = vmatprep.subr.bf16.mxu0 0
    %1825 = vmatpush1.bf16.msra.mxu0 0
    %1826 = vmatprep.subr.bf16.mxu0 0
    %1827 = vmatpush1.bf16.msra.mxu0 0
    %1828 = vmatprep.subr.bf16.mxu0 0
    %1829 = vmatpush1.bf16.msra.mxu0 0
    %1830 = vmatprep.subr.bf16.mxu0 0
    %1831 = vmatpush1.bf16.msra.mxu0 0
    %1832 = vmatprep.subr.bf16.mxu0 0
    %1833 = vmatpush1.bf16.msra.mxu0 0
    %1834 = vmatprep.subr.bf16.mxu0 0
    %1835 = vmatpush1.bf16.msra.mxu0 0
    %1836 = vmatprep.subr.bf16.mxu0 0
    %1837 = vmatpush1.bf16.msra.mxu0 0
    %1838 = vmatprep.subr.bf16.mxu0 0
    %1839 = vmatpush1.bf16.msra.mxu0 0
    %1840 = vmatprep.subr.bf16.mxu0 0
    %1841 = vmatpush1.bf16.msra.mxu0 0
    %1842 = vmatprep.subr.bf16.mxu0 0
    %1843 = vmatpush1.bf16.msra.mxu0 0
    %1844 = vmatprep.subr.bf16.mxu0 0
    %1845 = vmatpush1.bf16.msra.mxu0 0
    %1846 = vmatprep.subr.bf16.mxu0 0
    %1847 = vmatpush1.bf16.msra.mxu0 0
    %1848 = vmatprep.subr.bf16.mxu0 0
    %1849 = vmatpush1.bf16.msra.mxu0 0
    %1850 = vmatprep.subr.bf16.mxu0 0
    %1851 = vmatpush1.bf16.msra.mxu0 0
    %1852 = vmatprep.mubr.bf16.mxu0 0
    %1853 = vmatmul.mubr.bf16.gmra.mrb[0].mxu0 %v1809
    %v1854 = vpop.f32.mrb[0].mxu0
    %v1855 = vadd.f32 %v1794, %v1854
    %v1856 = vpop.f32.mrb[0].mxu0
    %v1857 = vpop.f32.mrb[0].mxu0
    %v1858 = vadd.f32 %v1794, %v1857
    %v1859 = vpop.f32.mrb[0].mxu0
    %1860 = vmatprep.mubr.bf16.mxu0 0
    %1861 = vmatmul.mubr.bf16.gmra.mrb[0].mxu0 %v1812
    %v1862 = vpop.f32.mrb[0].mxu0
    %v1863 = vadd.f32 %v1794, %v1862
    %v1864 = vpop.f32.mrb[0].mxu0
    %v1865 = vpop.f32.mrb[0].mxu0
    %v1866 = vadd.f32 %v1794, %v1865
    %v1867 = vpop.f32.mrb[0].mxu0
    %1868 = vmatprep.mubr.bf16.mxu0 0
    %1869 = vmatmul.mubr.bf16.gmra.mrb[0].mxu0 %v1815
    %v1870 = vpop.f32.mrb[0].mxu0
    %v1871 = vadd.f32 %v1794, %v1870
    %v1872 = vpop.f32.mrb[0].mxu0
    %v1873 = vpop.f32.mrb[0].mxu0
    %v1874 = vadd.f32 %v1794, %v1873
    %v1875 = vpop.f32.mrb[0].mxu0
    %1876 = vmatprep.mubr.bf16.mxu0 0
    %1877 = vmatmul.mubr.bf16.gmra.mrb[0].mxu0 %v1818
    %v1878 = vpop.f32.mrb[0].mxu0
    %v1879 = vadd.f32 %v1794, %v1878
    %v1880 = vpop.f32.mrb[0].mxu0
    %v1881 = vpop.f32.mrb[0].mxu0
    %v1882 = vadd.f32 %v1794, %v1881
    %v1883 = vpop.f32.mrb[0].mxu0
    %1884 = vdwg.mxu0
    %v1885 = vxor.u32 %v1855, 2147483648
    %v1886 = vxor.u32 %v1858, 2147483648
    %v1887 = vxor.u32 %v1863, 2147483648
    %v1888 = vxor.u32 %v1866, 2147483648
    %v1889 = vxor.u32 %v1871, 2147483648
    %v1890 = vxor.u32 %v1874, 2147483648
    %v1891 = vxor.u32 %v1879, 2147483648
    %v1892 = vxor.u32 %v1882, 2147483648
    %v1893 = vmul.f32 %v1885, 1.442695
    %v1894 = vpow.pop %v1893
    %v1895 = vmul.f32 %v1886, 1.442695
    %v1896 = vpow.pop %v1895
    %v1897 = vmul.f32 %v1887, 1.442695
    %v1898 = vpow.pop %v1897
    %v1899 = vmul.f32 %v1888, 1.442695
    %v1900 = vpow.pop %v1899
    %v1901 = vmul.f32 %v1889, 1.442695
    %v1902 = vpow.pop %v1901
    %v1903 = vmul.f32 %v1890, 1.442695
    %v1904 = vpow.pop %v1903
    %v1905 = vmul.f32 %v1891, 1.442695
    %v1906 = vpow.pop %v1905
    %v1907 = vmul.f32 %v1892, 1.442695
    %v1908 = vpow.pop %v1907
    %v1909 = vadd.f32 %v1894, 1.0
    %v1910 = vadd.f32 %v1896, 1.0
    %v1911 = vadd.f32 %v1898, 1.0
    %v1912 = vadd.f32 %v1900, 1.0
    %v1913 = vadd.f32 %v1902, 1.0
    %v1914 = vadd.f32 %v1904, 1.0
    %v1915 = vadd.f32 %v1906, 1.0
    %v1916 = vadd.f32 %v1908, 1.0
    %v1917 = vrcp.pop %v1909
    %v1918 = vmul.f32 1.0, %v1917
    %v1919 = vrcp.pop %v1910
    %v1920 = vmul.f32 1.0, %v1919
    %v1921 = vrcp.pop %v1911
    %v1922 = vmul.f32 1.0, %v1921
    %v1923 = vrcp.pop %v1912
    %v1924 = vmul.f32 1.0, %v1923
    %v1925 = vrcp.pop %v1913
    %v1926 = vmul.f32 1.0, %v1925
    %v1927 = vrcp.pop %v1914
    %v1928 = vmul.f32 1.0, %v1927
    %v1929 = vrcp.pop %v1915
    %v1930 = vmul.f32 1.0, %v1929
    %v1931 = vrcp.pop %v1916
    %v1932 = vmul.f32 1.0, %v1931
    %v1933 = vmul.f32 %v1855, %v1918
    %v1934 = vmul.f32 %v1858, %v1920
    %v1935 = vmul.f32 %v1863, %v1922
    %v1936 = vmul.f32 %v1866, %v1924
    %v1937 = vmul.f32 %v1871, %v1926
    %v1938 = vmul.f32 %v1874, %v1928
    %v1939 = vmul.f32 %v1879, %v1930
    %v1940 = vmul.f32 %v1882, %v1932
    %s1941 = scalar_lea.vmem %s20, 1
    %v1942 = vld [vmem:[%s1941] sm:$0x1]
    %v1944 = vlaneseq
    %v1945 = vshrl.u32 %v1944, 7
    %v1946 = vsub.s32 0, %v1945
    %v1947 = vrot.slane %v1942, %v1946
    %v1949 = vmul.f32 %v1933, %v1947
    %v1950 = vmul.f32 %v1934, %v1947
    %v1951 = vmul.f32 %v1935, %v1947
    %v1952 = vmul.f32 %v1936, %v1947
    %v1953 = vmul.f32 %v1937, %v1947
    %v1954 = vmul.f32 %v1938, %v1947
    %v1955 = vmul.f32 %v1939, %v1947
    %v1956 = vmul.f32 %v1940, %v1947
    %v1957 = vsel %vm412, %v1949, 0.0
    %1958 = vadd.xlane.f32.xlu0 %v1957
    %v1959 = vpop.xlane.xlu0 %1958
    %v1960 = vsel %vm412, %v1950, 0.0
    %1961 = vadd.xlane.f32.xlu0 %v1960
    %v1962 = vpop.xlane.xlu0 %1961
    %v1963 = vsel %vm412, %v1951, 0.0
    %1964 = vadd.xlane.f32.xlu0 %v1963
    %v1965 = vpop.xlane.xlu0 %1964
    %v1966 = vsel %vm412, %v1952, 0.0
    %1967 = vadd.xlane.f32.xlu0 %v1966
    %v1968 = vpop.xlane.xlu0 %1967
    %v1969 = vsel %vm412, %v1953, 0.0
    %1970 = vadd.xlane.f32.xlu0 %v1969
    %v1971 = vpop.xlane.xlu0 %1970
    %v1972 = vsel %vm412, %v1954, 0.0
    %1973 = vadd.xlane.f32.xlu0 %v1972
    %v1974 = vpop.xlane.xlu0 %1973
    %v1975 = vsel %vm412, %v1955, 0.0
    %1976 = vadd.xlane.f32.xlu0 %v1975
    %v1977 = vpop.xlane.xlu0 %1976
    %v1978 = vsel %vm412, %v1956, 0.0
    %1979 = vadd.xlane.f32.xlu0 %v1978
    %v1980 = vpop.xlane.xlu0 %1979
    %s1981 = scalar_lea.vmem %s21, 1
    %v1982 = vld [vmem:[%s1981] sm:$0x1]
    %v1984 = vlaneseq
    %v1985 = vshrl.u32 %v1984, 7
    %v1986 = vsub.s32 0, %v1985
    %v1987 = vrot.slane %v1982, %v1986
    %v1989 = vadd.f32 %v1959, %v1987
    %v1990 = vadd.f32 %v1962, %v1987
    %v1991 = vadd.f32 %v1965, %v1987
    %v1992 = vadd.f32 %v1968, %v1987
    %v1993 = vadd.f32 %v1971, %v1987
    %v1994 = vadd.f32 %v1974, %v1987
    %v1995 = vadd.f32 %v1977, %v1987
    %v1996 = vadd.f32 %v1980, %v1987
    %v1997 = vxor.u32 %v1989, 2147483648
    %v1998 = vxor.u32 %v1990, 2147483648
    %v1999 = vxor.u32 %v1991, 2147483648
    %v2000 = vxor.u32 %v1992, 2147483648
    %v2001 = vxor.u32 %v1993, 2147483648
    %v2002 = vxor.u32 %v1994, 2147483648
    %v2003 = vxor.u32 %v1995, 2147483648
    %v2004 = vxor.u32 %v1996, 2147483648
    %v2005 = vmul.f32 %v1997, 1.442695
    %v2006 = vpow.pop %v2005
    %v2007 = vmul.f32 %v1998, 1.442695
    %v2008 = vpow.pop %v2007
    %v2009 = vmul.f32 %v1999, 1.442695
    %v2010 = vpow.pop %v2009
    %v2011 = vmul.f32 %v2000, 1.442695
    %v2012 = vpow.pop %v2011
    %v2013 = vmul.f32 %v2001, 1.442695
    %v2014 = vpow.pop %v2013
    %v2015 = vmul.f32 %v2002, 1.442695
    %v2016 = vpow.pop %v2015
    %v2017 = vmul.f32 %v2003, 1.442695
    %v2018 = vpow.pop %v2017
    %v2019 = vmul.f32 %v2004, 1.442695
    %v2020 = vpow.pop %v2019
    %v2021 = vadd.f32 %v2006, 1.0
    %v2022 = vadd.f32 %v2008, 1.0
    %v2023 = vadd.f32 %v2010, 1.0
    %v2024 = vadd.f32 %v2012, 1.0
    %v2025 = vadd.f32 %v2014, 1.0
    %v2026 = vadd.f32 %v2016, 1.0
    %v2027 = vadd.f32 %v2018, 1.0
    %v2028 = vadd.f32 %v2020, 1.0
    %v2029 = vrcp.pop %v2021
    %v2030 = vmul.f32 1.0, %v2029
    %v2031 = vrcp.pop %v2022
    %v2032 = vmul.f32 1.0, %v2031
    %v2033 = vrcp.pop %v2023
    %v2034 = vmul.f32 1.0, %v2033
    %v2035 = vrcp.pop %v2024
    %v2036 = vmul.f32 1.0, %v2035
    %v2037 = vrcp.pop %v2025
    %v2038 = vmul.f32 1.0, %v2037
    %v2039 = vrcp.pop %v2026
    %v2040 = vmul.f32 1.0, %v2039
    %v2041 = vrcp.pop %v2027
    %v2042 = vmul.f32 1.0, %v2041
    %v2043 = vrcp.pop %v2028
    %v2044 = vmul.f32 1.0, %v2043
    %2046 = vset.pattern.permute.xlu0 0
    %2047 = vperm.xlu0 %2046, %v2030
    %v2048 = vpop.permute.xlu0 %2047
    %2051 = vset.pattern.permute.xlu0 0
    %2052 = vperm.xlu0 %2051, %v2032
    %v2053 = vpop.permute.xlu0 %2052
    %2056 = vset.pattern.permute.xlu0 0
    %2057 = vperm.xlu0 %2056, %v2034
    %v2058 = vpop.permute.xlu0 %2057
    %2061 = vset.pattern.permute.xlu0 0
    %2062 = vperm.xlu0 %2061, %v2036
    %v2063 = vpop.permute.xlu0 %2062
    %2066 = vset.pattern.permute.xlu0 0
    %2067 = vperm.xlu0 %2066, %v2038
    %v2068 = vpop.permute.xlu0 %2067
    %2071 = vset.pattern.permute.xlu0 0
    %2072 = vperm.xlu0 %2071, %v2040
    %v2073 = vpop.permute.xlu0 %2072
    %2076 = vset.pattern.permute.xlu0 0
    %2077 = vperm.xlu0 %2076, %v2042
    %v2078 = vpop.permute.xlu0 %2077
    %2081 = vset.pattern.permute.xlu0 0
    %2082 = vperm.xlu0 %2081, %v2044
    %v2083 = vpop.permute.xlu0 %2082
    %v2085 = vmul.f32 %v1933, %v2048
    %v2086 = vmul.f32 %v1934, %v2053
    %v2087 = vmul.f32 %v1935, %v2058
    %v2088 = vmul.f32 %v1936, %v2063
    %v2089 = vmul.f32 %v1937, %v2068
    %v2090 = vmul.f32 %v1938, %v2073
    %v2091 = vmul.f32 %v1939, %v2078
    %v2092 = vmul.f32 %v1940, %v2083
    %v2093 = vmul.f32 %v2085, %v1126
    %v2094 = vmul.f32 %v2086, %v1131
    %v2095 = vmul.f32 %v2087, %v1136
    %v2096 = vmul.f32 %v2088, %v1141
    %v2097 = vmul.f32 %v2089, %v1146
    %v2098 = vmul.f32 %v2090, %v1151
    %v2099 = vmul.f32 %v2091, %v1156
    %v2100 = vmul.f32 %v2092, %v1161
    %v2101 = vadd.f32 %v2093, %v2095
    %v2102 = vadd.f32 %v2094, %v2096
    %v2103 = vadd.f32 %v2101, %v2097
    %v2104 = vadd.f32 %v2102, %v2098
    %v2105 = vadd.f32 %v2103, %v2099
    %v2106 = vadd.f32 %v2104, %v2100
    %v2107 = vpack.c.bf16 %v2106, %v2105
    %2109 = vrot.lane.b32.xlu0 %v2107, 32
    %v2110 = vpop.permute.xlu0 %2109
    %v2112 = vsel %vm412, %v1415, %v2110
    %s2113 = scalar_lea.vmem %s22, 32
    %v2114 = vld [vmem:[%s2113] sm:$0xf]
    %v2115 = vld [vmem:[%s2113 + $0x4] sm:$0xf]
    %v2116 = vld [vmem:[%s2113 + $0x8] sm:$0xf]
    %v2117 = vld [vmem:[%s2113 + $0xc] sm:$0xf]
    %v2118 = vld [vmem:[%s2113 + $0x10] sm:$0xf]
    %v2119 = vld [vmem:[%s2113 + $0x14] sm:$0xf]
    %v2120 = vld [vmem:[%s2113 + $0x18] sm:$0xf]
    %v2121 = vld [vmem:[%s2113 + $0x1c] sm:$0xf]
    %s2122 = scalar_lea.vmem %s23, 1
    %v2123 = vld [vmem:[%s2122] sm:$0x1]
    %v2125 = vlaneseq
    %v2126 = vshrl.u32 %v2125, 7
    %v2127 = vsub.s32 0, %v2126
    %v2128 = vrot.slane %v2123, %v2127
    %v2138 = vunpack.c.l.b16 %v2114
    %v2139 = vunpack.c.l.b16 %v2115
    %v2140 = vunpack.c.l.b16 %v2116
    %v2141 = vunpack.c.l.b16 %v2117
    %v2142 = vunpack.c.l.b16 %v2118
    %v2143 = vunpack.c.l.b16 %v2119
    %v2144 = vunpack.c.l.b16 %v2120
    %v2145 = vunpack.c.l.b16 %v2121
    %v2146 = vpack.c.b16 %v2139, %v2138
    %v2147 = vpack.c.b16 %v2141, %v2140
    %v2148 = vpack.c.b16 %v2143, %v2142
    %v2149 = vpack.c.b16 %v2145, %v2144
    %v2154 = vsel %vm473, %v2112, 0
    %2156 = vmatprep.subr.bf16.mxu0 0
    %2157 = vmatpush1.bf16.msra.mxu0 %v2146
    %2158 = vmatprep.subr.bf16.mxu0 0
    %2159 = vmatpush1.bf16.msra.mxu0 %v2147
    %2160 = vmatprep.subr.bf16.mxu0 0
    %2161 = vmatpush1.bf16.msra.mxu0 %v2148
    %2162 = vmatprep.subr.bf16.mxu0 0
    %2163 = vmatpush1.bf16.msra.mxu0 %v2149
    %2164 = vmatprep.subr.bf16.mxu0 0
    %2165 = vmatpush1.bf16.msra.mxu0 0
    %2166 = vmatprep.subr.bf16.mxu0 0
    %2167 = vmatpush1.bf16.msra.mxu0 0
    %2168 = vmatprep.subr.bf16.mxu0 0
    %2169 = vmatpush1.bf16.msra.mxu0 0
    %2170 = vmatprep.subr.bf16.mxu0 0
    %2171 = vmatpush1.bf16.msra.mxu0 0
    %2172 = vmatprep.subr.bf16.mxu0 0
    %2173 = vmatpush1.bf16.msra.mxu0 0
    %2174 = vmatprep.subr.bf16.mxu0 0
    %2175 = vmatpush1.bf16.msra.mxu0 0
    %2176 = vmatprep.subr.bf16.mxu0 0
    %2177 = vmatpush1.bf16.msra.mxu0 0
    %2178 = vmatprep.subr.bf16.mxu0 0
    %2179 = vmatpush1.bf16.msra.mxu0 0
    %2180 = vmatprep.subr.bf16.mxu0 0
    %2181 = vmatpush1.bf16.msra.mxu0 0
    %2182 = vmatprep.subr.bf16.mxu0 0
    %2183 = vmatpush1.bf16.msra.mxu0 0
    %2184 = vmatprep.subr.bf16.mxu0 0
    %2185 = vmatpush1.bf16.msra.mxu0 0
    %2186 = vmatprep.subr.bf16.mxu0 0
    %2187 = vmatpush1.bf16.msra.mxu0 0
    %2188 = vmatprep.mubr.bf16.mxu0 0
    %2189 = vmatmul.mubr.bf16.gmra.mrb[0].mxu0 %v2154
    %v2190 = vpop.f32.mrb[0].mxu0
    %v2191 = vadd.f32 %v2128, %v2190
    %v2192 = vpop.f32.mrb[0].mxu0
    %v2193 = vpop.f32.mrb[0].mxu0
    %v2194 = vadd.f32 %v2128, %v2193
    %v2195 = vpop.f32.mrb[0].mxu0
    %2196 = vdwg.mxu0
    %s2197 = scalar_lea.vmem %s24, 1
    %v2198 = vld [vmem:[%s2197] sm:$0x1]
    %s2199 = scalar_lea.vmem %s25, 1
    %v2200 = vld [vmem:[%s2199] sm:$0x1]
    %v2201 = vsel %vm412, %v2191, 0.0
    %2202 = vadd.xlane.f32.xlu0 %v2201
    %v2203 = vpop.xlane.xlu0 %2202
    %v2204 = vsel %vm412, %v2194, 0.0
    %2205 = vadd.xlane.f32.xlu0 %v2204
    %v2206 = vpop.xlane.xlu0 %2205
    %v2207 = vmul.f32 %v2203, %v648
    %v2208 = vmul.f32 %v2206, %v648
    %v2209 = vsub.f32 %v2191, %v2207
    %v2210 = vsub.f32 %v2194, %v2208
    %v2211 = vmul.f32 %v2209, %v2209
    %v2212 = vmul.f32 %v2210, %v2210
    %v2213 = vsel %vm412, %v2211, 0.0
    %2214 = vadd.xlane.f32.xlu0 %v2213
    %v2215 = vpop.xlane.xlu0 %2214
    %v2216 = vsel %vm412, %v2212, 0.0
    %2217 = vadd.xlane.f32.xlu0 %v2216
    %v2218 = vpop.xlane.xlu0 %2217
    %v2219 = vmul.f32 %v2215, %v648
    %v2220 = vmul.f32 %v2218, %v648
    %v2221 = vadd.f32 %v2219, 1e-05
    %v2222 = vadd.f32 %v2220, 1e-05
    %v2223 = vrsqrt.pop %v2221
    %v2224 = vrsqrt.pop %v2222
    %v2225 = vmul.f32 %v2209, %v2223
    %v2226 = vmul.f32 %v2210, %v2224
    %v2228 = vlaneseq
    %v2229 = vshrl.u32 %v2228, 7
    %v2230 = vsub.s32 0, %v2229
    %v2231 = vrot.slane %v2198, %v2230
    %v2233 = vmul.f32 %v2225, %v2231
    %v2234 = vmul.f32 %v2226, %v2231
    %v2236 = vlaneseq
    %v2237 = vshrl.u32 %v2236, 7
    %v2238 = vsub.s32 0, %v2237
    %v2239 = vrot.slane %v2200, %v2238
    %v2241 = vadd.f32 %v2233, %v2239
    %v2242 = vadd.f32 %v2234, %v2239
    %v2243 = vxor.u32 %v2241, 2147483648
    %v2244 = vxor.u32 %v2242, 2147483648
    %v2245 = vmul.f32 %v2243, 1.442695
    %v2246 = vpow.pop %v2245
    %v2247 = vmul.f32 %v2244, 1.442695
    %v2248 = vpow.pop %v2247
    %v2249 = vadd.f32 %v2246, 1.0
    %v2250 = vadd.f32 %v2248, 1.0
    %v2251 = vrcp.pop %v2249
    %v2252 = vmul.f32 1.0, %v2251
    %v2253 = vrcp.pop %v2250
    %v2254 = vmul.f32 1.0, %v2253
    %v2255 = vmul.f32 %v2241, %v2252
    %v2256 = vmul.f32 %v2242, %v2254
    %v2257 = vpack.c.bf16 %v2256, %v2255
    %s2258 = scalar_lea.vmem %s26, 16
    %v2259 = vld [vmem:[%s2258] sm:$0xf]
    %v2260 = vld [vmem:[%s2258 + $0x4] sm:$0xf]
    %v2261 = vld [vmem:[%s2258 + $0x8] sm:$0xf]
    %v2262 = vld [vmem:[%s2258 + $0xc] sm:$0xf]
    %s2263 = scalar_lea.vmem %s27, 1
    %v2264 = vld [vmem:[%s2263] sm:$0x1]
    %v2266 = vlaneseq
    %v2267 = vshrl.u32 %v2266, 7
    %v2268 = vsub.s32 0, %v2267
    %v2269 = vrot.slane %v2264, %v2268
    %v2275 = vunpack.c.l.b16 %v2259
    %v2276 = vunpack.c.l.b16 %v2260
    %v2277 = vunpack.c.l.b16 %v2261
    %v2278 = vunpack.c.l.b16 %v2262
    %v2279 = vpack.c.b16 %v2276, %v2275
    %v2280 = vpack.c.b16 %v2278, %v2277
    %v2284 = vsel %vm412, %v2257, 0
    %2286 = vmatprep.subr.bf16.mxu0 0
    %2287 = vmatpush1.bf16.msra.mxu0 %v2279
    %2288 = vmatprep.subr.bf16.mxu0 0
    %2289 = vmatpush1.bf16.msra.mxu0 %v2280
    %2290 = vmatprep.subr.bf16.mxu0 0
    %2291 = vmatpush1.bf16.msra.mxu0 0
    %2292 = vmatprep.subr.bf16.mxu0 0
    %2293 = vmatpush1.bf16.msra.mxu0 0
    %2294 = vmatprep.subr.bf16.mxu0 0
    %2295 = vmatpush1.bf16.msra.mxu0 0
    %2296 = vmatprep.subr.bf16.mxu0 0
    %2297 = vmatpush1.bf16.msra.mxu0 0
    %2298 = vmatprep.subr.bf16.mxu0 0
    %2299 = vmatpush1.bf16.msra.mxu0 0
    %2300 = vmatprep.subr.bf16.mxu0 0
    %2301 = vmatpush1.bf16.msra.mxu0 0
    %2302 = vmatprep.subr.bf16.mxu0 0
    %2303 = vmatpush1.bf16.msra.mxu0 0
    %2304 = vmatprep.subr.bf16.mxu0 0
    %2305 = vmatpush1.bf16.msra.mxu0 0
    %2306 = vmatprep.subr.bf16.mxu0 0
    %2307 = vmatpush1.bf16.msra.mxu0 0
    %2308 = vmatprep.subr.bf16.mxu0 0
    %2309 = vmatpush1.bf16.msra.mxu0 0
    %2310 = vmatprep.subr.bf16.mxu0 0
    %2311 = vmatpush1.bf16.msra.mxu0 0
    %2312 = vmatprep.subr.bf16.mxu0 0
    %2313 = vmatpush1.bf16.msra.mxu0 0
    %2314 = vmatprep.subr.bf16.mxu0 0
    %2315 = vmatpush1.bf16.msra.mxu0 0
    %2316 = vmatprep.subr.bf16.mxu0 0
    %2317 = vmatpush1.bf16.msra.mxu0 0
    %2318 = vmatprep.mubr.bf16.mxu0 0
    %2319 = vmatmul.mubr.bf16.gmra.mrb[0].mxu0 %v2284
    %v2320 = vpop.f32.mrb[0].mxu0
    %v2321 = vadd.f32 %v2269, %v2320
    %v2322 = vpop.f32.mrb[0].mxu0
    %v2323 = vpop.f32.mrb[0].mxu0
    %v2324 = vadd.f32 %v2269, %v2323
    %v2325 = vpop.f32.mrb[0].mxu0
    %2326 = vdwg.mxu0
    %v2327 = vadd.f32 %v1391, %v2321
    %v2328 = vadd.f32 %v1392, %v2324
    %v2329 = vpack.c.bf16 %v2328, %v2327
    %v2330 = vld [vmem:[%s10] sm:$0xf]
    %v2331 = vld [vmem:[%s10 + $0x4] sm:$0xf]
    %v2332 = vld [vmem:[%s10 + $0x8] sm:$0xf]
    %v2333 = vld [vmem:[%s10 + $0xc] sm:$0xf]
    %v2334 = vld [vmem:[%s11] sm:$0x1]
    %v2336 = vlaneseq
    %v2337 = vshrl.u32 %v2336, 7
    %v2338 = vsub.s32 0, %v2337
    %v2339 = vrot.slane %v2334, %v2338
    %v2345 = vunpack.c.l.b16 %v2330
    %v2346 = vunpack.c.l.b16 %v2331
    %v2347 = vunpack.c.l.b16 %v2332
    %v2348 = vunpack.c.l.b16 %v2333
    %v2349 = vpack.c.b16 %v2346, %v2345
    %v2350 = vpack.c.b16 %v2348, %v2347
    %v2354 = vsel %vm412, %v2329, 0
    %2356 = vmatprep.subr.bf16.mxu0 0
    %2357 = vmatpush1.bf16.msra.mxu0 %v2349
    %2358 = vmatprep.subr.bf16.mxu0 0
    %2359 = vmatpush1.bf16.msra.mxu0 %v2350
    %2360 = vmatprep.subr.bf16.mxu0 0
    %2361 = vmatpush1.bf16.msra.mxu0 0
    %2362 = vmatprep.subr.bf16.mxu0 0
    %2363 = vmatpush1.bf16.msra.mxu0 0
    %2364 = vmatprep.subr.bf16.mxu0 0
    %2365 = vmatpush1.bf16.msra.mxu0 0
    %2366 = vmatprep.subr.bf16.mxu0 0
    %2367 = vmatpush1.bf16.msra.mxu0 0
    %2368 = vmatprep.subr.bf16.mxu0 0
    %2369 = vmatpush1.bf16.msra.mxu0 0
    %2370 = vmatprep.subr.bf16.mxu0 0
    %2371 = vmatpush1.bf16.msra.mxu0 0
    %2372 = vmatprep.subr.bf16.mxu0 0
    %2373 = vmatpush1.bf16.msra.mxu0 0
    %2374 = vmatprep.subr.bf16.mxu0 0
    %2375 = vmatpush1.bf16.msra.mxu0 0
    %2376 = vmatprep.subr.bf16.mxu0 0
    %2377 = vmatpush1.bf16.msra.mxu0 0
    %2378 = vmatprep.subr.bf16.mxu0 0
    %2379 = vmatpush1.bf16.msra.mxu0 0
    %2380 = vmatprep.subr.bf16.mxu0 0
    %2381 = vmatpush1.bf16.msra.mxu0 0
    %2382 = vmatprep.subr.bf16.mxu0 0
    %2383 = vmatpush1.bf16.msra.mxu0 0
    %2384 = vmatprep.subr.bf16.mxu0 0
    %2385 = vmatpush1.bf16.msra.mxu0 0
    %2386 = vmatprep.subr.bf16.mxu0 0
    %2387 = vmatpush1.bf16.msra.mxu0 0
    %2388 = vmatprep.mubr.bf16.mxu0 0
    %2389 = vmatmul.mubr.bf16.gmra.mrb[0].mxu0 %v2354
    %v2390 = vpop.f32.mrb[0].mxu0
    %v2391 = vadd.f32 %v2339, %v2390
    %v2392 = vpop.f32.mrb[0].mxu0
    %v2393 = vpop.f32.mrb[0].mxu0
    %v2394 = vadd.f32 %v2339, %v2393
    %v2395 = vpop.f32.mrb[0].mxu0
    %2396 = vdwg.mxu0
    %v2397 = vld [vmem:[%s5] sm:$0x3]
    %v2399 = vsel %vm367, %v2397, 0
    %2401 = vmatprep.subr.mxu0 0.0
    %2402 = vmatpush1.msra.mxu0 %v2391
    %2403 = vmatprep.subr.mxu0 0.0
    %2404 = vmatpush1.msra.mxu0 %v2394
    %2405 = vmatprep.subr.mxu0 0.0
    %2406 = vmatpush1.msra.mxu0 0.0
    %2407 = vmatprep.subr.mxu0 0.0
    %2408 = vmatpush1.msra.mxu0 0.0
    %2409 = vmatprep.subr.mxu0 0.0
    %2410 = vmatpush1.msra.mxu0 0.0
    %2411 = vmatprep.subr.mxu0 0.0
    %2412 = vmatpush1.msra.mxu0 0.0
    %2413 = vmatprep.subr.mxu0 0.0
    %2414 = vmatpush1.msra.mxu0 0.0
    %2415 = vmatprep.subr.mxu0 0.0
    %2416 = vmatpush1.msra.mxu0 0.0
    %2417 = vmatprep.subr.mxu0 0.0
    %2418 = vmatpush1.msra.mxu0 0.0
    %2419 = vmatprep.subr.mxu0 0.0
    %2420 = vmatpush1.msra.mxu0 0.0
    %2421 = vmatprep.subr.mxu0 0.0
    %2422 = vmatpush1.msra.mxu0 0.0
    %2423 = vmatprep.subr.mxu0 0.0
    %2424 = vmatpush1.msra.mxu0 0.0
    %2425 = vmatprep.subr.mxu0 0.0
    %2426 = vmatpush1.msra.mxu0 0.0
    %2427 = vmatprep.subr.mxu0 0.0
    %2428 = vmatpush1.msra.mxu0 0.0
    %2429 = vmatprep.subr.mxu0 0.0
    %2430 = vmatpush1.msra.mxu0 0.0
    %2431 = vmatprep.subr.mxu0 0.0
    %2432 = vmatpush1.msra.mxu0 0.0
    %2433 = vmatprep.subr.mxu0 0.0
    %2434 = vmatpush1.msra.mxu0 0.0
    %2435 = vmatprep.subr.mxu0 0.0
    %2436 = vmatpush1.msra.mxu0 0.0
    %2437 = vmatprep.subr.mxu0 0.0
    %2438 = vmatpush1.msra.mxu0 0.0
    %2439 = vmatprep.subr.mxu0 0.0
    %2440 = vmatpush1.msra.mxu0 0.0
    %2441 = vmatprep.subr.mxu0 0.0
    %2442 = vmatpush1.msra.mxu0 0.0
    %2443 = vmatprep.subr.mxu0 0.0
    %2444 = vmatpush1.msra.mxu0 0.0
    %2445 = vmatprep.subr.mxu0 0.0
    %2446 = vmatpush1.msra.mxu0 0.0
    %2447 = vmatprep.subr.mxu0 0.0
    %2448 = vmatpush1.msra.mxu0 0.0
    %2449 = vmatprep.subr.mxu0 0.0
    %2450 = vmatpush1.msra.mxu0 0.0
    %2451 = vmatprep.subr.mxu0 0.0
    %2452 = vmatpush1.msra.mxu0 0.0
    %2453 = vmatprep.subr.mxu0 0.0
    %2454 = vmatpush1.msra.mxu0 0.0
    %2455 = vmatprep.subr.mxu0 0.0
    %2456 = vmatpush1.msra.mxu0 0.0
    %2457 = vmatprep.subr.mxu0 0.0
    %2458 = vmatpush1.msra.mxu0 0.0
    %2459 = vmatprep.subr.mxu0 0.0
    %2460 = vmatpush1.msra.mxu0 0.0
    %2461 = vmatprep.subr.mxu0 0.0
    %2462 = vmatpush1.msra.mxu0 0.0
    %2463 = vmatprep.subr.mxu0 0.0
    %2464 = vmatpush1.msra.mxu0 0.0
    %2465 = vmatprep.mubr.f32.mxu0 0.0
    %2466 = vmatmul.mubr.f32.gmra.mrb[0].mxu0 %v2399
    %v2467 = vpop.f32.mrb[0].mxu0
    %v2468 = vadd.f32 0.0, %v2467
    %v2469 = vpop.f32.mrb[0].mxu0
    %2470 = vdwg.mxu0
    %v2471 = vld [vmem:[%s12] sm:$0x1]
    %v2473 = vlaneseq
    %v2474 = vshrl.u32 %v2473, 7
    %v2475 = vsub.s32 0, %v2474
    %v2476 = vrot.slane %v2471, %v2475
    %v2478 = vmul.f32 %v2468, %v2476
    %vm2479 = vcmask 123904
    %v2480 = vsel %vm2479, %v2478, 0.0
    %2481 = vadd.xlane.f32.xlu0 %v2480
    %v2482 = vpop.xlane.xlu0 %2481
    %v2483 = vld [vmem:[#allocation4] sm:$0x1]
    %v2485 = vlaneseq
    %v2486 = vshrl.u32 %v2485, 7
    %v2487 = vsub.s32 0, %v2486
    %v2488 = vrot.slane %v2483, %v2487
    %v2490 = vadd.f32 %v2482, %v2488
    %vm2491 = vcmask 1024
    %2492 = vst.msk [vmem:[%s28] sm:$0x3] %vm2491, %v2490
    // Predicated region
    $region132: #{classifier_forward.1} parent=1 // pred_check
      _
    $region133: #{classifier_forward.1} parent=1 // pred_check_branch
      %2494 = sbr.rel (0) target = $region135
    $region134: #{classifier_forward.1} parent=1 // pred_region
      _
    $region135: #{classifier_forward.1} parent=1 // pred_fallthru
      _
    // Predicated region
    $region136: #{classifier_forward.1} parent=1 // pred_check
      _
    $region137: #{classifier_forward.1} parent=1 // pred_check_branch
      %2496 = sbr.rel (0) target = $region139
    $region138: #{classifier_forward.1} parent=1 // pred_region
      _
    $region139: #{classifier_forward.1} parent=1 // pred_fallthru
      _
    %2497 = vsyncpa [#allocation6], 1

</llo_original>
